<compile_context>
chip_gen: v7x
topology: tpu7x:2x2x1
jax: 0.10.0
libtpu: 0.0.40
codegen_flags: <defaults>
</compile_context>

<pallas_src>
import functools

import numpy as np
import jax
import jax.numpy as jnp
from jax.experimental import pallas as pl
from jax.experimental.pallas import tpu as pltpu

S = 3  # number of modality tokens: fmri, text, semantic

_WEIGHT_ORDER = ("wq", "bq", "wk", "bk", "wv", "bv", "hs", "hb", "havg",
                 "w1a", "w1b", "w1c", "b1", "g1", "be1",
                 "w2", "b2", "g2", "be2", "w3", "b3")


def _cross_modal_kernel(fmri_ref, text_ref, sem_ref,
                        wq_ref, bq_ref, wk_ref, bk_ref, wv_ref, bv_ref,
                        hs_ref, hb_ref, havg_ref,
                        w1a_ref, w1b_ref, w1c_ref, b1_ref, g1_ref, be1_ref,
                        w2_ref, b2_ref, g2_ref, be2_ref,
                        w3_ref, b3_ref,
                        fused_ref, attn_ref, *, eps):
    f32 = jnp.float32
    cd = wq_ref.dtype                                   # matmul operand dtype (bf16)

    xs = (fmri_ref[...], text_ref[...], sem_ref[...])   # 3 x (B_TILE, H) in cd

    wq, wk, wv = wq_ref[...], wk_ref[...], wv_ref[...]
    bq, bk, bv = bq_ref[...], bk_ref[...], bv_ref[...]  # f32 biases

    # ---- QKV projections (softmax scale 1/sqrt(hd) pre-folded into wq/bq) ----
    q = [jnp.dot(x, wq, preferred_element_type=f32) + bq for x in xs]
    k = [jnp.dot(x, wk, preferred_element_type=f32) + bk for x in xs]
    v = [jnp.dot(x, wv, preferred_element_type=f32) + bv for x in xs]

    hs = hs_ref[...]                                    # (H, nh) head segment-sum
    hb = hb_ref[...]                                    # (nh, H) head lane-broadcast

    # ---- per-head attention scores: s[i][j][b,h] = sum_{d in head h} q_i*k_j --
    s = [[jnp.dot((q[i] * k[j]).astype(cd), hs, preferred_element_type=f32)
          for j in range(S)] for i in range(S)]

    probs = []                                          # (i, j)-ordered, (B_TILE, nh)
    ctx = []
    for i in range(S):                                  # S = 3, static unroll
        m = jnp.maximum(jnp.maximum(s[i][0], s[i][1]), s[i][2])
        e = [jnp.exp(s[i][j] - m) for j in range(S)]
        inv_denom = pl.reciprocal(e[0] + e[1] + e[2], approx=True)   # EUP slot
        p = [e[j] * inv_denom for j in range(S)]
        probs.extend(p)
        # context: broadcast p over each head's lanes (MXU), FMA with v (VPU)
        c = jnp.dot(p[0].astype(cd), hb, preferred_element_type=f32) * v[0]
        c = c + jnp.dot(p[1].astype(cd), hb, preferred_element_type=f32) * v[1]
        c = c + jnp.dot(p[2].astype(cd), hb, preferred_element_type=f32) * v[2]
        ctx.append(c)                                   # (B_TILE, H)

    # ---- head-averaged attention weights -> lane-dense (B_TILE, 128) block ----
    p_all = jnp.concatenate(probs, axis=-1).astype(cd)  # (B_TILE, 9*nh)
    attn_ref[...] = jnp.dot(p_all, havg_ref[...],
                            preferred_element_type=f32).astype(attn_ref.dtype)

    # ---- fusion stage 1 (out-projection + 1/temperature folded into w1*/b1) --
    h1 = (b1_ref[...]
          + jnp.dot(ctx[0].astype(cd), w1a_ref[...], preferred_element_type=f32)
          + jnp.dot(ctx[1].astype(cd), w1b_ref[...], preferred_element_type=f32)
          + jnp.dot(ctx[2].astype(cd), w1c_ref[...], preferred_element_type=f32))
    mu = jnp.mean(h1, axis=-1, keepdims=True)
    var = jnp.mean((h1 - mu) ** 2, axis=-1, keepdims=True)
    h1 = (h1 - mu) * jax.lax.rsqrt(var + eps) * g1_ref[...] + be1_ref[...]
    h1 = jnp.maximum(h1, 0.0)
    # TODO(synk): Dropout layers (p=0.3 / 0.2) are identity in inference (eval) mode.

    h2 = jnp.dot(h1.astype(cd), w2_ref[...], preferred_element_type=f32) + b2_ref[...]
    mu = jnp.mean(h2, axis=-1, keepdims=True)
    var = jnp.mean((h2 - mu) ** 2, axis=-1, keepdims=True)
    h2 = (h2 - mu) * jax.lax.rsqrt(var + eps) * g2_ref[...] + be2_ref[...]
    h2 = jnp.maximum(h2, 0.0)

    h3 = jnp.dot(h2.astype(cd), w3_ref[...], preferred_element_type=f32) + b3_ref[...]
    fused_ref[...] = h3.astype(fused_ref.dtype)         # (B_TILE, H)


def prepare_params(params, *, num_heads=8, compute_dtype=jnp.bfloat16):
    """One-off weight folding; call at parameter-load time, NOT per forward."""
    f32 = jnp.float32
    cd = compute_dtype
    wqkv = params["wqkv"].astype(f32)
    bqkv = params["bqkv"].astype(f32)
    H = wqkv.shape[0]
    assert H % num_heads == 0
    hd = H // num_heads

    scale = 1.0 / float(np.sqrt(hd))                    # softmax scale -> Q projection
    wq, bq = wqkv[:, :H] * scale, bqkv[:, :H] * scale
    wk, bk = wqkv[:, H:2 * H], bqkv[:, H:2 * H]
    wv, bv = wqkv[:, 2 * H:], bqkv[:, 2 * H:]

    inv_t = 1.0 / params["temp"].astype(f32)[0, 0]      # 1/temperature -> out-projection
    wo = params["wo"].astype(f32) * inv_t
    bo = params["bo"].astype(f32) * inv_t

    # Fold the out-projection into fusion stage 1 (exact: `attended` is never returned):
    #   h1_pre = b1 + bo @ (W1a+W1b+W1c) + sum_i ctx_i @ (Wo @ W1_i)
    w1 = params["w1"].astype(f32)
    w1a, w1b, w1c = w1[:H], w1[H:2 * H], w1[2 * H:]
    w1fa, w1fb, w1fc = wo @ w1a, wo @ w1b, wo @ w1c
    b1f = params["b1"].astype(f32) + bo @ (w1a + w1b + w1c)

    # per-head segment-sum / lane-broadcast indicator matrices (exact in bf16)
    hs = np.kron(np.eye(num_heads, dtype=np.float32), np.ones((hd, 1), np.float32))
    hb = hs.T
    # block-diagonal head-averaging matrix -> lane-dense (B, 128) attn output
    havg = np.zeros((S * S * num_heads, 128), np.float32)
    for pidx in range(S * S):
        havg[pidx * num_heads:(pidx + 1) * num_heads, pidx] = 1.0 / num_heads

    return dict(
        wq=wq.astype(cd), bq=bq, wk=wk.astype(cd), bk=bk, wv=wv.astype(cd), bv=bv,
        hs=jnp.asarray(hs).astype(cd), hb=jnp.asarray(hb).astype(cd),
        havg=jnp.asarray(havg).astype(cd),
        w1a=w1fa.astype(cd), w1b=w1fb.astype(cd), w1c=w1fc.astype(cd),
        b1=b1f, g1=params["g1"].astype(f32), be1=params["be1"].astype(f32),
        w2=params["w2"].astype(cd), b2=params["b2"].astype(f32),
        g2=params["g2"].astype(f32), be2=params["be2"].astype(f32),
        w3=params["w3"].astype(cd), b3=params["b3"].astype(f32),
    )


@functools.partial(jax.jit, static_argnames=("eps", "b_tile"))
def improved_cross_modal_attention(fmri, text, semantic, prepared, *,
                                   eps=1e-5, b_tile=None):
    B, H = fmri.shape
    cd = prepared["wq"].dtype
    f32 = jnp.float32

    def r16(x):
        return ((x + 15) // 16) * 16

    if b_tile is None:
        # >= 2 grid steps when B allows (both v7x TensorCores busy via
        # dimension_semantics=("parallel",)); multiple of 16 for bf16 packing.
        # v5e/v6e (128 MiB VMEM) can profitably sweep this up to 512.
        b_tile = min(256, max(16, r16(pl.cdiv(B, 2))))
    b_tile = max(8, ((b_tile + 7) // 8) * 8)
    B_pad = pl.cdiv(B, b_tile) * b_tile

    def pad(a):
        a = a.astype(cd)
        if B_pad != B:
            a = jnp.pad(a, ((0, B_pad - B), (0, 0)))
        return a

    xs = (pad(fmri), pad(text), pad(semantic))
    weights = tuple(prepared[k] for k in _WEIGHT_ORDER)

    x_spec = pl.BlockSpec((b_tile, H), lambda b: (b, 0))

    def full_spec(a):
        return pl.BlockSpec(a.shape, lambda b: (0, 0))   # resident across batch grid

    in_specs = [x_spec, x_spec, x_spec] + [full_spec(w) for w in weights]

    out_shapes = (jax.ShapeDtypeStruct((B_pad, H), f32),
                  jax.ShapeDtypeStruct((B_pad, 128), f32))   # lane-dense attn block
    out_specs = [pl.BlockSpec((b_tile, H), lambda b: (b, 0)),
                 pl.BlockSpec((b_tile, 128), lambda b: (b, 0))]

    # VMEM budget: resident weights (x2 pipeline buffers), double-buffered I/O
    # blocks, and the f32 temporaries kept live by the S=3 static unroll.
    # TODO(synk): for H >= ~1024 on v7x (64 MiB physical VMEM) the fusion
    # weights should be streamed over an extra grid axis instead of kept resident.
    weight_bytes = sum(int(np.prod(w.shape)) * jnp.dtype(w.dtype).itemsize
                       for w in weights)
    io_bytes = 2 * b_tile * (3 * H * jnp.dtype(cd).itemsize + (H + 128) * 4)
    tmp_bytes = 28 * b_tile * max(H, 128) * 4
    vmem_limit = int(min(max(32 << 20,
                             2 * weight_bytes + io_bytes + tmp_bytes + (4 << 20)),
                         96 << 20))

    kernel = functools.partial(_cross_modal_kernel, eps=eps)
    fused, attn = pl.pallas_call(
        kernel,
        out_shape=out_shapes,
        grid_spec=pltpu.PrefetchScalarGridSpec(
            num_scalar_prefetch=0,
            grid=(B_pad // b_tile,),
            in_specs=in_specs,
            out_specs=out_specs,
        ),
        compiler_params=pltpu.CompilerParams(
            dimension_semantics=("parallel",),   # shard batch tiles across TCs (v7x)
            vmem_limit_bytes=vmem_limit,
        ),
    )(*xs, *weights)

    fused = fused[:B]
    attn = attn[:B, :S * S].reshape(B, S, S)
    return fused, attn


def init_params(key, hidden_dim, seq=3):
    ks = jax.random.split(key, 8)

    def linear(k, fan_in, fan_out):
        lim = 1.0 / np.sqrt(fan_in)
        kw, kb = jax.random.split(k)
        w = jax.random.uniform(kw, (fan_in, fan_out), jnp.float32, -lim, lim)
        b = jax.random.uniform(kb, (1, fan_out), jnp.float32, -lim, lim)
        return w, b

    H = hidden_dim
    wqkv, bqkv = linear(ks[0], H, 3 * H)          # in-projection (q|k|v)
    wo, bo = linear(ks[1], H, H)                  # out-projection
    w1, b1 = linear(ks[2], seq * H, 2 * H)        # fusion Linear(3H -> 2H)
    w2, b2 = linear(ks[3], 2 * H, H)              # fusion Linear(2H -> H)
    w3, b3 = linear(ks[4], H, H)                  # fusion Linear(H -> H)
    return dict(
        wqkv=wqkv, bqkv=bqkv, wo=wo, bo=bo,
        temp=jnp.ones((1, 1), jnp.float32),       # nn.Parameter(torch.ones(1))
        w1=w1, b1=b1, g1=jnp.ones((1, 2 * H), jnp.float32), be1=jnp.zeros((1, 2 * H), jnp.float32),
        w2=w2, b2=b2, g2=jnp.ones((1, H), jnp.float32), be2=jnp.zeros((1, H), jnp.float32),
        w3=w3, b3=b3,
    )


def reference_np(fmri, text, semantic, params, num_heads=8, eps=1e-5):
    """Pure-numpy (float64) reference mirroring the PyTorch forward pass."""
    P = {k: np.asarray(v, np.float64) for k, v in params.items()}
    x = np.stack([np.asarray(fmri, np.float64),
                  np.asarray(text, np.float64),
                  np.asarray(semantic, np.float64)], axis=1)        # (B, S, H)
    B, Sq, H = x.shape
    hd = H // num_heads
    q = x @ P["wqkv"][:, :H] + P["bqkv"][:, :H]
    k = x @ P["wqkv"][:, H:2 * H] + P["bqkv"][:, H:2 * H]
    v = x @ P["wqkv"][:, 2 * H:] + P["bqkv"][:, 2 * H:]

    def split(t):
        return t.reshape(B, Sq, num_heads, hd).transpose(0, 2, 1, 3)
    qh, kh, vh = split(q), split(k), split(v)
    s = qh @ kh.transpose(0, 1, 3, 2) / np.sqrt(hd)
    s = s - s.max(-1, keepdims=True)
    p = np.exp(s)
    p = p / p.sum(-1, keepdims=True)
    ctx = (p @ vh).transpose(0, 2, 1, 3).reshape(B, Sq, H)
    attended = ctx @ P["wo"] + P["bo"]
    attended = attended / P["temp"][0, 0]
    attn_w = p.mean(axis=1)                                          # averaged over heads

    flat = attended.reshape(B, Sq * H)

    def layer_norm(h, g, b):
        mu = h.mean(-1, keepdims=True)
        var = ((h - mu) ** 2).mean(-1, keepdims=True)
        return (h - mu) / np.sqrt(var + eps) * g + b

    h1 = np.maximum(layer_norm(flat @ P["w1"] + P["b1"], P["g1"], P["be1"]), 0.0)
    h2 = np.maximum(layer_norm(h1 @ P["w2"] + P["b2"], P["g2"], P["be2"]), 0.0)
    h3 = h2 @ P["w3"] + P["b3"]
    return h3.astype(np.float32), attn_w.astype(np.float32)


if __name__ == "__main__":
    B, H = 32, 64         # hidden divisible by 8 heads (head_dim = 8)
    key = jax.random.PRNGKey(0)
    k_p, k_f, k_t, k_s = jax.random.split(key, 4)

    params = init_params(k_p, H)
    fmri = jax.random.normal(k_f, (B, H), jnp.float32)
    text = jax.random.normal(k_t, (B, H), jnp.float32)
    semantic = jax.random.normal(k_s, (B, H), jnp.float32)

    prepared = prepare_params(params, num_heads=8)   # one-off weight folding

    # b_tile=16 -> 2 grid steps at this small test size (exercises batch tiling).
    fused, attn = improved_cross_modal_attention(fmri, text, semantic, prepared,
                                                 b_tile=16)
    jax.block_until_ready((fused, attn))

    fused_ref, attn_ref = reference_np(fmri, text, semantic, params)
    # bf16 matmul operands (with f32 accumulation) checked vs a float64 reference.
    np.testing.assert_allclose(np.asarray(attn), attn_ref, rtol=2e-2, atol=2e-2)
    np.testing.assert_allclose(np.asarray(fused), fused_ref, rtol=1e-1, atol=1e-1)

    print("KERNEL_OK")
</pallas_src>

<mosaic_0001>
module attributes {stable_mosaic.version = 11 : i64} {
  func.func @_cross_modal_kernel(%arg0: i32, %arg1: memref<16x64xbf16, #tpu.memory_space<vmem>>, %arg2: memref<16x64xbf16, #tpu.memory_space<vmem>>, %arg3: memref<16x64xbf16, #tpu.memory_space<vmem>>, %arg4: memref<64x64xbf16, #tpu.memory_space<vmem>>, %arg5: memref<1x64xf32, #tpu.memory_space<vmem>>, %arg6: memref<64x64xbf16, #tpu.memory_space<vmem>>, %arg7: memref<1x64xf32, #tpu.memory_space<vmem>>, %arg8: memref<64x64xbf16, #tpu.memory_space<vmem>>, %arg9: memref<1x64xf32, #tpu.memory_space<vmem>>, %arg10: memref<64x8xbf16, #tpu.memory_space<vmem>>, %arg11: memref<8x64xbf16, #tpu.memory_space<vmem>>, %arg12: memref<72x128xbf16, #tpu.memory_space<vmem>>, %arg13: memref<64x128xbf16, #tpu.memory_space<vmem>>, %arg14: memref<64x128xbf16, #tpu.memory_space<vmem>>, %arg15: memref<64x128xbf16, #tpu.memory_space<vmem>>, %arg16: memref<1x128xf32, #tpu.memory_space<vmem>>, %arg17: memref<1x128xf32, #tpu.memory_space<vmem>>, %arg18: memref<1x128xf32, #tpu.memory_space<vmem>>, %arg19: memref<128x64xbf16, #tpu.memory_space<vmem>>, %arg20: memref<1x64xf32, #tpu.memory_space<vmem>>, %arg21: memref<1x64xf32, #tpu.memory_space<vmem>>, %arg22: memref<1x64xf32, #tpu.memory_space<vmem>>, %arg23: memref<64x64xbf16, #tpu.memory_space<vmem>>, %arg24: memref<1x64xf32, #tpu.memory_space<vmem>>, %arg25: memref<16x64xf32, #tpu.memory_space<vmem>>, %arg26: memref<16x128xf32, #tpu.memory_space<vmem>>) attributes {dimension_semantics = [#tpu.dimension_semantics<parallel>], iteration_bounds = array<i64: 2>, scalar_prefetch = 0 : i64, scratch_operands = 0 : i64, tpu.core_type = #tpu.core_type<tc>, window_params = [{transform_indices = @transform_0, window_bounds = array<i64: 16, 64>}, {transform_indices = @transform_1, window_bounds = array<i64: 16, 64>}, {transform_indices = @transform_2, window_bounds = array<i64: 16, 64>}, {pipeline_mode = #tpu.pipeline_mode<synchronous>, transform_indices = @transform_3, window_bounds = array<i64: 64, 64>}, {pipeline_mode = #tpu.pipeline_mode<synchronous>, transform_indices = @transform_4, window_bounds = array<i64: 1, 64>}, {pipeline_mode = #tpu.pipeline_mode<synchronous>, transform_indices = @transform_5, window_bounds = array<i64: 64, 64>}, {pipeline_mode = #tpu.pipeline_mode<synchronous>, transform_indices = @transform_6, window_bounds = array<i64: 1, 64>}, {pipeline_mode = #tpu.pipeline_mode<synchronous>, transform_indices = @transform_7, window_bounds = array<i64: 64, 64>}, {pipeline_mode = #tpu.pipeline_mode<synchronous>, transform_indices = @transform_8, window_bounds = array<i64: 1, 64>}, {pipeline_mode = #tpu.pipeline_mode<synchronous>, transform_indices = @transform_9, window_bounds = array<i64: 64, 8>}, {pipeline_mode = #tpu.pipeline_mode<synchronous>, transform_indices = @transform_10, window_bounds = array<i64: 8, 64>}, {pipeline_mode = #tpu.pipeline_mode<synchronous>, transform_indices = @transform_11, window_bounds = array<i64: 72, 128>}, {pipeline_mode = #tpu.pipeline_mode<synchronous>, transform_indices = @transform_12, window_bounds = array<i64: 64, 128>}, {pipeline_mode = #tpu.pipeline_mode<synchronous>, transform_indices = @transform_13, window_bounds = array<i64: 64, 128>}, {pipeline_mode = #tpu.pipeline_mode<synchronous>, transform_indices = @transform_14, window_bounds = array<i64: 64, 128>}, {pipeline_mode = #tpu.pipeline_mode<synchronous>, transform_indices = @transform_15, window_bounds = array<i64: 1, 128>}, {pipeline_mode = #tpu.pipeline_mode<synchronous>, transform_indices = @transform_16, window_bounds = array<i64: 1, 128>}, {pipeline_mode = #tpu.pipeline_mode<synchronous>, transform_indices = @transform_17, window_bounds = array<i64: 1, 128>}, {pipeline_mode = #tpu.pipeline_mode<synchronous>, transform_indices = @transform_18, window_bounds = array<i64: 128, 64>}, {pipeline_mode = #tpu.pipeline_mode<synchronous>, transform_indices = @transform_19, window_bounds = array<i64: 1, 64>}, {pipeline_mode = #tpu.pipeline_mode<synchronous>, transform_indices = @transform_20, window_bounds = array<i64: 1, 64>}, {pipeline_mode = #tpu.pipeline_mode<synchronous>, transform_indices = @transform_21, window_bounds = array<i64: 1, 64>}, {pipeline_mode = #tpu.pipeline_mode<synchronous>, transform_indices = @transform_22, window_bounds = array<i64: 64, 64>}, {pipeline_mode = #tpu.pipeline_mode<synchronous>, transform_indices = @transform_23, window_bounds = array<i64: 1, 64>}, {transform_indices = @transform_24, window_bounds = array<i64: 16, 64>}, {transform_indices = @transform_25, window_bounds = array<i64: 16, 128>}]} {
    %c0 = arith.constant 0 : index
    %c0_0 = arith.constant 0 : index
    %0 = vector.load %arg1[%c0, %c0_0] : memref<16x64xbf16, #tpu.memory_space<vmem>>, vector<16x64xbf16>
    %c0_1 = arith.constant 0 : index
    %c0_2 = arith.constant 0 : index
    %1 = vector.load %arg2[%c0_1, %c0_2] : memref<16x64xbf16, #tpu.memory_space<vmem>>, vector<16x64xbf16>
    %c0_3 = arith.constant 0 : index
    %c0_4 = arith.constant 0 : index
    %2 = vector.load %arg3[%c0_3, %c0_4] : memref<16x64xbf16, #tpu.memory_space<vmem>>, vector<16x64xbf16>
    %c0_5 = arith.constant 0 : index
    %c0_6 = arith.constant 0 : index
    %3 = vector.load %arg4[%c0_5, %c0_6] : memref<64x64xbf16, #tpu.memory_space<vmem>>, vector<64x64xbf16>
    %c0_7 = arith.constant 0 : index
    %c0_8 = arith.constant 0 : index
    %4 = vector.load %arg6[%c0_7, %c0_8] : memref<64x64xbf16, #tpu.memory_space<vmem>>, vector<64x64xbf16>
    %c0_9 = arith.constant 0 : index
    %c0_10 = arith.constant 0 : index
    %5 = vector.load %arg8[%c0_9, %c0_10] : memref<64x64xbf16, #tpu.memory_space<vmem>>, vector<64x64xbf16>
    %c0_11 = arith.constant 0 : index
    %c0_12 = arith.constant 0 : index
    %6 = vector.load %arg5[%c0_11, %c0_12] : memref<1x64xf32, #tpu.memory_space<vmem>>, vector<1x64xf32>
    %c0_13 = arith.constant 0 : index
    %c0_14 = arith.constant 0 : index
    %7 = vector.load %arg7[%c0_13, %c0_14] : memref<1x64xf32, #tpu.memory_space<vmem>>, vector<1x64xf32>
    %c0_15 = arith.constant 0 : index
    %c0_16 = arith.constant 0 : index
    %8 = vector.load %arg9[%c0_15, %c0_16] : memref<1x64xf32, #tpu.memory_space<vmem>>, vector<1x64xf32>
    %cst = arith.constant dense<0.000000e+00> : vector<16x64xf32>
    %9 = tpu.matmul %0, %3, %cst {dimension_numbers = #tpu.dot_dimension_numbers<[1], [0], [0], [1], [0, 0, 1, 1], [], []>} : vector<16x64xbf16>, vector<64x64xbf16>, vector<16x64xf32> -> vector<16x64xf32>
    %10 = vector.broadcast %6 : vector<1x64xf32> to vector<16x64xf32>
    %11 = arith.addf %9, %10 : vector<16x64xf32>
    %cst_17 = arith.constant dense<0.000000e+00> : vector<16x64xf32>
    %12 = tpu.matmul %1, %3, %cst_17 {dimension_numbers = #tpu.dot_dimension_numbers<[1], [0], [0], [1], [0, 0, 1, 1], [], []>} : vector<16x64xbf16>, vector<64x64xbf16>, vector<16x64xf32> -> vector<16x64xf32>
    %13 = vector.broadcast %6 : vector<1x64xf32> to vector<16x64xf32>
    %14 = arith.addf %12, %13 : vector<16x64xf32>
    %cst_18 = arith.constant dense<0.000000e+00> : vector<16x64xf32>
    %15 = tpu.matmul %2, %3, %cst_18 {dimension_numbers = #tpu.dot_dimension_numbers<[1], [0], [0], [1], [0, 0, 1, 1], [], []>} : vector<16x64xbf16>, vector<64x64xbf16>, vector<16x64xf32> -> vector<16x64xf32>
    %16 = vector.broadcast %6 : vector<1x64xf32> to vector<16x64xf32>
    %17 = arith.addf %15, %16 : vector<16x64xf32>
    %cst_19 = arith.constant dense<0.000000e+00> : vector<16x64xf32>
    %18 = tpu.matmul %0, %4, %cst_19 {dimension_numbers = #tpu.dot_dimension_numbers<[1], [0], [0], [1], [0, 0, 1, 1], [], []>} : vector<16x64xbf16>, vector<64x64xbf16>, vector<16x64xf32> -> vector<16x64xf32>
    %19 = vector.broadcast %7 : vector<1x64xf32> to vector<16x64xf32>
    %20 = arith.addf %18, %19 : vector<16x64xf32>
    %cst_20 = arith.constant dense<0.000000e+00> : vector<16x64xf32>
    %21 = tpu.matmul %1, %4, %cst_20 {dimension_numbers = #tpu.dot_dimension_numbers<[1], [0], [0], [1], [0, 0, 1, 1], [], []>} : vector<16x64xbf16>, vector<64x64xbf16>, vector<16x64xf32> -> vector<16x64xf32>
    %22 = vector.broadcast %7 : vector<1x64xf32> to vector<16x64xf32>
    %23 = arith.addf %21, %22 : vector<16x64xf32>
    %cst_21 = arith.constant dense<0.000000e+00> : vector<16x64xf32>
    %24 = tpu.matmul %2, %4, %cst_21 {dimension_numbers = #tpu.dot_dimension_numbers<[1], [0], [0], [1], [0, 0, 1, 1], [], []>} : vector<16x64xbf16>, vector<64x64xbf16>, vector<16x64xf32> -> vector<16x64xf32>
    %25 = vector.broadcast %7 : vector<1x64xf32> to vector<16x64xf32>
    %26 = arith.addf %24, %25 : vector<16x64xf32>
    %cst_22 = arith.constant dense<0.000000e+00> : vector<16x64xf32>
    %27 = tpu.matmul %0, %5, %cst_22 {dimension_numbers = #tpu.dot_dimension_numbers<[1], [0], [0], [1], [0, 0, 1, 1], [], []>} : vector<16x64xbf16>, vector<64x64xbf16>, vector<16x64xf32> -> vector<16x64xf32>
    %28 = vector.broadcast %8 : vector<1x64xf32> to vector<16x64xf32>
    %29 = arith.addf %27, %28 : vector<16x64xf32>
    %cst_23 = arith.constant dense<0.000000e+00> : vector<16x64xf32>
    %30 = tpu.matmul %1, %5, %cst_23 {dimension_numbers = #tpu.dot_dimension_numbers<[1], [0], [0], [1], [0, 0, 1, 1], [], []>} : vector<16x64xbf16>, vector<64x64xbf16>, vector<16x64xf32> -> vector<16x64xf32>
    %31 = vector.broadcast %8 : vector<1x64xf32> to vector<16x64xf32>
    %32 = arith.addf %30, %31 : vector<16x64xf32>
    %cst_24 = arith.constant dense<0.000000e+00> : vector<16x64xf32>
    %33 = tpu.matmul %2, %5, %cst_24 {dimension_numbers = #tpu.dot_dimension_numbers<[1], [0], [0], [1], [0, 0, 1, 1], [], []>} : vector<16x64xbf16>, vector<64x64xbf16>, vector<16x64xf32> -> vector<16x64xf32>
    %34 = vector.broadcast %8 : vector<1x64xf32> to vector<16x64xf32>
    %35 = arith.addf %33, %34 : vector<16x64xf32>
    %c0_25 = arith.constant 0 : index
    %c0_26 = arith.constant 0 : index
    %36 = vector.load %arg10[%c0_25, %c0_26] : memref<64x8xbf16, #tpu.memory_space<vmem>>, vector<64x8xbf16>
    %c0_27 = arith.constant 0 : index
    %c0_28 = arith.constant 0 : index
    %37 = vector.load %arg11[%c0_27, %c0_28] : memref<8x64xbf16, #tpu.memory_space<vmem>>, vector<8x64xbf16>
    %38 = arith.mulf %11, %20 : vector<16x64xf32>
    %39 = arith.truncf %38 : vector<16x64xf32> to vector<16x64xbf16>
    %cst_29 = arith.constant dense<0.000000e+00> : vector<16x8xf32>
    %40 = tpu.matmul %39, %36, %cst_29 {dimension_numbers = #tpu.dot_dimension_numbers<[1], [0], [0], [1], [0, 0, 1, 1], [], []>} : vector<16x64xbf16>, vector<64x8xbf16>, vector<16x8xf32> -> vector<16x8xf32>
    %41 = arith.mulf %11, %23 : vector<16x64xf32>
    %42 = arith.truncf %41 : vector<16x64xf32> to vector<16x64xbf16>
    %cst_30 = arith.constant dense<0.000000e+00> : vector<16x8xf32>
    %43 = tpu.matmul %42, %36, %cst_30 {dimension_numbers = #tpu.dot_dimension_numbers<[1], [0], [0], [1], [0, 0, 1, 1], [], []>} : vector<16x64xbf16>, vector<64x8xbf16>, vector<16x8xf32> -> vector<16x8xf32>
    %44 = arith.mulf %11, %26 : vector<16x64xf32>
    %45 = arith.truncf %44 : vector<16x64xf32> to vector<16x64xbf16>
    %cst_31 = arith.constant dense<0.000000e+00> : vector<16x8xf32>
    %46 = tpu.matmul %45, %36, %cst_31 {dimension_numbers = #tpu.dot_dimension_numbers<[1], [0], [0], [1], [0, 0, 1, 1], [], []>} : vector<16x64xbf16>, vector<64x8xbf16>, vector<16x8xf32> -> vector<16x8xf32>
    %47 = arith.mulf %14, %20 : vector<16x64xf32>
    %48 = arith.truncf %47 : vector<16x64xf32> to vector<16x64xbf16>
    %cst_32 = arith.constant dense<0.000000e+00> : vector<16x8xf32>
    %49 = tpu.matmul %48, %36, %cst_32 {dimension_numbers = #tpu.dot_dimension_numbers<[1], [0], [0], [1], [0, 0, 1, 1], [], []>} : vector<16x64xbf16>, vector<64x8xbf16>, vector<16x8xf32> -> vector<16x8xf32>
    %50 = arith.mulf %14, %23 : vector<16x64xf32>
    %51 = arith.truncf %50 : vector<16x64xf32> to vector<16x64xbf16>
    %cst_33 = arith.constant dense<0.000000e+00> : vector<16x8xf32>
    %52 = tpu.matmul %51, %36, %cst_33 {dimension_numbers = #tpu.dot_dimension_numbers<[1], [0], [0], [1], [0, 0, 1, 1], [], []>} : vector<16x64xbf16>, vector<64x8xbf16>, vector<16x8xf32> -> vector<16x8xf32>
    %53 = arith.mulf %14, %26 : vector<16x64xf32>
    %54 = arith.truncf %53 : vector<16x64xf32> to vector<16x64xbf16>
    %cst_34 = arith.constant dense<0.000000e+00> : vector<16x8xf32>
    %55 = tpu.matmul %54, %36, %cst_34 {dimension_numbers = #tpu.dot_dimension_numbers<[1], [0], [0], [1], [0, 0, 1, 1], [], []>} : vector<16x64xbf16>, vector<64x8xbf16>, vector<16x8xf32> -> vector<16x8xf32>
    %56 = arith.mulf %17, %20 : vector<16x64xf32>
    %57 = arith.truncf %56 : vector<16x64xf32> to vector<16x64xbf16>
    %cst_35 = arith.constant dense<0.000000e+00> : vector<16x8xf32>
    %58 = tpu.matmul %57, %36, %cst_35 {dimension_numbers = #tpu.dot_dimension_numbers<[1], [0], [0], [1], [0, 0, 1, 1], [], []>} : vector<16x64xbf16>, vector<64x8xbf16>, vector<16x8xf32> -> vector<16x8xf32>
    %59 = arith.mulf %17, %23 : vector<16x64xf32>
    %60 = arith.truncf %59 : vector<16x64xf32> to vector<16x64xbf16>
    %cst_36 = arith.constant dense<0.000000e+00> : vector<16x8xf32>
    %61 = tpu.matmul %60, %36, %cst_36 {dimension_numbers = #tpu.dot_dimension_numbers<[1], [0], [0], [1], [0, 0, 1, 1], [], []>} : vector<16x64xbf16>, vector<64x8xbf16>, vector<16x8xf32> -> vector<16x8xf32>
    %62 = arith.mulf %17, %26 : vector<16x64xf32>
    %63 = arith.truncf %62 : vector<16x64xf32> to vector<16x64xbf16>
    %cst_37 = arith.constant dense<0.000000e+00> : vector<16x8xf32>
    %64 = tpu.matmul %63, %36, %cst_37 {dimension_numbers = #tpu.dot_dimension_numbers<[1], [0], [0], [1], [0, 0, 1, 1], [], []>} : vector<16x64xbf16>, vector<64x8xbf16>, vector<16x8xf32> -> vector<16x8xf32>
    %65 = arith.maximumf %40, %43 : vector<16x8xf32>
    %66 = arith.maximumf %65, %46 : vector<16x8xf32>
    %67 = arith.subf %40, %66 : vector<16x8xf32>
    %68 = math.exp %67 : vector<16x8xf32>
    %69 = arith.subf %43, %66 : vector<16x8xf32>
    %70 = math.exp %69 : vector<16x8xf32>
    %71 = arith.subf %46, %66 : vector<16x8xf32>
    %72 = math.exp %71 : vector<16x8xf32>
    %73 = arith.addf %68, %70 : vector<16x8xf32>
    %74 = arith.addf %73, %72 : vector<16x8xf32>
    %75 = tpu.reciprocal %74 {approx = true} : vector<16x8xf32> -> vector<16x8xf32>
    %76 = arith.mulf %68, %75 : vector<16x8xf32>
    %77 = arith.mulf %70, %75 : vector<16x8xf32>
    %78 = arith.mulf %72, %75 : vector<16x8xf32>
    %79 = arith.truncf %76 : vector<16x8xf32> to vector<16x8xbf16>
    %cst_38 = arith.constant dense<0.000000e+00> : vector<16x64xf32>
    %80 = tpu.matmul %79, %37, %cst_38 {dimension_numbers = #tpu.dot_dimension_numbers<[1], [0], [0], [1], [0, 0, 1, 1], [], []>} : vector<16x8xbf16>, vector<8x64xbf16>, vector<16x64xf32> -> vector<16x64xf32>
    %81 = arith.mulf %80, %29 : vector<16x64xf32>
    %82 = arith.truncf %77 : vector<16x8xf32> to vector<16x8xbf16>
    %cst_39 = arith.constant dense<0.000000e+00> : vector<16x64xf32>
    %83 = tpu.matmul %82, %37, %cst_39 {dimension_numbers = #tpu.dot_dimension_numbers<[1], [0], [0], [1], [0, 0, 1, 1], [], []>} : vector<16x8xbf16>, vector<8x64xbf16>, vector<16x64xf32> -> vector<16x64xf32>
    %84 = arith.mulf %83, %32 : vector<16x64xf32>
    %85 = arith.addf %81, %84 : vector<16x64xf32>
    %86 = arith.truncf %78 : vector<16x8xf32> to vector<16x8xbf16>
    %cst_40 = arith.constant dense<0.000000e+00> : vector<16x64xf32>
    %87 = tpu.matmul %86, %37, %cst_40 {dimension_numbers = #tpu.dot_dimension_numbers<[1], [0], [0], [1], [0, 0, 1, 1], [], []>} : vector<16x8xbf16>, vector<8x64xbf16>, vector<16x64xf32> -> vector<16x64xf32>
    %88 = arith.mulf %87, %35 : vector<16x64xf32>
    %89 = arith.addf %85, %88 : vector<16x64xf32>
    %90 = arith.maximumf %49, %52 : vector<16x8xf32>
    %91 = arith.maximumf %90, %55 : vector<16x8xf32>
    %92 = arith.subf %49, %91 : vector<16x8xf32>
    %93 = math.exp %92 : vector<16x8xf32>
    %94 = arith.subf %52, %91 : vector<16x8xf32>
    %95 = math.exp %94 : vector<16x8xf32>
    %96 = arith.subf %55, %91 : vector<16x8xf32>
    %97 = math.exp %96 : vector<16x8xf32>
    %98 = arith.addf %93, %95 : vector<16x8xf32>
    %99 = arith.addf %98, %97 : vector<16x8xf32>
    %100 = tpu.reciprocal %99 {approx = true} : vector<16x8xf32> -> vector<16x8xf32>
    %101 = arith.mulf %93, %100 : vector<16x8xf32>
    %102 = arith.mulf %95, %100 : vector<16x8xf32>
    %103 = arith.mulf %97, %100 : vector<16x8xf32>
    %104 = arith.truncf %101 : vector<16x8xf32> to vector<16x8xbf16>
    %cst_41 = arith.constant dense<0.000000e+00> : vector<16x64xf32>
    %105 = tpu.matmul %104, %37, %cst_41 {dimension_numbers = #tpu.dot_dimension_numbers<[1], [0], [0], [1], [0, 0, 1, 1], [], []>} : vector<16x8xbf16>, vector<8x64xbf16>, vector<16x64xf32> -> vector<16x64xf32>
    %106 = arith.mulf %105, %29 : vector<16x64xf32>
    %107 = arith.truncf %102 : vector<16x8xf32> to vector<16x8xbf16>
    %cst_42 = arith.constant dense<0.000000e+00> : vector<16x64xf32>
    %108 = tpu.matmul %107, %37, %cst_42 {dimension_numbers = #tpu.dot_dimension_numbers<[1], [0], [0], [1], [0, 0, 1, 1], [], []>} : vector<16x8xbf16>, vector<8x64xbf16>, vector<16x64xf32> -> vector<16x64xf32>
    %109 = arith.mulf %108, %32 : vector<16x64xf32>
    %110 = arith.addf %106, %109 : vector<16x64xf32>
    %111 = arith.truncf %103 : vector<16x8xf32> to vector<16x8xbf16>
    %cst_43 = arith.constant dense<0.000000e+00> : vector<16x64xf32>
    %112 = tpu.matmul %111, %37, %cst_43 {dimension_numbers = #tpu.dot_dimension_numbers<[1], [0], [0], [1], [0, 0, 1, 1], [], []>} : vector<16x8xbf16>, vector<8x64xbf16>, vector<16x64xf32> -> vector<16x64xf32>
    %113 = arith.mulf %112, %35 : vector<16x64xf32>
    %114 = arith.addf %110, %113 : vector<16x64xf32>
    %115 = arith.maximumf %58, %61 : vector<16x8xf32>
    %116 = arith.maximumf %115, %64 : vector<16x8xf32>
    %117 = arith.subf %58, %116 : vector<16x8xf32>
    %118 = math.exp %117 : vector<16x8xf32>
    %119 = arith.subf %61, %116 : vector<16x8xf32>
    %120 = math.exp %119 : vector<16x8xf32>
    %121 = arith.subf %64, %116 : vector<16x8xf32>
    %122 = math.exp %121 : vector<16x8xf32>
    %123 = arith.addf %118, %120 : vector<16x8xf32>
    %124 = arith.addf %123, %122 : vector<16x8xf32>
    %125 = tpu.reciprocal %124 {approx = true} : vector<16x8xf32> -> vector<16x8xf32>
    %126 = arith.mulf %118, %125 : vector<16x8xf32>
    %127 = arith.mulf %120, %125 : vector<16x8xf32>
    %128 = arith.mulf %122, %125 : vector<16x8xf32>
    %129 = arith.truncf %126 : vector<16x8xf32> to vector<16x8xbf16>
    %cst_44 = arith.constant dense<0.000000e+00> : vector<16x64xf32>
    %130 = tpu.matmul %129, %37, %cst_44 {dimension_numbers = #tpu.dot_dimension_numbers<[1], [0], [0], [1], [0, 0, 1, 1], [], []>} : vector<16x8xbf16>, vector<8x64xbf16>, vector<16x64xf32> -> vector<16x64xf32>
    %131 = arith.mulf %130, %29 : vector<16x64xf32>
    %132 = arith.truncf %127 : vector<16x8xf32> to vector<16x8xbf16>
    %cst_45 = arith.constant dense<0.000000e+00> : vector<16x64xf32>
    %133 = tpu.matmul %132, %37, %cst_45 {dimension_numbers = #tpu.dot_dimension_numbers<[1], [0], [0], [1], [0, 0, 1, 1], [], []>} : vector<16x8xbf16>, vector<8x64xbf16>, vector<16x64xf32> -> vector<16x64xf32>
    %134 = arith.mulf %133, %32 : vector<16x64xf32>
    %135 = arith.addf %131, %134 : vector<16x64xf32>
    %136 = arith.truncf %128 : vector<16x8xf32> to vector<16x8xbf16>
    %cst_46 = arith.constant dense<0.000000e+00> : vector<16x64xf32>
    %137 = tpu.matmul %136, %37, %cst_46 {dimension_numbers = #tpu.dot_dimension_numbers<[1], [0], [0], [1], [0, 0, 1, 1], [], []>} : vector<16x8xbf16>, vector<8x64xbf16>, vector<16x64xf32> -> vector<16x64xf32>
    %138 = arith.mulf %137, %35 : vector<16x64xf32>
    %139 = arith.addf %135, %138 : vector<16x64xf32>
    %140 = tpu.concatenate %76, %77, %78, %101, %102, %103, %126, %127, %128 in 1 : vector<16x8xf32>, vector<16x8xf32>, vector<16x8xf32>, vector<16x8xf32>, vector<16x8xf32>, vector<16x8xf32>, vector<16x8xf32>, vector<16x8xf32>, vector<16x8xf32> -> vector<16x72xf32>
    %141 = arith.truncf %140 : vector<16x72xf32> to vector<16x72xbf16>
    %c0_47 = arith.constant 0 : index
    %c0_48 = arith.constant 0 : index
    %142 = vector.load %arg12[%c0_47, %c0_48] : memref<72x128xbf16, #tpu.memory_space<vmem>>, vector<72x128xbf16>
    %cst_49 = arith.constant dense<0.000000e+00> : vector<16x128xf32>
    %143 = tpu.matmul %141, %142, %cst_49 {dimension_numbers = #tpu.dot_dimension_numbers<[1], [0], [0], [1], [0, 0, 1, 1], [], []>} : vector<16x72xbf16>, vector<72x128xbf16>, vector<16x128xf32> -> vector<16x128xf32>
    %c0_50 = arith.constant 0 : index
    %c0_51 = arith.constant 0 : index
    %144 = vector.load %arg26[%c0_50, %c0_51] : memref<16x128xf32, #tpu.memory_space<vmem>>, vector<16x128xf32>
    tpu.vector_store %arg26[%c0_50, %c0_51], %143 {strides = array<i32>} : memref<16x128xf32, #tpu.memory_space<vmem>>, vector<16x128xf32>,
    %c0_52 = arith.constant 0 : index
    %c0_53 = arith.constant 0 : index
    %145 = vector.load %arg16[%c0_52, %c0_53] : memref<1x128xf32, #tpu.memory_space<vmem>>, vector<1x128xf32>
    %146 = arith.truncf %89 : vector<16x64xf32> to vector<16x64xbf16>
    %c0_54 = arith.constant 0 : index
    %c0_55 = arith.constant 0 : index
    %147 = vector.load %arg13[%c0_54, %c0_55] : memref<64x128xbf16, #tpu.memory_space<vmem>>, vector<64x128xbf16>
    %cst_56 = arith.constant dense<0.000000e+00> : vector<16x128xf32>
    %148 = tpu.matmul %146, %147, %cst_56 {dimension_numbers = #tpu.dot_dimension_numbers<[1], [0], [0], [1], [0, 0, 1, 1], [], []>} : vector<16x64xbf16>, vector<64x128xbf16>, vector<16x128xf32> -> vector<16x128xf32>
    %149 = vector.broadcast %145 : vector<1x128xf32> to vector<16x128xf32>
    %150 = arith.addf %149, %148 : vector<16x128xf32>
    %151 = arith.truncf %114 : vector<16x64xf32> to vector<16x64xbf16>
    %c0_57 = arith.constant 0 : index
    %c0_58 = arith.constant 0 : index
    %152 = vector.load %arg14[%c0_57, %c0_58] : memref<64x128xbf16, #tpu.memory_space<vmem>>, vector<64x128xbf16>
    %cst_59 = arith.constant dense<0.000000e+00> : vector<16x128xf32>
    %153 = tpu.matmul %151, %152, %cst_59 {dimension_numbers = #tpu.dot_dimension_numbers<[1], [0], [0], [1], [0, 0, 1, 1], [], []>} : vector<16x64xbf16>, vector<64x128xbf16>, vector<16x128xf32> -> vector<16x128xf32>
    %154 = arith.addf %150, %153 : vector<16x128xf32>
    %155 = arith.truncf %139 : vector<16x64xf32> to vector<16x64xbf16>
    %c0_60 = arith.constant 0 : index
    %c0_61 = arith.constant 0 : index
    %156 = vector.load %arg15[%c0_60, %c0_61] : memref<64x128xbf16, #tpu.memory_space<vmem>>, vector<64x128xbf16>
    %cst_62 = arith.constant dense<0.000000e+00> : vector<16x128xf32>
    %157 = tpu.matmul %155, %156, %cst_62 {dimension_numbers = #tpu.dot_dimension_numbers<[1], [0], [0], [1], [0, 0, 1, 1], [], []>} : vector<16x64xbf16>, vector<64x128xbf16>, vector<16x128xf32> -> vector<16x128xf32>
    %158 = arith.addf %154, %157 : vector<16x128xf32>
    %cst_63 = arith.constant dense<0.000000e+00> : vector<16xf32>
    %159 = vector.multi_reduction <add>, %158, %cst_63 [1] : vector<16x128xf32> to vector<16xf32>
    %160 = vector.shape_cast %159 : vector<16xf32> to vector<16x1xf32>
    %cst_64 = arith.constant 1.280000e+02 : f32
    %161 = vector.broadcast %cst_64 : f32 to vector<16x1xf32>
    %162 = arith.divf %160, %161 : vector<16x1xf32>
    %163 = vector.broadcast %162 : vector<16x1xf32> to vector<16x128xf32>
    %164 = arith.subf %158, %163 : vector<16x128xf32>
    %165 = arith.mulf %164, %164 : vector<16x128xf32>
    %cst_65 = arith.constant dense<0.000000e+00> : vector<16xf32>
    %166 = vector.multi_reduction <add>, %165, %cst_65 [1] : vector<16x128xf32> to vector<16xf32>
    %167 = vector.shape_cast %166 : vector<16xf32> to vector<16x1xf32>
    %cst_66 = arith.constant 1.280000e+02 : f32
    %168 = vector.broadcast %cst_66 : f32 to vector<16x1xf32>
    %169 = arith.divf %167, %168 : vector<16x1xf32>
    %170 = vector.broadcast %162 : vector<16x1xf32> to vector<16x128xf32>
    %171 = arith.subf %158, %170 : vector<16x128xf32>
    %cst_67 = arith.constant 9.99999974E-6 : f32
    %172 = vector.broadcast %cst_67 : f32 to vector<16x1xf32>
    %173 = arith.addf %169, %172 : vector<16x1xf32>
    %174 = math.rsqrt %173 : vector<16x1xf32>
    %175 = vector.broadcast %174 : vector<16x1xf32> to vector<16x128xf32>
    %176 = arith.mulf %171, %175 : vector<16x128xf32>
    %c0_68 = arith.constant 0 : index
    %c0_69 = arith.constant 0 : index
    %177 = vector.load %arg17[%c0_68, %c0_69] : memref<1x128xf32, #tpu.memory_space<vmem>>, vector<1x128xf32>
    %178 = vector.broadcast %177 : vector<1x128xf32> to vector<16x128xf32>
    %179 = arith.mulf %176, %178 : vector<16x128xf32>
    %c0_70 = arith.constant 0 : index
    %c0_71 = arith.constant 0 : index
    %180 = vector.load %arg18[%c0_70, %c0_71] : memref<1x128xf32, #tpu.memory_space<vmem>>, vector<1x128xf32>
    %181 = vector.broadcast %180 : vector<1x128xf32> to vector<16x128xf32>
    %182 = arith.addf %179, %181 : vector<16x128xf32>
    %cst_72 = arith.constant 0.000000e+00 : f32
    %183 = vector.broadcast %cst_72 : f32 to vector<16x128xf32>
    %184 = arith.maximumf %182, %183 : vector<16x128xf32>
    %185 = arith.truncf %184 : vector<16x128xf32> to vector<16x128xbf16>
    %c0_73 = arith.constant 0 : index
    %c0_74 = arith.constant 0 : index
    %186 = vector.load %arg19[%c0_73, %c0_74] : memref<128x64xbf16, #tpu.memory_space<vmem>>, vector<128x64xbf16>
    %cst_75 = arith.constant dense<0.000000e+00> : vector<16x64xf32>
    %187 = tpu.matmul %185, %186, %cst_75 {dimension_numbers = #tpu.dot_dimension_numbers<[1], [0], [0], [1], [0, 0, 1, 1], [], []>} : vector<16x128xbf16>, vector<128x64xbf16>, vector<16x64xf32> -> vector<16x64xf32>
    %c0_76 = arith.constant 0 : index
    %c0_77 = arith.constant 0 : index
    %188 = vector.load %arg20[%c0_76, %c0_77] : memref<1x64xf32, #tpu.memory_space<vmem>>, vector<1x64xf32>
    %189 = vector.broadcast %188 : vector<1x64xf32> to vector<16x64xf32>
    %190 = arith.addf %187, %189 : vector<16x64xf32>
    %cst_78 = arith.constant dense<0.000000e+00> : vector<16xf32>
    %191 = vector.multi_reduction <add>, %190, %cst_78 [1] : vector<16x64xf32> to vector<16xf32>
    %192 = vector.shape_cast %191 : vector<16xf32> to vector<16x1xf32>
    %cst_79 = arith.constant 6.400000e+01 : f32
    %193 = vector.broadcast %cst_79 : f32 to vector<16x1xf32>
    %194 = arith.divf %192, %193 : vector<16x1xf32>
    %195 = vector.broadcast %194 : vector<16x1xf32> to vector<16x64xf32>
    %196 = arith.subf %190, %195 : vector<16x64xf32>
    %197 = arith.mulf %196, %196 : vector<16x64xf32>
    %cst_80 = arith.constant dense<0.000000e+00> : vector<16xf32>
    %198 = vector.multi_reduction <add>, %197, %cst_80 [1] : vector<16x64xf32> to vector<16xf32>
    %199 = vector.shape_cast %198 : vector<16xf32> to vector<16x1xf32>
    %cst_81 = arith.constant 6.400000e+01 : f32
    %200 = vector.broadcast %cst_81 : f32 to vector<16x1xf32>
    %201 = arith.divf %199, %200 : vector<16x1xf32>
    %202 = vector.broadcast %194 : vector<16x1xf32> to vector<16x64xf32>
    %203 = arith.subf %190, %202 : vector<16x64xf32>
    %cst_82 = arith.constant 9.99999974E-6 : f32
    %204 = vector.broadcast %cst_82 : f32 to vector<16x1xf32>
    %205 = arith.addf %201, %204 : vector<16x1xf32>
    %206 = math.rsqrt %205 : vector<16x1xf32>
    %207 = vector.broadcast %206 : vector<16x1xf32> to vector<16x64xf32>
    %208 = arith.mulf %203, %207 : vector<16x64xf32>
    %c0_83 = arith.constant 0 : index
    %c0_84 = arith.constant 0 : index
    %209 = vector.load %arg21[%c0_83, %c0_84] : memref<1x64xf32, #tpu.memory_space<vmem>>, vector<1x64xf32>
    %210 = vector.broadcast %209 : vector<1x64xf32> to vector<16x64xf32>
    %211 = arith.mulf %208, %210 : vector<16x64xf32>
    %c0_85 = arith.constant 0 : index
    %c0_86 = arith.constant 0 : index
    %212 = vector.load %arg22[%c0_85, %c0_86] : memref<1x64xf32, #tpu.memory_space<vmem>>, vector<1x64xf32>
    %213 = vector.broadcast %212 : vector<1x64xf32> to vector<16x64xf32>
    %214 = arith.addf %211, %213 : vector<16x64xf32>
    %cst_87 = arith.constant 0.000000e+00 : f32
    %215 = vector.broadcast %cst_87 : f32 to vector<16x64xf32>
    %216 = arith.maximumf %214, %215 : vector<16x64xf32>
    %217 = arith.truncf %216 : vector<16x64xf32> to vector<16x64xbf16>
    %c0_88 = arith.constant 0 : index
    %c0_89 = arith.constant 0 : index
    %218 = vector.load %arg23[%c0_88, %c0_89] : memref<64x64xbf16, #tpu.memory_space<vmem>>, vector<64x64xbf16>
    %cst_90 = arith.constant dense<0.000000e+00> : vector<16x64xf32>
    %219 = tpu.matmul %217, %218, %cst_90 {dimension_numbers = #tpu.dot_dimension_numbers<[1], [0], [0], [1], [0, 0, 1, 1], [], []>} : vector<16x64xbf16>, vector<64x64xbf16>, vector<16x64xf32> -> vector<16x64xf32>
    %c0_91 = arith.constant 0 : index
    %c0_92 = arith.constant 0 : index
    %220 = vector.load %arg24[%c0_91, %c0_92] : memref<1x64xf32, #tpu.memory_space<vmem>>, vector<1x64xf32>
    %221 = vector.broadcast %220 : vector<1x64xf32> to vector<16x64xf32>
    %222 = arith.addf %219, %221 : vector<16x64xf32>
    %c0_93 = arith.constant 0 : index
    %c0_94 = arith.constant 0 : index
    %223 = vector.load %arg25[%c0_93, %c0_94] : memref<16x64xf32, #tpu.memory_space<vmem>>, vector<16x64xf32>
    tpu.vector_store %arg25[%c0_93, %c0_94], %222 {strides = array<i32>} : memref<16x64xf32, #tpu.memory_space<vmem>>, vector<16x64xf32>,
    return
  }
  func.func @transform_0(%arg0: i32) -> (i32, i32) {
    %c0_i32 = arith.constant 0 : i32
    %c0_i32_0 = arith.constant 0 : i32
    return %arg0, %c0_i32 : i32, i32
  }
  func.func @transform_1(%arg0: i32) -> (i32, i32) {
    %c0_i32 = arith.constant 0 : i32
    %c0_i32_0 = arith.constant 0 : i32
    return %arg0, %c0_i32 : i32, i32
  }
  func.func @transform_2(%arg0: i32) -> (i32, i32) {
    %c0_i32 = arith.constant 0 : i32
    %c0_i32_0 = arith.constant 0 : i32
    return %arg0, %c0_i32 : i32, i32
  }
  func.func @transform_3(%arg0: i32) -> (i32, i32) {
    %c0_i32 = arith.constant 0 : i32
    %c0_i32_0 = arith.constant 0 : i32
    %c0_i32_1 = arith.constant 0 : i32
    return %c0_i32, %c0_i32_0 : i32, i32
  }
  func.func @transform_4(%arg0: i32) -> (i32, i32) {
    %c0_i32 = arith.constant 0 : i32
    %c0_i32_0 = arith.constant 0 : i32
    %c0_i32_1 = arith.constant 0 : i32
    return %c0_i32, %c0_i32_0 : i32, i32
  }
  func.func @transform_5(%arg0: i32) -> (i32, i32) {
    %c0_i32 = arith.constant 0 : i32
    %c0_i32_0 = arith.constant 0 : i32
    %c0_i32_1 = arith.constant 0 : i32
    return %c0_i32, %c0_i32_0 : i32, i32
  }
  func.func @transform_6(%arg0: i32) -> (i32, i32) {
    %c0_i32 = arith.constant 0 : i32
    %c0_i32_0 = arith.constant 0 : i32
    %c0_i32_1 = arith.constant 0 : i32
    return %c0_i32, %c0_i32_0 : i32, i32
  }
  func.func @transform_7(%arg0: i32) -> (i32, i32) {
    %c0_i32 = arith.constant 0 : i32
    %c0_i32_0 = arith.constant 0 : i32
    %c0_i32_1 = arith.constant 0 : i32
    return %c0_i32, %c0_i32_0 : i32, i32
  }
  func.func @transform_8(%arg0: i32) -> (i32, i32) {
    %c0_i32 = arith.constant 0 : i32
    %c0_i32_0 = arith.constant 0 : i32
    %c0_i32_1 = arith.constant 0 : i32
    return %c0_i32, %c0_i32_0 : i32, i32
  }
  func.func @transform_9(%arg0: i32) -> (i32, i32) {
    %c0_i32 = arith.constant 0 : i32
    %c0_i32_0 = arith.constant 0 : i32
    %c0_i32_1 = arith.constant 0 : i32
    return %c0_i32, %c0_i32_0 : i32, i32
  }
  func.func @transform_10(%arg0: i32) -> (i32, i32) {
    %c0_i32 = arith.constant 0 : i32
    %c0_i32_0 = arith.constant 0 : i32
    %c0_i32_1 = arith.constant 0 : i32
    return %c0_i32, %c0_i32_0 : i32, i32
  }
  func.func @transform_11(%arg0: i32) -> (i32, i32) {
    %c0_i32 = arith.constant 0 : i32
    %c0_i32_0 = arith.constant 0 : i32
    %c0_i32_1 = arith.constant 0 : i32
    return %c0_i32, %c0_i32_0 : i32, i32
  }
  func.func @transform_12(%arg0: i32) -> (i32, i32) {
    %c0_i32 = arith.constant 0 : i32
    %c0_i32_0 = arith.constant 0 : i32
    %c0_i32_1 = arith.constant 0 : i32
    return %c0_i32, %c0_i32_0 : i32, i32
  }
  func.func @transform_13(%arg0: i32) -> (i32, i32) {
    %c0_i32 = arith.constant 0 : i32
    %c0_i32_0 = arith.constant 0 : i32
    %c0_i32_1 = arith.constant 0 : i32
    return %c0_i32, %c0_i32_0 : i32, i32
  }
  func.func @transform_14(%arg0: i32) -> (i32, i32) {
    %c0_i32 = arith.constant 0 : i32
    %c0_i32_0 = arith.constant 0 : i32
    %c0_i32_1 = arith.constant 0 : i32
    return %c0_i32, %c0_i32_0 : i32, i32
  }
  func.func @transform_15(%arg0: i32) -> (i32, i32) {
    %c0_i32 = arith.constant 0 : i32
    %c0_i32_0 = arith.constant 0 : i32
    %c0_i32_1 = arith.constant 0 : i32
    return %c0_i32, %c0_i32_0 : i32, i32
  }
  func.func @transform_16(%arg0: i32) -> (i32, i32) {
    %c0_i32 = arith.constant 0 : i32
    %c0_i32_0 = arith.constant 0 : i32
    %c0_i32_1 = arith.constant 0 : i32
    return %c0_i32, %c0_i32_0 : i32, i32
  }
  func.func @transform_17(%arg0: i32) -> (i32, i32) {
    %c0_i32 = arith.constant 0 : i32
    %c0_i32_0 = arith.constant 0 : i32
    %c0_i32_1 = arith.constant 0 : i32
    return %c0_i32, %c0_i32_0 : i32, i32
  }
  func.func @transform_18(%arg0: i32) -> (i32, i32) {
    %c0_i32 = arith.constant 0 : i32
    %c0_i32_0 = arith.constant 0 : i32
    %c0_i32_1 = arith.constant 0 : i32
    return %c0_i32, %c0_i32_0 : i32, i32
  }
  func.func @transform_19(%arg0: i32) -> (i32, i32) {
    %c0_i32 = arith.constant 0 : i32
    %c0_i32_0 = arith.constant 0 : i32
    %c0_i32_1 = arith.constant 0 : i32
    return %c0_i32, %c0_i32_0 : i32, i32
  }
  func.func @transform_20(%arg0: i32) -> (i32, i32) {
    %c0_i32 = arith.constant 0 : i32
    %c0_i32_0 = arith.constant 0 : i32
    %c0_i32_1 = arith.constant 0 : i32
    return %c0_i32, %c0_i32_0 : i32, i32
  }
  func.func @transform_21(%arg0: i32) -> (i32, i32) {
    %c0_i32 = arith.constant 0 : i32
    %c0_i32_0 = arith.constant 0 : i32
    %c0_i32_1 = arith.constant 0 : i32
    return %c0_i32, %c0_i32_0 : i32, i32
  }
  func.func @transform_22(%arg0: i32) -> (i32, i32) {
    %c0_i32 = arith.constant 0 : i32
    %c0_i32_0 = arith.constant 0 : i32
    %c0_i32_1 = arith.constant 0 : i32
    return %c0_i32, %c0_i32_0 : i32, i32
  }
  func.func @transform_23(%arg0: i32) -> (i32, i32) {
    %c0_i32 = arith.constant 0 : i32
    %c0_i32_0 = arith.constant 0 : i32
    %c0_i32_1 = arith.constant 0 : i32
    return %c0_i32, %c0_i32_0 : i32, i32
  }
  func.func @transform_24(%arg0: i32) -> (i32, i32) {
    %c0_i32 = arith.constant 0 : i32
    %c0_i32_0 = arith.constant 0 : i32
    return %arg0, %c0_i32 : i32, i32
  }
  func.func @transform_25(%arg0: i32) -> (i32, i32) {
    %c0_i32 = arith.constant 0 : i32
    %c0_i32_0 = arith.constant 0 : i32
    return %arg0, %c0_i32 : i32, i32
  }
}

</mosaic_0001>

<llo_original>
// kernel: improved_cross_modal_attention.1
$region0: #{improved_cross_modal_attention.1}
  #allocation0 [shape = 'u32[]', space=smem, size = 0x4, offset = 0x4, fixed_abs, tag = 'smem constant byte address 0x4 - core index']
  #allocation1 [shape = 'u32[144,128]{1,0:T(1,128)}', space=vmem, size = 0x12000, scoped, tag = 'internal scratch']
  %s0 = inlined_call_operand.vmem [shape: bf16[32,64], index: 0, kind: input, shape index: {}]
  %s1 = inlined_call_operand.vmem [shape: bf16[32,64], index: 1, kind: input, shape index: {}]
  %s2 = inlined_call_operand.vmem [shape: bf16[32,64], index: 2, kind: input, shape index: {}]
  %s3 = inlined_call_operand.vmem [shape: bf16[64,64], index: 3, kind: input, shape index: {}]
  %s4 = inlined_call_operand.vmem [shape: f32[1,64], index: 4, kind: input, shape index: {}]
  %s5 = inlined_call_operand.vmem [shape: bf16[64,64], index: 5, kind: input, shape index: {}]
  %s6 = inlined_call_operand.vmem [shape: f32[1,64], index: 6, kind: input, shape index: {}]
  %s7 = inlined_call_operand.vmem [shape: bf16[64,64], index: 7, kind: input, shape index: {}]
  %s8 = inlined_call_operand.vmem [shape: f32[1,64], index: 8, kind: input, shape index: {}]
  %s9 = inlined_call_operand.vmem [shape: bf16[64,8], index: 9, kind: input, shape index: {}]
  %s10 = inlined_call_operand.vmem [shape: bf16[8,64], index: 10, kind: input, shape index: {}]
  %s11 = inlined_call_operand.vmem [shape: bf16[72,128], index: 11, kind: input, shape index: {}]
  %s12 = inlined_call_operand.vmem [shape: bf16[64,128], index: 12, kind: input, shape index: {}]
  %s13 = inlined_call_operand.vmem [shape: bf16[64,128], index: 13, kind: input, shape index: {}]
  %s14 = inlined_call_operand.vmem [shape: bf16[64,128], index: 14, kind: input, shape index: {}]
  %s15 = inlined_call_operand.vmem [shape: f32[1,128], index: 15, kind: input, shape index: {}]
  %s16 = inlined_call_operand.vmem [shape: f32[1,128], index: 16, kind: input, shape index: {}]
  %s17 = inlined_call_operand.vmem [shape: f32[1,128], index: 17, kind: input, shape index: {}]
  %s18 = inlined_call_operand.vmem [shape: bf16[128,64], index: 18, kind: input, shape index: {}]
  %s19 = inlined_call_operand.vmem [shape: f32[1,64], index: 19, kind: input, shape index: {}]
  %s20 = inlined_call_operand.vmem [shape: f32[1,64], index: 20, kind: input, shape index: {}]
  %s21 = inlined_call_operand.hbm [shape: f32[1,64], index: 21, kind: input, shape index: {}]
  %s22 = inlined_call_operand.hbm [shape: bf16[64,64], index: 22, kind: input, shape index: {}]
  %s23 = inlined_call_operand.hbm [shape: f32[1,64], index: 23, kind: input, shape index: {}]
  %s24 = inlined_call_operand.hbm [shape: f32[32,64], index: 24, kind: output, shape index: {0}]
  %s25 = inlined_call_operand.vmem [shape: f32[32,128], index: 25, kind: output, shape index: {1}]
  %26 = xla_tuple %s24, %s25
  %s27 = sld [smem:[#allocation0]]
  $region149: #{improved_cross_modal_attention.1} parent=0
    _
  %s29 = ssub.s32 1, %s27
  %s30 = scalar_select 0, %s29, %s27
  $region1: #{improved_cross_modal_attention.1} parent=0
    #allocation2 [shape = 'u8[512]{0}', space=vmem, size = 0x400, scoped, tag = 'input window, operand 21, single buffered']
    #allocation3 [shape = 's32[2]{0}', space=sflag, size = 0x8, scoped, tag = 'scoped memory for improved_cross_modal_attention.1']
    #allocation4 [shape = 's32[2]{0}', space=sflag, size = 0x8, scoped, tag = 'scoped memory for improved_cross_modal_attention.1']
    #allocation5 [shape = 'u8[16384]{0}', space=vmem, size = 0x4000, scoped, tag = 'input window, operand 22, single buffered']
    #allocation6 [shape = 's32[1]{0}', space=sflag, size = 0x4, scoped, tag = 'scoped memory for improved_cross_modal_attention.1']
    #allocation7 [shape = 'u8[512]{0}', space=vmem, size = 0x400, scoped, tag = 'input window, operand 23, single buffered']
    #allocation8 [shape = 'u8[16384]{0}', space=vmem, size = 0x4000, scoped, tag = 'output window, operand 0']
    %31 = vsyncpa [#allocation3], 0
    %32 = vsyncpa [#allocation6], 0
    %33 = vsyncpa [#allocation4], 0
    %s34 = scalar_lea.sflag [#allocation4], 1
    %35 = vsyncpa %s34, 0
    loop: start=0, step=1, limit=4
    $region2: #{improved_cross_modal_attention.1} parent=1 // loop_pre_header
      _
    $region3: #{improved_cross_modal_attention.1} parent=1 // loop_header
      %s37 = sphi 0, %s41
      %p38 = scmp.ge.s32.totalorder %s37, 4
      %s47 = sphi 0, %s49
      %s50 = sphi 0, %s47
      %s51 = sphi 0, %s50
      %s67 = sphi 0, %s51
      %s73 = sphi 0, %s75
      %s76 = sphi 0, %s73
      %s77 = sphi 0, %s76
      %s93 = sphi 0, %s77
      %s99 = sphi 0, %s101
      %s102 = sphi 0, %s99
      %s103 = sphi 0, %s102
      %s119 = sphi 0, %s103
      %s123 = sphi 0, %s123
      %s125 = sphi 0, %s123
      %s126 = sphi 0, %s125
      %s140 = sphi 0, %s126
      %s144 = sphi 0, %s144
      %s146 = sphi 0, %s144
      %s147 = sphi 0, %s146
      %s161 = sphi 0, %s147
      %s165 = sphi 0, %s165
      %s167 = sphi 0, %s165
      %s168 = sphi 0, %s167
      %s182 = sphi 0, %s168
      %s186 = sphi 0, %s186
      %s188 = sphi 0, %s186
      %s189 = sphi 0, %s188
      %s203 = sphi 0, %s189
      %s207 = sphi 0, %s207
      %s209 = sphi 0, %s207
      %s210 = sphi 0, %s209
      %s224 = sphi 0, %s210
      %s228 = sphi 0, %s228
      %s230 = sphi 0, %s228
      %s231 = sphi 0, %s230
      %s245 = sphi 0, %s231
      %s249 = sphi 0, %s249
      %s251 = sphi 0, %s249
      %s252 = sphi 0, %s251
      %s266 = sphi 0, %s252
      %s270 = sphi 0, %s270
      %s272 = sphi 0, %s270
      %s273 = sphi 0, %s272
      %s287 = sphi 0, %s273
      %s291 = sphi 0, %s291
      %s293 = sphi 0, %s291
      %s294 = sphi 0, %s293
      %s308 = sphi 0, %s294
      %s312 = sphi 0, %s312
      %s314 = sphi 0, %s312
      %s315 = sphi 0, %s314
      %s329 = sphi 0, %s315
      %s333 = sphi 0, %s333
      %s335 = sphi 0, %s333
      %s336 = sphi 0, %s335
      %s350 = sphi 0, %s336
      %s354 = sphi 0, %s354
      %s356 = sphi 0, %s354
      %s357 = sphi 0, %s356
      %s371 = sphi 0, %s357
      %s375 = sphi 0, %s375
      %s377 = sphi 0, %s375
      %s378 = sphi 0, %s377
      %s392 = sphi 0, %s378
      %s396 = sphi 0, %s396
      %s398 = sphi 0, %s396
      %s399 = sphi 0, %s398
      %s413 = sphi 0, %s399
      %s417 = sphi 0, %s417
      %s419 = sphi 0, %s417
      %s420 = sphi 0, %s419
      %s434 = sphi 0, %s420
      %s438 = sphi 0, %s438
      %s440 = sphi 0, %s438
      %s441 = sphi 0, %s440
      %s455 = sphi 0, %s441
      %s459 = sphi 0, %s459
      %s461 = sphi 0, %s459
      %s462 = sphi 0, %s461
      %s476 = sphi 0, %s462
      %s480 = sphi 0, %s480
      %s482 = sphi 0, %s480
      %s483 = sphi 0, %s482
      %s497 = sphi 0, %s483
      %s501 = sphi 0, %s501
      %s503 = sphi 0, %s501
      %s504 = sphi 0, %s503
      %s518 = sphi 0, %s504
      %s522 = sphi 0, %s522
      %s524 = sphi 0, %s522
      %s525 = sphi 0, %s524
      %s539 = sphi 0, %s525
      %s543 = sphi 0, %s543
      %s545 = sphi 0, %s543
      %s546 = sphi 0, %s545
      %s560 = sphi 0, %s546
      %s566 = sphi 0, %s568
      %s569 = sphi 0, %s566
      %s570 = sphi 0, %s569
      %s586 = sphi 0, %s570
      %s592 = sphi 0, %s594
      %s595 = sphi 0, %s592
      %s596 = sphi 0, %s595
      %s612 = sphi 0, %s596
    $region4: #{improved_cross_modal_attention.1} parent=1 // loop_header_branch
      %40 = sbr.rel (%p38) target = $region8
    $region5: #{improved_cross_modal_attention.1} parent=1 // loop_body
      %s42 = ssub.s32 %s37, 1
      %s43 = ssub.s32 %s37, 2
      %s44 = sadd.s32 %s37, 1
      %s45 = ssub.s32 %s37, %s44
      %p46 = scmp.eq.s32.totalorder %s45, 0
      %s48 = sadd.s32 %s47, 1
      %s49 = scalar_select %p46, %s47, %s48
      %p52 = pneg %p46
      %p53 = scmp.eq.s32.totalorder %s37, 1
      %p54 = por %p52, %p53
      %p55 = scmp.ne.s32.totalorder %s47, %s50
      %p56 = scmp.eq.s32.totalorder %s37, 0
      %p57 = por %p55, %p56
      %p58 = scmp.ne.s32.totalorder %s47, %s50
      %p59 = scmp.eq.s32.totalorder %s42, 1
      %p60 = por %p58, %p59
      %p61 = scmp.ne.s32.totalorder %s50, %s51
      %p62 = scmp.eq.s32.totalorder %s42, 0
      %p63 = por %p61, %p62
      %p64 = scmp.ne.s32.totalorder %s50, %s51
      %p65 = scmp.eq.s32.totalorder %s43, 1
      %p66 = por %p64, %p65
      %p68 = scmp.ne.s32.totalorder %s51, %s67
      %p69 = scmp.eq.s32.totalorder %s43, 0
      %p70 = por %p68, %p69
      %s71 = ssub.s32 %s37, %s44
      %p72 = scmp.eq.s32.totalorder %s71, 0
      %s74 = sadd.s32 %s73, 1
      %s75 = scalar_select %p72, %s73, %s74
      %p78 = pneg %p72
      %p79 = scmp.eq.s32.totalorder %s37, 1
      %p80 = por %p78, %p79
      %p81 = scmp.ne.s32.totalorder %s73, %s76
      %p82 = scmp.eq.s32.totalorder %s37, 0
      %p83 = por %p81, %p82
      %p84 = scmp.ne.s32.totalorder %s73, %s76
      %p85 = scmp.eq.s32.totalorder %s42, 1
      %p86 = por %p84, %p85
      %p87 = scmp.ne.s32.totalorder %s76, %s77
      %p88 = scmp.eq.s32.totalorder %s42, 0
      %p89 = por %p87, %p88
      %p90 = scmp.ne.s32.totalorder %s76, %s77
      %p91 = scmp.eq.s32.totalorder %s43, 1
      %p92 = por %p90, %p91
      %p94 = scmp.ne.s32.totalorder %s77, %s93
      %p95 = scmp.eq.s32.totalorder %s43, 0
      %p96 = por %p94, %p95
      %s97 = ssub.s32 %s37, %s44
      %p98 = scmp.eq.s32.totalorder %s97, 0
      %s100 = sadd.s32 %s99, 1
      %s101 = scalar_select %p98, %s99, %s100
      %p104 = pneg %p98
      %p105 = scmp.eq.s32.totalorder %s37, 1
      %p106 = por %p104, %p105
      %p107 = scmp.ne.s32.totalorder %s99, %s102
      %p108 = scmp.eq.s32.totalorder %s37, 0
      %p109 = por %p107, %p108
      %p110 = scmp.ne.s32.totalorder %s99, %s102
      %p111 = scmp.eq.s32.totalorder %s42, 1
      %p112 = por %p110, %p111
      %p113 = scmp.ne.s32.totalorder %s102, %s103
      %p114 = scmp.eq.s32.totalorder %s42, 0
      %p115 = por %p113, %p114
      %p116 = scmp.ne.s32.totalorder %s102, %s103
      %p117 = scmp.eq.s32.totalorder %s43, 1
      %p118 = por %p116, %p117
      %p120 = scmp.ne.s32.totalorder %s103, %s119
      %p121 = scmp.eq.s32.totalorder %s43, 0
      %p122 = por %p120, %p121
      %s124 = sadd.s32 %s123, 1
      %p127 = scmp.eq.s32.totalorder %s37, 1
      %p128 = scmp.ne.s32.totalorder %s123, %s125
      %p129 = scmp.eq.s32.totalorder %s37, 0
      %p130 = por %p128, %p129
      %p131 = scmp.ne.s32.totalorder %s123, %s125
      %p132 = scmp.eq.s32.totalorder %s42, 1
      %p133 = por %p131, %p132
      %p134 = scmp.ne.s32.totalorder %s125, %s126
      %p135 = scmp.eq.s32.totalorder %s42, 0
      %p136 = por %p134, %p135
      %p137 = scmp.ne.s32.totalorder %s125, %s126
      %p138 = scmp.eq.s32.totalorder %s43, 1
      %p139 = por %p137, %p138
      %p141 = scmp.ne.s32.totalorder %s126, %s140
      %p142 = scmp.eq.s32.totalorder %s43, 0
      %p143 = por %p141, %p142
      %s145 = sadd.s32 %s144, 1
      %p148 = scmp.eq.s32.totalorder %s37, 1
      %p149 = scmp.ne.s32.totalorder %s144, %s146
      %p150 = scmp.eq.s32.totalorder %s37, 0
      %p151 = por %p149, %p150
      %p152 = scmp.ne.s32.totalorder %s144, %s146
      %p153 = scmp.eq.s32.totalorder %s42, 1
      %p154 = por %p152, %p153
      %p155 = scmp.ne.s32.totalorder %s146, %s147
      %p156 = scmp.eq.s32.totalorder %s42, 0
      %p157 = por %p155, %p156
      %p158 = scmp.ne.s32.totalorder %s146, %s147
      %p159 = scmp.eq.s32.totalorder %s43, 1
      %p160 = por %p158, %p159
      %p162 = scmp.ne.s32.totalorder %s147, %s161
      %p163 = scmp.eq.s32.totalorder %s43, 0
      %p164 = por %p162, %p163
      %s166 = sadd.s32 %s165, 1
      %p169 = scmp.eq.s32.totalorder %s37, 1
      %p170 = scmp.ne.s32.totalorder %s165, %s167
      %p171 = scmp.eq.s32.totalorder %s37, 0
      %p172 = por %p170, %p171
      %p173 = scmp.ne.s32.totalorder %s165, %s167
      %p174 = scmp.eq.s32.totalorder %s42, 1
      %p175 = por %p173, %p174
      %p176 = scmp.ne.s32.totalorder %s167, %s168
      %p177 = scmp.eq.s32.totalorder %s42, 0
      %p178 = por %p176, %p177
      %p179 = scmp.ne.s32.totalorder %s167, %s168
      %p180 = scmp.eq.s32.totalorder %s43, 1
      %p181 = por %p179, %p180
      %p183 = scmp.ne.s32.totalorder %s168, %s182
      %p184 = scmp.eq.s32.totalorder %s43, 0
      %p185 = por %p183, %p184
      %s187 = sadd.s32 %s186, 1
      %p190 = scmp.eq.s32.totalorder %s37, 1
      %p191 = scmp.ne.s32.totalorder %s186, %s188
      %p192 = scmp.eq.s32.totalorder %s37, 0
      %p193 = por %p191, %p192
      %p194 = scmp.ne.s32.totalorder %s186, %s188
      %p195 = scmp.eq.s32.totalorder %s42, 1
      %p196 = por %p194, %p195
      %p197 = scmp.ne.s32.totalorder %s188, %s189
      %p198 = scmp.eq.s32.totalorder %s42, 0
      %p199 = por %p197, %p198
      %p200 = scmp.ne.s32.totalorder %s188, %s189
      %p201 = scmp.eq.s32.totalorder %s43, 1
      %p202 = por %p200, %p201
      %p204 = scmp.ne.s32.totalorder %s189, %s203
      %p205 = scmp.eq.s32.totalorder %s43, 0
      %p206 = por %p204, %p205
      %s208 = sadd.s32 %s207, 1
      %p211 = scmp.eq.s32.totalorder %s37, 1
      %p212 = scmp.ne.s32.totalorder %s207, %s209
      %p213 = scmp.eq.s32.totalorder %s37, 0
      %p214 = por %p212, %p213
      %p215 = scmp.ne.s32.totalorder %s207, %s209
      %p216 = scmp.eq.s32.totalorder %s42, 1
      %p217 = por %p215, %p216
      %p218 = scmp.ne.s32.totalorder %s209, %s210
      %p219 = scmp.eq.s32.totalorder %s42, 0
      %p220 = por %p218, %p219
      %p221 = scmp.ne.s32.totalorder %s209, %s210
      %p222 = scmp.eq.s32.totalorder %s43, 1
      %p223 = por %p221, %p222
      %p225 = scmp.ne.s32.totalorder %s210, %s224
      %p226 = scmp.eq.s32.totalorder %s43, 0
      %p227 = por %p225, %p226
      %s229 = sadd.s32 %s228, 1
      %p232 = scmp.eq.s32.totalorder %s37, 1
      %p233 = scmp.ne.s32.totalorder %s228, %s230
      %p234 = scmp.eq.s32.totalorder %s37, 0
      %p235 = por %p233, %p234
      %p236 = scmp.ne.s32.totalorder %s228, %s230
      %p237 = scmp.eq.s32.totalorder %s42, 1
      %p238 = por %p236, %p237
      %p239 = scmp.ne.s32.totalorder %s230, %s231
      %p240 = scmp.eq.s32.totalorder %s42, 0
      %p241 = por %p239, %p240
      %p242 = scmp.ne.s32.totalorder %s230, %s231
      %p243 = scmp.eq.s32.totalorder %s43, 1
      %p244 = por %p242, %p243
      %p246 = scmp.ne.s32.totalorder %s231, %s245
      %p247 = scmp.eq.s32.totalorder %s43, 0
      %p248 = por %p246, %p247
      %s250 = sadd.s32 %s249, 1
      %p253 = scmp.eq.s32.totalorder %s37, 1
      %p254 = scmp.ne.s32.totalorder %s249, %s251
      %p255 = scmp.eq.s32.totalorder %s37, 0
      %p256 = por %p254, %p255
      %p257 = scmp.ne.s32.totalorder %s249, %s251
      %p258 = scmp.eq.s32.totalorder %s42, 1
      %p259 = por %p257, %p258
      %p260 = scmp.ne.s32.totalorder %s251, %s252
      %p261 = scmp.eq.s32.totalorder %s42, 0
      %p262 = por %p260, %p261
      %p263 = scmp.ne.s32.totalorder %s251, %s252
      %p264 = scmp.eq.s32.totalorder %s43, 1
      %p265 = por %p263, %p264
      %p267 = scmp.ne.s32.totalorder %s252, %s266
      %p268 = scmp.eq.s32.totalorder %s43, 0
      %p269 = por %p267, %p268
      %s271 = sadd.s32 %s270, 1
      %p274 = scmp.eq.s32.totalorder %s37, 1
      %p275 = scmp.ne.s32.totalorder %s270, %s272
      %p276 = scmp.eq.s32.totalorder %s37, 0
      %p277 = por %p275, %p276
      %p278 = scmp.ne.s32.totalorder %s270, %s272
      %p279 = scmp.eq.s32.totalorder %s42, 1
      %p280 = por %p278, %p279
      %p281 = scmp.ne.s32.totalorder %s272, %s273
      %p282 = scmp.eq.s32.totalorder %s42, 0
      %p283 = por %p281, %p282
      %p284 = scmp.ne.s32.totalorder %s272, %s273
      %p285 = scmp.eq.s32.totalorder %s43, 1
      %p286 = por %p284, %p285
      %p288 = scmp.ne.s32.totalorder %s273, %s287
      %p289 = scmp.eq.s32.totalorder %s43, 0
      %p290 = por %p288, %p289
      %s292 = sadd.s32 %s291, 1
      %p295 = scmp.eq.s32.totalorder %s37, 1
      %p296 = scmp.ne.s32.totalorder %s291, %s293
      %p297 = scmp.eq.s32.totalorder %s37, 0
      %p298 = por %p296, %p297
      %p299 = scmp.ne.s32.totalorder %s291, %s293
      %p300 = scmp.eq.s32.totalorder %s42, 1
      %p301 = por %p299, %p300
      %p302 = scmp.ne.s32.totalorder %s293, %s294
      %p303 = scmp.eq.s32.totalorder %s42, 0
      %p304 = por %p302, %p303
      %p305 = scmp.ne.s32.totalorder %s293, %s294
      %p306 = scmp.eq.s32.totalorder %s43, 1
      %p307 = por %p305, %p306
      %p309 = scmp.ne.s32.totalorder %s294, %s308
      %p310 = scmp.eq.s32.totalorder %s43, 0
      %p311 = por %p309, %p310
      %s313 = sadd.s32 %s312, 1
      %p316 = scmp.eq.s32.totalorder %s37, 1
      %p317 = scmp.ne.s32.totalorder %s312, %s314
      %p318 = scmp.eq.s32.totalorder %s37, 0
      %p319 = por %p317, %p318
      %p320 = scmp.ne.s32.totalorder %s312, %s314
      %p321 = scmp.eq.s32.totalorder %s42, 1
      %p322 = por %p320, %p321
      %p323 = scmp.ne.s32.totalorder %s314, %s315
      %p324 = scmp.eq.s32.totalorder %s42, 0
      %p325 = por %p323, %p324
      %p326 = scmp.ne.s32.totalorder %s314, %s315
      %p327 = scmp.eq.s32.totalorder %s43, 1
      %p328 = por %p326, %p327
      %p330 = scmp.ne.s32.totalorder %s315, %s329
      %p331 = scmp.eq.s32.totalorder %s43, 0
      %p332 = por %p330, %p331
      %s334 = sadd.s32 %s333, 1
      %p337 = scmp.eq.s32.totalorder %s37, 1
      %p338 = scmp.ne.s32.totalorder %s333, %s335
      %p339 = scmp.eq.s32.totalorder %s37, 0
      %p340 = por %p338, %p339
      %p341 = scmp.ne.s32.totalorder %s333, %s335
      %p342 = scmp.eq.s32.totalorder %s42, 1
      %p343 = por %p341, %p342
      %p344 = scmp.ne.s32.totalorder %s335, %s336
      %p345 = scmp.eq.s32.totalorder %s42, 0
      %p346 = por %p344, %p345
      %p347 = scmp.ne.s32.totalorder %s335, %s336
      %p348 = scmp.eq.s32.totalorder %s43, 1
      %p349 = por %p347, %p348
      %p351 = scmp.ne.s32.totalorder %s336, %s350
      %p352 = scmp.eq.s32.totalorder %s43, 0
      %p353 = por %p351, %p352
      %s355 = sadd.s32 %s354, 1
      %p358 = scmp.eq.s32.totalorder %s37, 1
      %p359 = scmp.ne.s32.totalorder %s354, %s356
      %p360 = scmp.eq.s32.totalorder %s37, 0
      %p361 = por %p359, %p360
      %p362 = scmp.ne.s32.totalorder %s354, %s356
      %p363 = scmp.eq.s32.totalorder %s42, 1
      %p364 = por %p362, %p363
      %p365 = scmp.ne.s32.totalorder %s356, %s357
      %p366 = scmp.eq.s32.totalorder %s42, 0
      %p367 = por %p365, %p366
      %p368 = scmp.ne.s32.totalorder %s356, %s357
      %p369 = scmp.eq.s32.totalorder %s43, 1
      %p370 = por %p368, %p369
      %p372 = scmp.ne.s32.totalorder %s357, %s371
      %p373 = scmp.eq.s32.totalorder %s43, 0
      %p374 = por %p372, %p373
      %s376 = sadd.s32 %s375, 1
      %p379 = scmp.eq.s32.totalorder %s37, 1
      %p380 = scmp.ne.s32.totalorder %s375, %s377
      %p381 = scmp.eq.s32.totalorder %s37, 0
      %p382 = por %p380, %p381
      %p383 = scmp.ne.s32.totalorder %s375, %s377
      %p384 = scmp.eq.s32.totalorder %s42, 1
      %p385 = por %p383, %p384
      %p386 = scmp.ne.s32.totalorder %s377, %s378
      %p387 = scmp.eq.s32.totalorder %s42, 0
      %p388 = por %p386, %p387
      %p389 = scmp.ne.s32.totalorder %s377, %s378
      %p390 = scmp.eq.s32.totalorder %s43, 1
      %p391 = por %p389, %p390
      %p393 = scmp.ne.s32.totalorder %s378, %s392
      %p394 = scmp.eq.s32.totalorder %s43, 0
      %p395 = por %p393, %p394
      %s397 = sadd.s32 %s396, 1
      %p400 = scmp.eq.s32.totalorder %s37, 1
      %p401 = scmp.ne.s32.totalorder %s396, %s398
      %p402 = scmp.eq.s32.totalorder %s37, 0
      %p403 = por %p401, %p402
      %p404 = scmp.ne.s32.totalorder %s396, %s398
      %p405 = scmp.eq.s32.totalorder %s42, 1
      %p406 = por %p404, %p405
      %p407 = scmp.ne.s32.totalorder %s398, %s399
      %p408 = scmp.eq.s32.totalorder %s42, 0
      %p409 = por %p407, %p408
      %p410 = scmp.ne.s32.totalorder %s398, %s399
      %p411 = scmp.eq.s32.totalorder %s43, 1
      %p412 = por %p410, %p411
      %p414 = scmp.ne.s32.totalorder %s399, %s413
      %p415 = scmp.eq.s32.totalorder %s43, 0
      %p416 = por %p414, %p415
      %s418 = sadd.s32 %s417, 1
      %p421 = scmp.eq.s32.totalorder %s37, 1
      %p422 = scmp.ne.s32.totalorder %s417, %s419
      %p423 = scmp.eq.s32.totalorder %s37, 0
      %p424 = por %p422, %p423
      %p425 = scmp.ne.s32.totalorder %s417, %s419
      %p426 = scmp.eq.s32.totalorder %s42, 1
      %p427 = por %p425, %p426
      %p428 = scmp.ne.s32.totalorder %s419, %s420
      %p429 = scmp.eq.s32.totalorder %s42, 0
      %p430 = por %p428, %p429
      %p431 = scmp.ne.s32.totalorder %s419, %s420
      %p432 = scmp.eq.s32.totalorder %s43, 1
      %p433 = por %p431, %p432
      %p435 = scmp.ne.s32.totalorder %s420, %s434
      %p436 = scmp.eq.s32.totalorder %s43, 0
      %p437 = por %p435, %p436
      %s439 = sadd.s32 %s438, 1
      %p442 = scmp.eq.s32.totalorder %s37, 1
      %p443 = scmp.ne.s32.totalorder %s438, %s440
      %p444 = scmp.eq.s32.totalorder %s37, 0
      %p445 = por %p443, %p444
      %p446 = scmp.ne.s32.totalorder %s438, %s440
      %p447 = scmp.eq.s32.totalorder %s42, 1
      %p448 = por %p446, %p447
      %p449 = scmp.ne.s32.totalorder %s440, %s441
      %p450 = scmp.eq.s32.totalorder %s42, 0
      %p451 = por %p449, %p450
      %p452 = scmp.ne.s32.totalorder %s440, %s441
      %p453 = scmp.eq.s32.totalorder %s43, 1
      %p454 = por %p452, %p453
      %p456 = scmp.ne.s32.totalorder %s441, %s455
      %p457 = scmp.eq.s32.totalorder %s43, 0
      %p458 = por %p456, %p457
      %s460 = sadd.s32 %s459, 1
      %p463 = scmp.eq.s32.totalorder %s37, 1
      %p464 = scmp.ne.s32.totalorder %s459, %s461
      %p465 = scmp.eq.s32.totalorder %s37, 0
      %p466 = por %p464, %p465
      %p467 = scmp.ne.s32.totalorder %s459, %s461
      %p468 = scmp.eq.s32.totalorder %s42, 1
      %p469 = por %p467, %p468
      %p470 = scmp.ne.s32.totalorder %s461, %s462
      %p471 = scmp.eq.s32.totalorder %s42, 0
      %p472 = por %p470, %p471
      %p473 = scmp.ne.s32.totalorder %s461, %s462
      %p474 = scmp.eq.s32.totalorder %s43, 1
      %p475 = por %p473, %p474
      %p477 = scmp.ne.s32.totalorder %s462, %s476
      %p478 = scmp.eq.s32.totalorder %s43, 0
      %p479 = por %p477, %p478
      %s481 = sadd.s32 %s480, 1
      %p484 = scmp.eq.s32.totalorder %s37, 1
      %p485 = scmp.ne.s32.totalorder %s480, %s482
      %p486 = scmp.eq.s32.totalorder %s37, 0
      %p487 = por %p485, %p486
      %p488 = scmp.ne.s32.totalorder %s480, %s482
      %p489 = scmp.eq.s32.totalorder %s42, 1
      %p490 = por %p488, %p489
      %p491 = scmp.ne.s32.totalorder %s482, %s483
      %p492 = scmp.eq.s32.totalorder %s42, 0
      %p493 = por %p491, %p492
      %p494 = scmp.ne.s32.totalorder %s482, %s483
      %p495 = scmp.eq.s32.totalorder %s43, 1
      %p496 = por %p494, %p495
      %p498 = scmp.ne.s32.totalorder %s483, %s497
      %p499 = scmp.eq.s32.totalorder %s43, 0
      %p500 = por %p498, %p499
      %s502 = sadd.s32 %s501, 1
      %p505 = scmp.eq.s32.totalorder %s37, 1
      %p506 = scmp.ne.s32.totalorder %s501, %s503
      %p507 = scmp.eq.s32.totalorder %s37, 0
      %p508 = por %p506, %p507
      %p509 = scmp.ne.s32.totalorder %s501, %s503
      %p510 = scmp.eq.s32.totalorder %s42, 1
      %p511 = por %p509, %p510
      %p512 = scmp.ne.s32.totalorder %s503, %s504
      %p513 = scmp.eq.s32.totalorder %s42, 0
      %p514 = por %p512, %p513
      %p515 = scmp.ne.s32.totalorder %s503, %s504
      %p516 = scmp.eq.s32.totalorder %s43, 1
      %p517 = por %p515, %p516
      %p519 = scmp.ne.s32.totalorder %s504, %s518
      %p520 = scmp.eq.s32.totalorder %s43, 0
      %p521 = por %p519, %p520
      %s523 = sadd.s32 %s522, 1
      %p526 = scmp.eq.s32.totalorder %s37, 1
      %p527 = scmp.ne.s32.totalorder %s522, %s524
      %p528 = scmp.eq.s32.totalorder %s37, 0
      %p529 = por %p527, %p528
      %p530 = scmp.ne.s32.totalorder %s522, %s524
      %p531 = scmp.eq.s32.totalorder %s42, 1
      %p532 = por %p530, %p531
      %p533 = scmp.ne.s32.totalorder %s524, %s525
      %p534 = scmp.eq.s32.totalorder %s42, 0
      %p535 = por %p533, %p534
      %p536 = scmp.ne.s32.totalorder %s524, %s525
      %p537 = scmp.eq.s32.totalorder %s43, 1
      %p538 = por %p536, %p537
      %p540 = scmp.ne.s32.totalorder %s525, %s539
      %p541 = scmp.eq.s32.totalorder %s43, 0
      %p542 = por %p540, %p541
      %s544 = sadd.s32 %s543, 1
      %p547 = scmp.eq.s32.totalorder %s37, 1
      %p548 = scmp.ne.s32.totalorder %s543, %s545
      %p549 = scmp.eq.s32.totalorder %s37, 0
      %p550 = por %p548, %p549
      %p551 = scmp.ne.s32.totalorder %s543, %s545
      %p552 = scmp.eq.s32.totalorder %s42, 1
      %p553 = por %p551, %p552
      %p554 = scmp.ne.s32.totalorder %s545, %s546
      %p555 = scmp.eq.s32.totalorder %s42, 0
      %p556 = por %p554, %p555
      %p557 = scmp.ne.s32.totalorder %s545, %s546
      %p558 = scmp.eq.s32.totalorder %s43, 1
      %p559 = por %p557, %p558
      %p561 = scmp.ne.s32.totalorder %s546, %s560
      %p562 = scmp.eq.s32.totalorder %s43, 0
      %p563 = por %p561, %p562
      %s564 = ssub.s32 %s37, %s44
      %p565 = scmp.eq.s32.totalorder %s564, 0
      %s567 = sadd.s32 %s566, 1
      %s568 = scalar_select %p565, %s566, %s567
      %p571 = pneg %p565
      %p572 = scmp.eq.s32.totalorder %s37, 1
      %p573 = por %p571, %p572
      %p574 = scmp.ne.s32.totalorder %s566, %s569
      %p575 = scmp.eq.s32.totalorder %s37, 0
      %p576 = por %p574, %p575
      %p577 = scmp.ne.s32.totalorder %s566, %s569
      %p578 = scmp.eq.s32.totalorder %s42, 1
      %p579 = por %p577, %p578
      %p580 = scmp.ne.s32.totalorder %s569, %s570
      %p581 = scmp.eq.s32.totalorder %s42, 0
      %p582 = por %p580, %p581
      %p583 = scmp.ne.s32.totalorder %s569, %s570
      %p584 = scmp.eq.s32.totalorder %s43, 1
      %p585 = por %p583, %p584
      %p587 = scmp.ne.s32.totalorder %s570, %s586
      %p588 = scmp.eq.s32.totalorder %s43, 0
      %p589 = por %p587, %p588
      %s590 = ssub.s32 %s37, %s44
      %p591 = scmp.eq.s32.totalorder %s590, 0
      %s593 = sadd.s32 %s592, 1
      %s594 = scalar_select %p591, %s592, %s593
      %p597 = pneg %p591
      %p598 = scmp.eq.s32.totalorder %s37, 1
      %p599 = por %p597, %p598
      %p600 = scmp.ne.s32.totalorder %s592, %s595
      %p601 = scmp.eq.s32.totalorder %s37, 0
      %p602 = por %p600, %p601
      %p603 = scmp.ne.s32.totalorder %s592, %s595
      %p604 = scmp.eq.s32.totalorder %s42, 1
      %p605 = por %p603, %p604
      %p606 = scmp.ne.s32.totalorder %s595, %s596
      %p607 = scmp.eq.s32.totalorder %s42, 0
      %p608 = por %p606, %p607
      %p609 = scmp.ne.s32.totalorder %s595, %s596
      %p610 = scmp.eq.s32.totalorder %s43, 1
      %p611 = por %p609, %p610
      %p613 = scmp.ne.s32.totalorder %s596, %s612
      %p614 = scmp.eq.s32.totalorder %s43, 0
      %p615 = por %p613, %p614
      %p616 = scmp.le.s32.totalorder 1, %s37
      %p617 = scmp.lt.s32.totalorder %s37, 3
      %p618 = pnand %p616, %p617
      %p619 = pneg %p618
      // Predicated region
      $region9: #{improved_cross_modal_attention.1} parent=5 // pred_check
        _
      $region10: #{improved_cross_modal_attention.1} parent=5 // pred_check_branch
        %621 = sbr.rel (%p618) target = $region12
      $region11: #{improved_cross_modal_attention.1} parent=5 // pred_region
        %s622 = ssub.s32 %s37, 1
        // Predicated region
        $region13: #{improved_cross_modal_attention.1} parent=11 // pred_check
          %p623 = pneg %p136
        $region14: #{improved_cross_modal_attention.1} parent=11 // pred_check_branch
          %625 = sbr.rel (%p623) target = $region16
        $region15: #{improved_cross_modal_attention.1} parent=11 // pred_region
          _
        $region16: #{improved_cross_modal_attention.1} parent=11 // pred_fallthru
          _
        // Predicated region
        $region17: #{improved_cross_modal_attention.1} parent=11 // pred_check
          %p626 = pneg %p157
        $region18: #{improved_cross_modal_attention.1} parent=11 // pred_check_branch
          %628 = sbr.rel (%p626) target = $region20
        $region19: #{improved_cross_modal_attention.1} parent=11 // pred_region
          _
        $region20: #{improved_cross_modal_attention.1} parent=11 // pred_fallthru
          _
        // Predicated region
        $region21: #{improved_cross_modal_attention.1} parent=11 // pred_check
          %p629 = pneg %p178
        $region22: #{improved_cross_modal_attention.1} parent=11 // pred_check_branch
          %631 = sbr.rel (%p629) target = $region24
        $region23: #{improved_cross_modal_attention.1} parent=11 // pred_region
          _
        $region24: #{improved_cross_modal_attention.1} parent=11 // pred_fallthru
          _
        // Predicated region
        $region25: #{improved_cross_modal_attention.1} parent=11 // pred_check
          %p632 = pneg %p199
        $region26: #{improved_cross_modal_attention.1} parent=11 // pred_check_branch
          %634 = sbr.rel (%p632) target = $region28
        $region27: #{improved_cross_modal_attention.1} parent=11 // pred_region
          _
        $region28: #{improved_cross_modal_attention.1} parent=11 // pred_fallthru
          _
        // Predicated region
        $region29: #{improved_cross_modal_attention.1} parent=11 // pred_check
          %p635 = pneg %p220
        $region30: #{improved_cross_modal_attention.1} parent=11 // pred_check_branch
          %637 = sbr.rel (%p635) target = $region32
        $region31: #{improved_cross_modal_attention.1} parent=11 // pred_region
          _
        $region32: #{improved_cross_modal_attention.1} parent=11 // pred_fallthru
          _
        // Predicated region
        $region33: #{improved_cross_modal_attention.1} parent=11 // pred_check
          %p638 = pneg %p241
        $region34: #{improved_cross_modal_attention.1} parent=11 // pred_check_branch
          %640 = sbr.rel (%p638) target = $region36
        $region35: #{improved_cross_modal_attention.1} parent=11 // pred_region
          _
        $region36: #{improved_cross_modal_attention.1} parent=11 // pred_fallthru
          _
        // Predicated region
        $region37: #{improved_cross_modal_attention.1} parent=11 // pred_check
          %p641 = pneg %p262
        $region38: #{improved_cross_modal_attention.1} parent=11 // pred_check_branch
          %643 = sbr.rel (%p641) target = $region40
        $region39: #{improved_cross_modal_attention.1} parent=11 // pred_region
          _
        $region40: #{improved_cross_modal_attention.1} parent=11 // pred_fallthru
          _
        // Predicated region
        $region41: #{improved_cross_modal_attention.1} parent=11 // pred_check
          %p644 = pneg %p283
        $region42: #{improved_cross_modal_attention.1} parent=11 // pred_check_branch
          %646 = sbr.rel (%p644) target = $region44
        $region43: #{improved_cross_modal_attention.1} parent=11 // pred_region
          _
        $region44: #{improved_cross_modal_attention.1} parent=11 // pred_fallthru
          _
        // Predicated region
        $region45: #{improved_cross_modal_attention.1} parent=11 // pred_check
          %p647 = pneg %p304
        $region46: #{improved_cross_modal_attention.1} parent=11 // pred_check_branch
          %649 = sbr.rel (%p647) target = $region48
        $region47: #{improved_cross_modal_attention.1} parent=11 // pred_region
          _
        $region48: #{improved_cross_modal_attention.1} parent=11 // pred_fallthru
          _
        // Predicated region
        $region49: #{improved_cross_modal_attention.1} parent=11 // pred_check
          %p650 = pneg %p325
        $region50: #{improved_cross_modal_attention.1} parent=11 // pred_check_branch
          %652 = sbr.rel (%p650) target = $region52
        $region51: #{improved_cross_modal_attention.1} parent=11 // pred_region
          _
        $region52: #{improved_cross_modal_attention.1} parent=11 // pred_fallthru
          _
        // Predicated region
        $region53: #{improved_cross_modal_attention.1} parent=11 // pred_check
          %p653 = pneg %p346
        $region54: #{improved_cross_modal_attention.1} parent=11 // pred_check_branch
          %655 = sbr.rel (%p653) target = $region56
        $region55: #{improved_cross_modal_attention.1} parent=11 // pred_region
          _
        $region56: #{improved_cross_modal_attention.1} parent=11 // pred_fallthru
          _
        // Predicated region
        $region57: #{improved_cross_modal_attention.1} parent=11 // pred_check
          %p656 = pneg %p367
        $region58: #{improved_cross_modal_attention.1} parent=11 // pred_check_branch
          %658 = sbr.rel (%p656) target = $region60
        $region59: #{improved_cross_modal_attention.1} parent=11 // pred_region
          _
        $region60: #{improved_cross_modal_attention.1} parent=11 // pred_fallthru
          _
        // Predicated region
        $region61: #{improved_cross_modal_attention.1} parent=11 // pred_check
          %p659 = pneg %p388
        $region62: #{improved_cross_modal_attention.1} parent=11 // pred_check_branch
          %661 = sbr.rel (%p659) target = $region64
        $region63: #{improved_cross_modal_attention.1} parent=11 // pred_region
          _
        $region64: #{improved_cross_modal_attention.1} parent=11 // pred_fallthru
          _
        // Predicated region
        $region65: #{improved_cross_modal_attention.1} parent=11 // pred_check
          %p662 = pneg %p409
        $region66: #{improved_cross_modal_attention.1} parent=11 // pred_check_branch
          %664 = sbr.rel (%p662) target = $region68
        $region67: #{improved_cross_modal_attention.1} parent=11 // pred_region
          _
        $region68: #{improved_cross_modal_attention.1} parent=11 // pred_fallthru
          _
        // Predicated region
        $region69: #{improved_cross_modal_attention.1} parent=11 // pred_check
          %p665 = pneg %p430
        $region70: #{improved_cross_modal_attention.1} parent=11 // pred_check_branch
          %667 = sbr.rel (%p665) target = $region72
        $region71: #{improved_cross_modal_attention.1} parent=11 // pred_region
          _
        $region72: #{improved_cross_modal_attention.1} parent=11 // pred_fallthru
          _
        // Predicated region
        $region73: #{improved_cross_modal_attention.1} parent=11 // pred_check
          %p668 = pneg %p451
        $region74: #{improved_cross_modal_attention.1} parent=11 // pred_check_branch
          %670 = sbr.rel (%p668) target = $region76
        $region75: #{improved_cross_modal_attention.1} parent=11 // pred_region
          _
        $region76: #{improved_cross_modal_attention.1} parent=11 // pred_fallthru
          _
        // Predicated region
        $region77: #{improved_cross_modal_attention.1} parent=11 // pred_check
          %p671 = pneg %p472
        $region78: #{improved_cross_modal_attention.1} parent=11 // pred_check_branch
          %673 = sbr.rel (%p671) target = $region80
        $region79: #{improved_cross_modal_attention.1} parent=11 // pred_region
          _
        $region80: #{improved_cross_modal_attention.1} parent=11 // pred_fallthru
          _
        // Predicated region
        $region81: #{improved_cross_modal_attention.1} parent=11 // pred_check
          %p674 = pneg %p493
        $region82: #{improved_cross_modal_attention.1} parent=11 // pred_check_branch
          %676 = sbr.rel (%p674) target = $region84
        $region83: #{improved_cross_modal_attention.1} parent=11 // pred_region
          _
        $region84: #{improved_cross_modal_attention.1} parent=11 // pred_fallthru
          _
        // Predicated region
        $region85: #{improved_cross_modal_attention.1} parent=11 // pred_check
          %p677 = pneg %p514
        $region86: #{improved_cross_modal_attention.1} parent=11 // pred_check_branch
          %679 = sbr.rel (%p677) target = $region88
        $region87: #{improved_cross_modal_attention.1} parent=11 // pred_region
          %s681 = ssub.s32 16, 16
          %682 = vsyncadd [#allocation3], %s681
          %s684 = sshll.u32 [#allocation2], 4
          %s685 = int_to_ptr.vmem [resolvable:$true] %s684
          %687 = dma.hbm_to_vmem [thread:$0]  %s21, 16, %s685, [#allocation3]
        $region88: #{improved_cross_modal_attention.1} parent=11 // pred_fallthru
          _
        // Predicated region
        $region89: #{improved_cross_modal_attention.1} parent=11 // pred_check
          %p688 = pneg %p535
        $region90: #{improved_cross_modal_attention.1} parent=11 // pred_check_branch
          %690 = sbr.rel (%p688) target = $region92
        $region91: #{improved_cross_modal_attention.1} parent=11 // pred_region
          %s692 = ssub.s32 512, 512
          %693 = vsyncadd [#allocation6], %s692
          %s694 = sshll.u32 [#allocation5], 4
          %s695 = int_to_ptr.vmem [resolvable:$true] %s694
          %700 = dma.hbm_to_vmem [thread:$0]  %s22, 512, %s695, [#allocation6], 64, 64, 4
        $region92: #{improved_cross_modal_attention.1} parent=11 // pred_fallthru
          _
        // Predicated region
        $region93: #{improved_cross_modal_attention.1} parent=11 // pred_check
          %p701 = pneg %p556
        $region94: #{improved_cross_modal_attention.1} parent=11 // pred_check_branch
          %703 = sbr.rel (%p701) target = $region96
        $region95: #{improved_cross_modal_attention.1} parent=11 // pred_region
          %s705 = ssub.s32 16, 16
          %706 = vsyncadd [#allocation6], %s705
          %s708 = sshll.u32 [#allocation7], 4
          %s709 = int_to_ptr.vmem [resolvable:$true] %s708
          %711 = dma.hbm_to_vmem [thread:$0]  %s23, 16, %s709, [#allocation6]
        $region96: #{improved_cross_modal_attention.1} parent=11 // pred_fallthru
          _
      $region12: #{improved_cross_modal_attention.1} parent=5 // pred_fallthru
        _
      %p712 = scmp.lt.s32.totalorder %s37, 2
      // Predicated region
      $region97: #{improved_cross_modal_attention.1} parent=5 // pred_check
        %p713 = pneg %p712
      $region98: #{improved_cross_modal_attention.1} parent=5 // pred_check_branch
        %715 = sbr.rel (%p713) target = $region100
      $region99: #{improved_cross_modal_attention.1} parent=5 // pred_region
        // Predicated region
        $region101: #{improved_cross_modal_attention.1} parent=99 // pred_check
          %p716 = pneg %p57
        $region102: #{improved_cross_modal_attention.1} parent=99 // pred_check_branch
          %718 = sbr.rel (%p716) target = $region104
        $region103: #{improved_cross_modal_attention.1} parent=99 // pred_region
          %s719 = smul.u32 2, %s37
          %p720 = scmp.lt.s32.totalorder %s719, 3
          %s721 = scalar_select %p720, %s719, 3
          %s722 = smul.addr %s721, 4
          %s723 = scalar_lea.vmem %s0, %s722
          %s724 = smul.u32 2, %s37
        $region104: #{improved_cross_modal_attention.1} parent=99 // pred_fallthru
          _
        // Predicated region
        $region105: #{improved_cross_modal_attention.1} parent=99 // pred_check
          %p725 = pneg %p83
        $region106: #{improved_cross_modal_attention.1} parent=99 // pred_check_branch
          %727 = sbr.rel (%p725) target = $region108
        $region107: #{improved_cross_modal_attention.1} parent=99 // pred_region
          %s728 = smul.u32 2, %s37
          %p729 = scmp.lt.s32.totalorder %s728, 3
          %s730 = scalar_select %p729, %s728, 3
          %s731 = smul.addr %s730, 4
          %s732 = scalar_lea.vmem %s1, %s731
          %s733 = smul.u32 2, %s37
        $region108: #{improved_cross_modal_attention.1} parent=99 // pred_fallthru
          _
        // Predicated region
        $region109: #{improved_cross_modal_attention.1} parent=99 // pred_check
          %p734 = pneg %p109
        $region110: #{improved_cross_modal_attention.1} parent=99 // pred_check_branch
          %736 = sbr.rel (%p734) target = $region112
        $region111: #{improved_cross_modal_attention.1} parent=99 // pred_region
          %s737 = smul.u32 2, %s37
          %p738 = scmp.lt.s32.totalorder %s737, 3
          %s739 = scalar_select %p738, %s737, 3
          %s740 = smul.addr %s739, 4
          %s741 = scalar_lea.vmem %s2, %s740
          %s742 = smul.u32 2, %s37
        $region112: #{improved_cross_modal_attention.1} parent=99 // pred_fallthru
          _
      $region100: #{improved_cross_modal_attention.1} parent=5 // pred_fallthru
        _
      %p743 = scmp.le.s32.totalorder 1, %s37
      %p744 = scmp.lt.s32.totalorder %s37, 3
      %p745 = pnand %p743, %p744
      %p746 = pneg %p745
      // Predicated region
      $region113: #{improved_cross_modal_attention.1} parent=5 // pred_check
        _
      $region114: #{improved_cross_modal_attention.1} parent=5 // pred_check_branch
        %748 = sbr.rel (%p745) target = $region116
      $region115: #{improved_cross_modal_attention.1} parent=5 // pred_region
        %s749 = ssub.s32 %s37, 1
        // Predicated region
        $region117: #{improved_cross_modal_attention.1} parent=115 // pred_check
          %p750 = pneg %p514
        $region118: #{improved_cross_modal_attention.1} parent=115 // pred_check_branch
          %752 = sbr.rel (%p750) target = $region120
        $region119: #{improved_cross_modal_attention.1} parent=115 // pred_region
          %753 = dma.done [#allocation3], 16
        $region120: #{improved_cross_modal_attention.1} parent=115 // pred_fallthru
          _
        // Predicated region
        $region121: #{improved_cross_modal_attention.1} parent=115 // pred_check
          %p754 = pneg %p535
        $region122: #{improved_cross_modal_attention.1} parent=115 // pred_check_branch
          %756 = sbr.rel (%p754) target = $region124
        $region123: #{improved_cross_modal_attention.1} parent=115 // pred_region
          %757 = dma.done [#allocation6], 512
        $region124: #{improved_cross_modal_attention.1} parent=115 // pred_fallthru
          _
        // Predicated region
        $region125: #{improved_cross_modal_attention.1} parent=115 // pred_check
          %p758 = pneg %p556
        $region126: #{improved_cross_modal_attention.1} parent=115 // pred_check_branch
          %760 = sbr.rel (%p758) target = $region128
        $region127: #{improved_cross_modal_attention.1} parent=115 // pred_region
          %761 = dma.done [#allocation6], 16
        $region128: #{improved_cross_modal_attention.1} parent=115 // pred_fallthru
          _
        %s762 = smul.u32 2, %s42
        %p763 = scmp.lt.s32.totalorder %s762, 3
        %s764 = scalar_select %p763, %s762, 3
        %s765 = smul.addr %s764, 4
        %s766 = scalar_lea.vmem %s0, %s765
        %p767 = pneg %p63
        %p768 = pneg %p60
        %s769 = smul.u32 2, %s42
        %p770 = scmp.lt.s32.totalorder %s769, 3
        %s771 = scalar_select %p770, %s769, 3
        %s772 = smul.addr %s771, 4
        %s773 = scalar_lea.vmem %s1, %s772
        %p774 = pneg %p89
        %p775 = pneg %p86
        %s776 = smul.u32 2, %s42
        %p777 = scmp.lt.s32.totalorder %s776, 3
        %s778 = scalar_select %p777, %s776, 3
        %s779 = smul.addr %s778, 4
        %s780 = scalar_lea.vmem %s2, %s779
        %p781 = pneg %p115
        %p782 = pneg %p112
        %p783 = pneg %p136
        %p784 = pneg %p133
        %p785 = pneg %p157
        %p786 = pneg %p154
        %p787 = pneg %p178
        %p788 = pneg %p175
        %p789 = pneg %p199
        %p790 = pneg %p196
        %p791 = pneg %p220
        %p792 = pneg %p217
        %p793 = pneg %p241
        %p794 = pneg %p238
        %p795 = pneg %p262
        %p796 = pneg %p259
        %p797 = pneg %p283
        %p798 = pneg %p280
        %p799 = pneg %p304
        %p800 = pneg %p301
        %p801 = pneg %p325
        %p802 = pneg %p322
        %p803 = pneg %p346
        %p804 = pneg %p343
        %p805 = pneg %p367
        %p806 = pneg %p364
        %p807 = pneg %p388
        %p808 = pneg %p385
        %p809 = pneg %p409
        %p810 = pneg %p406
        %p811 = pneg %p430
        %p812 = pneg %p427
        %p813 = pneg %p451
        %p814 = pneg %p448
        %p815 = pneg %p472
        %p816 = pneg %p469
        %p817 = pneg %p493
        %p818 = pneg %p490
        %p819 = pneg %p514
        %p820 = pneg %p511
        %p821 = pneg %p535
        %p822 = pneg %p532
        %p823 = pneg %p556
        %p824 = pneg %p553
        %p825 = pneg %p582
        %p826 = pneg %p579
        %s827 = sand.u32 %s569, 1
        %s828 = scalar_lea.sflag [#allocation4], %s827
        %s829 = sand.u32 %s569, 1
        %s830 = smul.addr %s829, 16
        %s831 = scalar_lea.vmem [#allocation8], %s830
        %p832 = pneg %p608
        %p833 = pneg %p605
        %s834 = smul.u32 2, %s42
        %p835 = scmp.lt.s32.totalorder %s834, 3
        %s836 = scalar_select %p835, %s834, 3
        %s837 = smul.addr %s836, 8
        %s838 = scalar_lea.vmem %s25, %s837
        %s839 = smul.u32 2, %s42
        %p840 = scmp.lt.s32.totalorder %s839, 3
        %s841 = scalar_select %p840, %s839, 3
        %s842 = smul.addr %s841, 4
        %s843 = scalar_lea.vmem %s0, %s842
        %s844 = smul.u32 2, %s42
        %s845 = smul.u32 2, %s42
        %p846 = scmp.lt.s32.totalorder %s845, 3
        %s847 = scalar_select %p846, %s845, 3
        %s848 = smul.addr %s847, 4
        %s849 = scalar_lea.vmem %s1, %s848
        %s850 = smul.u32 2, %s42
        %s851 = smul.u32 2, %s42
        %p852 = scmp.lt.s32.totalorder %s851, 3
        %s853 = scalar_select %p852, %s851, 3
        %s854 = smul.addr %s853, 4
        %s855 = scalar_lea.vmem %s2, %s854
        %s856 = smul.u32 2, %s42
        %s857 = smul.u32 2, %s42
        %s858 = smul.u32 2, %s42
        %p859 = scmp.lt.s32.totalorder %s858, 3
        %s860 = scalar_select %p859, %s858, 3
        %s861 = smul.addr %s860, 8
        %s862 = scalar_lea.vmem %s25, %s861
        %s863 = smul.u32 2, %s42
        %v865 = vld [vmem:[%s843] sm:$0xf]
        %v866 = vld [vmem:[%s843 + $0x4] sm:$0xf]
        %v867 = vld [vmem:[%s849] sm:$0xf]
        %v868 = vld [vmem:[%s849 + $0x4] sm:$0xf]
        %v869 = vld [vmem:[%s855] sm:$0xf]
        %v870 = vld [vmem:[%s855 + $0x4] sm:$0xf]
        %v871 = vld [vmem:[%s3] sm:$0xf]
        %v872 = vld [vmem:[%s3 + $0x4] sm:$0xf]
        %v873 = vld [vmem:[%s3 + $0x8] sm:$0xf]
        %v874 = vld [vmem:[%s3 + $0xc] sm:$0xf]
        %v875 = vld [vmem:[%s3 + $0x10] sm:$0xf]
        %v876 = vld [vmem:[%s3 + $0x14] sm:$0xf]
        %v877 = vld [vmem:[%s3 + $0x18] sm:$0xf]
        %v878 = vld [vmem:[%s3 + $0x1c] sm:$0xf]
        %v879 = vld [vmem:[%s5] sm:$0xf]
        %v880 = vld [vmem:[%s5 + $0x4] sm:$0xf]
        %v881 = vld [vmem:[%s5 + $0x8] sm:$0xf]
        %v882 = vld [vmem:[%s5 + $0xc] sm:$0xf]
        %v883 = vld [vmem:[%s5 + $0x10] sm:$0xf]
        %v884 = vld [vmem:[%s5 + $0x14] sm:$0xf]
        %v885 = vld [vmem:[%s5 + $0x18] sm:$0xf]
        %v886 = vld [vmem:[%s5 + $0x1c] sm:$0xf]
        %v887 = vld [vmem:[%s7] sm:$0xf]
        %v888 = vld [vmem:[%s7 + $0x4] sm:$0xf]
        %v889 = vld [vmem:[%s7 + $0x8] sm:$0xf]
        %v890 = vld [vmem:[%s7 + $0xc] sm:$0xf]
        %v891 = vld [vmem:[%s7 + $0x10] sm:$0xf]
        %v892 = vld [vmem:[%s7 + $0x14] sm:$0xf]
        %v893 = vld [vmem:[%s7 + $0x18] sm:$0xf]
        %v894 = vld [vmem:[%s7 + $0x1c] sm:$0xf]
        %v895 = vld [vmem:[%s4] sm:$0x1]
        %v896 = vld [vmem:[%s6] sm:$0x1]
        %v897 = vld [vmem:[%s8] sm:$0x1]
        %v899 = vlaneseq
        %v900 = vshrl.u32 %v899, 7
        %v901 = vsub.s32 0, %v900
        %v902 = vrot.slane %v895, %v901
        %v906 = vunpack.c.l.b16 %v865
        %v907 = vunpack.c.l.b16 %v866
        %v908 = vpack.c.b16 %v907, %v906
        %v917 = vunpack.c.l.b16 %v871
        %v918 = vunpack.c.l.b16 %v872
        %v919 = vunpack.c.l.b16 %v873
        %v920 = vunpack.c.l.b16 %v874
        %v921 = vunpack.c.l.b16 %v875
        %v922 = vunpack.c.l.b16 %v876
        %v923 = vunpack.c.l.b16 %v877
        %v924 = vunpack.c.l.b16 %v878
        %v925 = vpack.c.b16 %v918, %v917
        %v926 = vpack.c.b16 %v920, %v919
        %v927 = vpack.c.b16 %v922, %v921
        %v928 = vpack.c.b16 %v924, %v923
        %vm933 = vcmask 523264
        %v935 = vsel %vm933, %v908, 0
        %937 = vmatprep.subr.bf16.mxu0 0
        %938 = vmatpush1.bf16.msra.mxu0 %v925
        %939 = vmatprep.subr.bf16.mxu0 0
        %940 = vmatpush1.bf16.msra.mxu0 %v926
        %941 = vmatprep.subr.bf16.mxu0 0
        %942 = vmatpush1.bf16.msra.mxu0 %v927
        %943 = vmatprep.subr.bf16.mxu0 0
        %944 = vmatpush1.bf16.msra.mxu0 %v928
        %945 = vmatprep.subr.bf16.mxu0 0
        %946 = vmatpush1.bf16.msra.mxu0 0
        %947 = vmatprep.subr.bf16.mxu0 0
        %948 = vmatpush1.bf16.msra.mxu0 0
        %949 = vmatprep.subr.bf16.mxu0 0
        %950 = vmatpush1.bf16.msra.mxu0 0
        %951 = vmatprep.subr.bf16.mxu0 0
        %952 = vmatpush1.bf16.msra.mxu0 0
        %953 = vmatprep.subr.bf16.mxu0 0
        %954 = vmatpush1.bf16.msra.mxu0 0
        %955 = vmatprep.subr.bf16.mxu0 0
        %956 = vmatpush1.bf16.msra.mxu0 0
        %957 = vmatprep.subr.bf16.mxu0 0
        %958 = vmatpush1.bf16.msra.mxu0 0
        %959 = vmatprep.subr.bf16.mxu0 0
        %960 = vmatpush1.bf16.msra.mxu0 0
        %961 = vmatprep.subr.bf16.mxu0 0
        %962 = vmatpush1.bf16.msra.mxu0 0
        %963 = vmatprep.subr.bf16.mxu0 0
        %964 = vmatpush1.bf16.msra.mxu0 0
        %965 = vmatprep.subr.bf16.mxu0 0
        %966 = vmatpush1.bf16.msra.mxu0 0
        %967 = vmatprep.subr.bf16.mxu0 0
        %968 = vmatpush1.bf16.msra.mxu0 0
        %969 = vmatprep.mubr.bf16.mxu0 0
        %970 = vmatmul.mubr.bf16.gmra.mrb[0].mxu0 %v935
        %v971 = vpop.f32.mrb[0].mxu0
        %v972 = vadd.f32 %v902, %v971
        %v973 = vpop.f32.mrb[0].mxu0
        %v974 = vpop.f32.mrb[0].mxu0
        %v975 = vadd.f32 %v902, %v974
        %v976 = vpop.f32.mrb[0].mxu0
        %977 = vdwg.mxu0
        %v980 = vunpack.c.l.b16 %v867
        %v981 = vunpack.c.l.b16 %v868
        %v982 = vpack.c.b16 %v981, %v980
        %v984 = vsel %vm933, %v982, 0
        %986 = vmatprep.subr.bf16.mxu0 0
        %987 = vmatpush1.bf16.msra.mxu0 %v925
        %988 = vmatprep.subr.bf16.mxu0 0
        %989 = vmatpush1.bf16.msra.mxu0 %v926
        %990 = vmatprep.subr.bf16.mxu0 0
        %991 = vmatpush1.bf16.msra.mxu0 %v927
        %992 = vmatprep.subr.bf16.mxu0 0
        %993 = vmatpush1.bf16.msra.mxu0 %v928
        %994 = vmatprep.subr.bf16.mxu0 0
        %995 = vmatpush1.bf16.msra.mxu0 0
        %996 = vmatprep.subr.bf16.mxu0 0
        %997 = vmatpush1.bf16.msra.mxu0 0
        %998 = vmatprep.subr.bf16.mxu0 0
        %999 = vmatpush1.bf16.msra.mxu0 0
        %1000 = vmatprep.subr.bf16.mxu0 0
        %1001 = vmatpush1.bf16.msra.mxu0 0
        %1002 = vmatprep.subr.bf16.mxu0 0
        %1003 = vmatpush1.bf16.msra.mxu0 0
        %1004 = vmatprep.subr.bf16.mxu0 0
        %1005 = vmatpush1.bf16.msra.mxu0 0
        %1006 = vmatprep.subr.bf16.mxu0 0
        %1007 = vmatpush1.bf16.msra.mxu0 0
        %1008 = vmatprep.subr.bf16.mxu0 0
        %1009 = vmatpush1.bf16.msra.mxu0 0
        %1010 = vmatprep.subr.bf16.mxu0 0
        %1011 = vmatpush1.bf16.msra.mxu0 0
        %1012 = vmatprep.subr.bf16.mxu0 0
        %1013 = vmatpush1.bf16.msra.mxu0 0
        %1014 = vmatprep.subr.bf16.mxu0 0
        %1015 = vmatpush1.bf16.msra.mxu0 0
        %1016 = vmatprep.subr.bf16.mxu0 0
        %1017 = vmatpush1.bf16.msra.mxu0 0
        %1018 = vmatprep.mubr.bf16.mxu0 0
        %1019 = vmatmul.mubr.bf16.gmra.mrb[0].mxu0 %v984
        %v1020 = vpop.f32.mrb[0].mxu0
        %v1021 = vadd.f32 %v902, %v1020
        %v1022 = vpop.f32.mrb[0].mxu0
        %v1023 = vpop.f32.mrb[0].mxu0
        %v1024 = vadd.f32 %v902, %v1023
        %v1025 = vpop.f32.mrb[0].mxu0
        %1026 = vdwg.mxu0
        %v1029 = vunpack.c.l.b16 %v869
        %v1030 = vunpack.c.l.b16 %v870
        %v1031 = vpack.c.b16 %v1030, %v1029
        %v1033 = vsel %vm933, %v1031, 0
        %1035 = vmatprep.subr.bf16.mxu0 0
        %1036 = vmatpush1.bf16.msra.mxu0 %v925
        %1037 = vmatprep.subr.bf16.mxu0 0
        %1038 = vmatpush1.bf16.msra.mxu0 %v926
        %1039 = vmatprep.subr.bf16.mxu0 0
        %1040 = vmatpush1.bf16.msra.mxu0 %v927
        %1041 = vmatprep.subr.bf16.mxu0 0
        %1042 = vmatpush1.bf16.msra.mxu0 %v928
        %1043 = vmatprep.subr.bf16.mxu0 0
        %1044 = vmatpush1.bf16.msra.mxu0 0
        %1045 = vmatprep.subr.bf16.mxu0 0
        %1046 = vmatpush1.bf16.msra.mxu0 0
        %1047 = vmatprep.subr.bf16.mxu0 0
        %1048 = vmatpush1.bf16.msra.mxu0 0
        %1049 = vmatprep.subr.bf16.mxu0 0
        %1050 = vmatpush1.bf16.msra.mxu0 0
        %1051 = vmatprep.subr.bf16.mxu0 0
        %1052 = vmatpush1.bf16.msra.mxu0 0
        %1053 = vmatprep.subr.bf16.mxu0 0
        %1054 = vmatpush1.bf16.msra.mxu0 0
        %1055 = vmatprep.subr.bf16.mxu0 0
        %1056 = vmatpush1.bf16.msra.mxu0 0
        %1057 = vmatprep.subr.bf16.mxu0 0
        %1058 = vmatpush1.bf16.msra.mxu0 0
        %1059 = vmatprep.subr.bf16.mxu0 0
        %1060 = vmatpush1.bf16.msra.mxu0 0
        %1061 = vmatprep.subr.bf16.mxu0 0
        %1062 = vmatpush1.bf16.msra.mxu0 0
        %1063 = vmatprep.subr.bf16.mxu0 0
        %1064 = vmatpush1.bf16.msra.mxu0 0
        %1065 = vmatprep.subr.bf16.mxu0 0
        %1066 = vmatpush1.bf16.msra.mxu0 0
        %1067 = vmatprep.mubr.bf16.mxu0 0
        %1068 = vmatmul.mubr.bf16.gmra.mrb[0].mxu0 %v1033
        %v1069 = vpop.f32.mrb[0].mxu0
        %v1070 = vadd.f32 %v902, %v1069
        %v1071 = vpop.f32.mrb[0].mxu0
        %v1072 = vpop.f32.mrb[0].mxu0
        %v1073 = vadd.f32 %v902, %v1072
        %v1074 = vpop.f32.mrb[0].mxu0
        %1075 = vdwg.mxu0
        %v1077 = vlaneseq
        %v1078 = vshrl.u32 %v1077, 7
        %v1079 = vsub.s32 0, %v1078
        %v1080 = vrot.slane %v896, %v1079
        %v1090 = vunpack.c.l.b16 %v879
        %v1091 = vunpack.c.l.b16 %v880
        %v1092 = vunpack.c.l.b16 %v881
        %v1093 = vunpack.c.l.b16 %v882
        %v1094 = vunpack.c.l.b16 %v883
        %v1095 = vunpack.c.l.b16 %v884
        %v1096 = vunpack.c.l.b16 %v885
        %v1097 = vunpack.c.l.b16 %v886
        %v1098 = vpack.c.b16 %v1091, %v1090
        %v1099 = vpack.c.b16 %v1093, %v1092
        %v1100 = vpack.c.b16 %v1095, %v1094
        %v1101 = vpack.c.b16 %v1097, %v1096
        %1106 = vmatprep.subr.bf16.mxu0 0
        %1107 = vmatpush1.bf16.msra.mxu0 %v1098
        %1108 = vmatprep.subr.bf16.mxu0 0
        %1109 = vmatpush1.bf16.msra.mxu0 %v1099
        %1110 = vmatprep.subr.bf16.mxu0 0
        %1111 = vmatpush1.bf16.msra.mxu0 %v1100
        %1112 = vmatprep.subr.bf16.mxu0 0
        %1113 = vmatpush1.bf16.msra.mxu0 %v1101
        %1114 = vmatprep.subr.bf16.mxu0 0
        %1115 = vmatpush1.bf16.msra.mxu0 0
        %1116 = vmatprep.subr.bf16.mxu0 0
        %1117 = vmatpush1.bf16.msra.mxu0 0
        %1118 = vmatprep.subr.bf16.mxu0 0
        %1119 = vmatpush1.bf16.msra.mxu0 0
        %1120 = vmatprep.subr.bf16.mxu0 0
        %1121 = vmatpush1.bf16.msra.mxu0 0
        %1122 = vmatprep.subr.bf16.mxu0 0
        %1123 = vmatpush1.bf16.msra.mxu0 0
        %1124 = vmatprep.subr.bf16.mxu0 0
        %1125 = vmatpush1.bf16.msra.mxu0 0
        %1126 = vmatprep.subr.bf16.mxu0 0
        %1127 = vmatpush1.bf16.msra.mxu0 0
        %1128 = vmatprep.subr.bf16.mxu0 0
        %1129 = vmatpush1.bf16.msra.mxu0 0
        %1130 = vmatprep.subr.bf16.mxu0 0
        %1131 = vmatpush1.bf16.msra.mxu0 0
        %1132 = vmatprep.subr.bf16.mxu0 0
        %1133 = vmatpush1.bf16.msra.mxu0 0
        %1134 = vmatprep.subr.bf16.mxu0 0
        %1135 = vmatpush1.bf16.msra.mxu0 0
        %1136 = vmatprep.subr.bf16.mxu0 0
        %1137 = vmatpush1.bf16.msra.mxu0 0
        %1138 = vmatprep.mubr.bf16.mxu0 0
        %1139 = vmatmul.mubr.bf16.gmra.mrb[0].mxu0 %v935
        %v1140 = vpop.f32.mrb[0].mxu0
        %v1141 = vadd.f32 %v1080, %v1140
        %v1142 = vpop.f32.mrb[0].mxu0
        %v1143 = vpop.f32.mrb[0].mxu0
        %v1144 = vadd.f32 %v1080, %v1143
        %v1145 = vpop.f32.mrb[0].mxu0
        %1146 = vdwg.mxu0
        %1147 = vmatprep.subr.bf16.mxu0 0
        %1148 = vmatpush1.bf16.msra.mxu0 %v1098
        %1149 = vmatprep.subr.bf16.mxu0 0
        %1150 = vmatpush1.bf16.msra.mxu0 %v1099
        %1151 = vmatprep.subr.bf16.mxu0 0
        %1152 = vmatpush1.bf16.msra.mxu0 %v1100
        %1153 = vmatprep.subr.bf16.mxu0 0
        %1154 = vmatpush1.bf16.msra.mxu0 %v1101
        %1155 = vmatprep.subr.bf16.mxu0 0
        %1156 = vmatpush1.bf16.msra.mxu0 0
        %1157 = vmatprep.subr.bf16.mxu0 0
        %1158 = vmatpush1.bf16.msra.mxu0 0
        %1159 = vmatprep.subr.bf16.mxu0 0
        %1160 = vmatpush1.bf16.msra.mxu0 0
        %1161 = vmatprep.subr.bf16.mxu0 0
        %1162 = vmatpush1.bf16.msra.mxu0 0
        %1163 = vmatprep.subr.bf16.mxu0 0
        %1164 = vmatpush1.bf16.msra.mxu0 0
        %1165 = vmatprep.subr.bf16.mxu0 0
        %1166 = vmatpush1.bf16.msra.mxu0 0
        %1167 = vmatprep.subr.bf16.mxu0 0
        %1168 = vmatpush1.bf16.msra.mxu0 0
        %1169 = vmatprep.subr.bf16.mxu0 0
        %1170 = vmatpush1.bf16.msra.mxu0 0
        %1171 = vmatprep.subr.bf16.mxu0 0
        %1172 = vmatpush1.bf16.msra.mxu0 0
        %1173 = vmatprep.subr.bf16.mxu0 0
        %1174 = vmatpush1.bf16.msra.mxu0 0
        %1175 = vmatprep.subr.bf16.mxu0 0
        %1176 = vmatpush1.bf16.msra.mxu0 0
        %1177 = vmatprep.subr.bf16.mxu0 0
        %1178 = vmatpush1.bf16.msra.mxu0 0
        %1179 = vmatprep.mubr.bf16.mxu0 0
        %1180 = vmatmul.mubr.bf16.gmra.mrb[0].mxu0 %v984
        %v1181 = vpop.f32.mrb[0].mxu0
        %v1182 = vadd.f32 %v1080, %v1181
        %v1183 = vpop.f32.mrb[0].mxu0
        %v1184 = vpop.f32.mrb[0].mxu0
        %v1185 = vadd.f32 %v1080, %v1184
        %v1186 = vpop.f32.mrb[0].mxu0
        %1187 = vdwg.mxu0
        %1188 = vmatprep.subr.bf16.mxu0 0
        %1189 = vmatpush1.bf16.msra.mxu0 %v1098
        %1190 = vmatprep.subr.bf16.mxu0 0
        %1191 = vmatpush1.bf16.msra.mxu0 %v1099
        %1192 = vmatprep.subr.bf16.mxu0 0
        %1193 = vmatpush1.bf16.msra.mxu0 %v1100
        %1194 = vmatprep.subr.bf16.mxu0 0
        %1195 = vmatpush1.bf16.msra.mxu0 %v1101
        %1196 = vmatprep.subr.bf16.mxu0 0
        %1197 = vmatpush1.bf16.msra.mxu0 0
        %1198 = vmatprep.subr.bf16.mxu0 0
        %1199 = vmatpush1.bf16.msra.mxu0 0
        %1200 = vmatprep.subr.bf16.mxu0 0
        %1201 = vmatpush1.bf16.msra.mxu0 0
        %1202 = vmatprep.subr.bf16.mxu0 0
        %1203 = vmatpush1.bf16.msra.mxu0 0
        %1204 = vmatprep.subr.bf16.mxu0 0
        %1205 = vmatpush1.bf16.msra.mxu0 0
        %1206 = vmatprep.subr.bf16.mxu0 0
        %1207 = vmatpush1.bf16.msra.mxu0 0
        %1208 = vmatprep.subr.bf16.mxu0 0
        %1209 = vmatpush1.bf16.msra.mxu0 0
        %1210 = vmatprep.subr.bf16.mxu0 0
        %1211 = vmatpush1.bf16.msra.mxu0 0
        %1212 = vmatprep.subr.bf16.mxu0 0
        %1213 = vmatpush1.bf16.msra.mxu0 0
        %1214 = vmatprep.subr.bf16.mxu0 0
        %1215 = vmatpush1.bf16.msra.mxu0 0
        %1216 = vmatprep.subr.bf16.mxu0 0
        %1217 = vmatpush1.bf16.msra.mxu0 0
        %1218 = vmatprep.subr.bf16.mxu0 0
        %1219 = vmatpush1.bf16.msra.mxu0 0
        %1220 = vmatprep.mubr.bf16.mxu0 0
        %1221 = vmatmul.mubr.bf16.gmra.mrb[0].mxu0 %v1033
        %v1222 = vpop.f32.mrb[0].mxu0
        %v1223 = vadd.f32 %v1080, %v1222
        %v1224 = vpop.f32.mrb[0].mxu0
        %v1225 = vpop.f32.mrb[0].mxu0
        %v1226 = vadd.f32 %v1080, %v1225
        %v1227 = vpop.f32.mrb[0].mxu0
        %1228 = vdwg.mxu0
        %v1230 = vlaneseq
        %v1231 = vshrl.u32 %v1230, 7
        %v1232 = vsub.s32 0, %v1231
        %v1233 = vrot.slane %v897, %v1232
        %v1243 = vunpack.c.l.b16 %v887
        %v1244 = vunpack.c.l.b16 %v888
        %v1245 = vunpack.c.l.b16 %v889
        %v1246 = vunpack.c.l.b16 %v890
        %v1247 = vunpack.c.l.b16 %v891
        %v1248 = vunpack.c.l.b16 %v892
        %v1249 = vunpack.c.l.b16 %v893
        %v1250 = vunpack.c.l.b16 %v894
        %v1251 = vpack.c.b16 %v1244, %v1243
        %v1252 = vpack.c.b16 %v1246, %v1245
        %v1253 = vpack.c.b16 %v1248, %v1247
        %v1254 = vpack.c.b16 %v1250, %v1249
        %1259 = vmatprep.subr.bf16.mxu0 0
        %1260 = vmatpush1.bf16.msra.mxu0 %v1251
        %1261 = vmatprep.subr.bf16.mxu0 0
        %1262 = vmatpush1.bf16.msra.mxu0 %v1252
        %1263 = vmatprep.subr.bf16.mxu0 0
        %1264 = vmatpush1.bf16.msra.mxu0 %v1253
        %1265 = vmatprep.subr.bf16.mxu0 0
        %1266 = vmatpush1.bf16.msra.mxu0 %v1254
        %1267 = vmatprep.subr.bf16.mxu0 0
        %1268 = vmatpush1.bf16.msra.mxu0 0
        %1269 = vmatprep.subr.bf16.mxu0 0
        %1270 = vmatpush1.bf16.msra.mxu0 0
        %1271 = vmatprep.subr.bf16.mxu0 0
        %1272 = vmatpush1.bf16.msra.mxu0 0
        %1273 = vmatprep.subr.bf16.mxu0 0
        %1274 = vmatpush1.bf16.msra.mxu0 0
        %1275 = vmatprep.subr.bf16.mxu0 0
        %1276 = vmatpush1.bf16.msra.mxu0 0
        %1277 = vmatprep.subr.bf16.mxu0 0
        %1278 = vmatpush1.bf16.msra.mxu0 0
        %1279 = vmatprep.subr.bf16.mxu0 0
        %1280 = vmatpush1.bf16.msra.mxu0 0
        %1281 = vmatprep.subr.bf16.mxu0 0
        %1282 = vmatpush1.bf16.msra.mxu0 0
        %1283 = vmatprep.subr.bf16.mxu0 0
        %1284 = vmatpush1.bf16.msra.mxu0 0
        %1285 = vmatprep.subr.bf16.mxu0 0
        %1286 = vmatpush1.bf16.msra.mxu0 0
        %1287 = vmatprep.subr.bf16.mxu0 0
        %1288 = vmatpush1.bf16.msra.mxu0 0
        %1289 = vmatprep.subr.bf16.mxu0 0
        %1290 = vmatpush1.bf16.msra.mxu0 0
        %1291 = vmatprep.mubr.bf16.mxu0 0
        %1292 = vmatmul.mubr.bf16.gmra.mrb[0].mxu0 %v935
        %v1293 = vpop.f32.mrb[0].mxu0
        %v1294 = vadd.f32 %v1233, %v1293
        %v1295 = vpop.f32.mrb[0].mxu0
        %v1296 = vpop.f32.mrb[0].mxu0
        %v1297 = vadd.f32 %v1233, %v1296
        %v1298 = vpop.f32.mrb[0].mxu0
        %1299 = vdwg.mxu0
        %1300 = vmatprep.subr.bf16.mxu0 0
        %1301 = vmatpush1.bf16.msra.mxu0 %v1251
        %1302 = vmatprep.subr.bf16.mxu0 0
        %1303 = vmatpush1.bf16.msra.mxu0 %v1252
        %1304 = vmatprep.subr.bf16.mxu0 0
        %1305 = vmatpush1.bf16.msra.mxu0 %v1253
        %1306 = vmatprep.subr.bf16.mxu0 0
        %1307 = vmatpush1.bf16.msra.mxu0 %v1254
        %1308 = vmatprep.subr.bf16.mxu0 0
        %1309 = vmatpush1.bf16.msra.mxu0 0
        %1310 = vmatprep.subr.bf16.mxu0 0
        %1311 = vmatpush1.bf16.msra.mxu0 0
        %1312 = vmatprep.subr.bf16.mxu0 0
        %1313 = vmatpush1.bf16.msra.mxu0 0
        %1314 = vmatprep.subr.bf16.mxu0 0
        %1315 = vmatpush1.bf16.msra.mxu0 0
        %1316 = vmatprep.subr.bf16.mxu0 0
        %1317 = vmatpush1.bf16.msra.mxu0 0
        %1318 = vmatprep.subr.bf16.mxu0 0
        %1319 = vmatpush1.bf16.msra.mxu0 0
        %1320 = vmatprep.subr.bf16.mxu0 0
        %1321 = vmatpush1.bf16.msra.mxu0 0
        %1322 = vmatprep.subr.bf16.mxu0 0
        %1323 = vmatpush1.bf16.msra.mxu0 0
        %1324 = vmatprep.subr.bf16.mxu0 0
        %1325 = vmatpush1.bf16.msra.mxu0 0
        %1326 = vmatprep.subr.bf16.mxu0 0
        %1327 = vmatpush1.bf16.msra.mxu0 0
        %1328 = vmatprep.subr.bf16.mxu0 0
        %1329 = vmatpush1.bf16.msra.mxu0 0
        %1330 = vmatprep.subr.bf16.mxu0 0
        %1331 = vmatpush1.bf16.msra.mxu0 0
        %1332 = vmatprep.mubr.bf16.mxu0 0
        %1333 = vmatmul.mubr.bf16.gmra.mrb[0].mxu0 %v984
        %v1334 = vpop.f32.mrb[0].mxu0
        %v1335 = vadd.f32 %v1233, %v1334
        %v1336 = vpop.f32.mrb[0].mxu0
        %v1337 = vpop.f32.mrb[0].mxu0
        %v1338 = vadd.f32 %v1233, %v1337
        %v1339 = vpop.f32.mrb[0].mxu0
        %1340 = vdwg.mxu0
        %1341 = vmatprep.subr.bf16.mxu0 0
        %1342 = vmatpush1.bf16.msra.mxu0 %v1251
        %1343 = vmatprep.subr.bf16.mxu0 0
        %1344 = vmatpush1.bf16.msra.mxu0 %v1252
        %1345 = vmatprep.subr.bf16.mxu0 0
        %1346 = vmatpush1.bf16.msra.mxu0 %v1253
        %1347 = vmatprep.subr.bf16.mxu0 0
        %1348 = vmatpush1.bf16.msra.mxu0 %v1254
        %1349 = vmatprep.subr.bf16.mxu0 0
        %1350 = vmatpush1.bf16.msra.mxu0 0
        %1351 = vmatprep.subr.bf16.mxu0 0
        %1352 = vmatpush1.bf16.msra.mxu0 0
        %1353 = vmatprep.subr.bf16.mxu0 0
        %1354 = vmatpush1.bf16.msra.mxu0 0
        %1355 = vmatprep.subr.bf16.mxu0 0
        %1356 = vmatpush1.bf16.msra.mxu0 0
        %1357 = vmatprep.subr.bf16.mxu0 0
        %1358 = vmatpush1.bf16.msra.mxu0 0
        %1359 = vmatprep.subr.bf16.mxu0 0
        %1360 = vmatpush1.bf16.msra.mxu0 0
        %1361 = vmatprep.subr.bf16.mxu0 0
        %1362 = vmatpush1.bf16.msra.mxu0 0
        %1363 = vmatprep.subr.bf16.mxu0 0
        %1364 = vmatpush1.bf16.msra.mxu0 0
        %1365 = vmatprep.subr.bf16.mxu0 0
        %1366 = vmatpush1.bf16.msra.mxu0 0
        %1367 = vmatprep.subr.bf16.mxu0 0
        %1368 = vmatpush1.bf16.msra.mxu0 0
        %1369 = vmatprep.subr.bf16.mxu0 0
        %1370 = vmatpush1.bf16.msra.mxu0 0
        %1371 = vmatprep.subr.bf16.mxu0 0
        %1372 = vmatpush1.bf16.msra.mxu0 0
        %1373 = vmatprep.mubr.bf16.mxu0 0
        %1374 = vmatmul.mubr.bf16.gmra.mrb[0].mxu0 %v1033
        %v1375 = vpop.f32.mrb[0].mxu0
        %v1376 = vadd.f32 %v1233, %v1375
        %v1377 = vpop.f32.mrb[0].mxu0
        %v1378 = vpop.f32.mrb[0].mxu0
        %v1379 = vadd.f32 %v1233, %v1378
        %v1380 = vpop.f32.mrb[0].mxu0
        %1381 = vdwg.mxu0
        %v1382 = vld [vmem:[%s9] sm:$0xf]
        %v1383 = vld [vmem:[%s9 + $0x4] sm:$0xf]
        %v1384 = vld [vmem:[%s9 + $0x8] sm:$0xf]
        %v1385 = vld [vmem:[%s9 + $0xc] sm:$0xf]
        %v1386 = vld [vmem:[%s9 + $0x10] sm:$0xf]
        %v1387 = vld [vmem:[%s9 + $0x14] sm:$0xf]
        %v1388 = vld [vmem:[%s9 + $0x18] sm:$0xf]
        %v1389 = vld [vmem:[%s9 + $0x1c] sm:$0xf]
        %v1390 = vld [vmem:[%s10] sm:$0xf]
        %v1391 = vmul.f32 %v972, %v1141
        %v1392 = vmul.f32 %v975, %v1144
        %v1393 = vpack.c.bf16 %v1392, %v1391
        %v1402 = vunpack.c.l.b16 %v1382
        %v1403 = vunpack.c.l.b16 %v1383
        %v1404 = vunpack.c.l.b16 %v1384
        %v1405 = vunpack.c.l.b16 %v1385
        %v1406 = vunpack.c.l.b16 %v1386
        %v1407 = vunpack.c.l.b16 %v1387
        %v1408 = vunpack.c.l.b16 %v1388
        %v1409 = vunpack.c.l.b16 %v1389
        %v1410 = vpack.c.b16 %v1403, %v1402
        %v1411 = vpack.c.b16 %v1405, %v1404
        %v1412 = vpack.c.b16 %v1407, %v1406
        %v1413 = vpack.c.b16 %v1409, %v1408
        %v1419 = vsel %vm933, %v1393, 0
        %1421 = vmatprep.subr.bf16.mxu0 0
        %1422 = vmatpush1.bf16.msra.mxu0 %v1410
        %1423 = vmatprep.subr.bf16.mxu0 0
        %1424 = vmatpush1.bf16.msra.mxu0 %v1411
        %1425 = vmatprep.subr.bf16.mxu0 0
        %1426 = vmatpush1.bf16.msra.mxu0 %v1412
        %1427 = vmatprep.subr.bf16.mxu0 0
        %1428 = vmatpush1.bf16.msra.mxu0 %v1413
        %1429 = vmatprep.subr.bf16.mxu0 0
        %1430 = vmatpush1.bf16.msra.mxu0 0
        %1431 = vmatprep.subr.bf16.mxu0 0
        %1432 = vmatpush1.bf16.msra.mxu0 0
        %1433 = vmatprep.subr.bf16.mxu0 0
        %1434 = vmatpush1.bf16.msra.mxu0 0
        %1435 = vmatprep.subr.bf16.mxu0 0
        %1436 = vmatpush1.bf16.msra.mxu0 0
        %1437 = vmatprep.subr.bf16.mxu0 0
        %1438 = vmatpush1.bf16.msra.mxu0 0
        %1439 = vmatprep.subr.bf16.mxu0 0
        %1440 = vmatpush1.bf16.msra.mxu0 0
        %1441 = vmatprep.subr.bf16.mxu0 0
        %1442 = vmatpush1.bf16.msra.mxu0 0
        %1443 = vmatprep.subr.bf16.mxu0 0
        %1444 = vmatpush1.bf16.msra.mxu0 0
        %1445 = vmatprep.subr.bf16.mxu0 0
        %1446 = vmatpush1.bf16.msra.mxu0 0
        %1447 = vmatprep.subr.bf16.mxu0 0
        %1448 = vmatpush1.bf16.msra.mxu0 0
        %1449 = vmatprep.subr.bf16.mxu0 0
        %1450 = vmatpush1.bf16.msra.mxu0 0
        %1451 = vmatprep.subr.bf16.mxu0 0
        %1452 = vmatpush1.bf16.msra.mxu0 0
        %1453 = vmatprep.mubr.bf16.mxu0 0
        %1454 = vmatmul.mubr.bf16.gmra.mrb[0].mxu0 %v1419
        %v1455 = vpop.f32.mrb[0].mxu0
        %v1456 = vadd.f32 0.0, %v1455
        %v1457 = vpop.f32.mrb[0].mxu0
        %v1458 = vpop.f32.mrb[0].mxu0
        %v1459 = vadd.f32 0.0, %v1458
        %v1460 = vpop.f32.mrb[0].mxu0
        %1461 = vdwg.mxu0
        %v1462 = vmul.f32 %v972, %v1182
        %v1463 = vmul.f32 %v975, %v1185
        %v1464 = vpack.c.bf16 %v1463, %v1462
        %v1466 = vsel %vm933, %v1464, 0
        %1468 = vmatprep.subr.bf16.mxu0 0
        %1469 = vmatpush1.bf16.msra.mxu0 %v1410
        %1470 = vmatprep.subr.bf16.mxu0 0
        %1471 = vmatpush1.bf16.msra.mxu0 %v1411
        %1472 = vmatprep.subr.bf16.mxu0 0
        %1473 = vmatpush1.bf16.msra.mxu0 %v1412
        %1474 = vmatprep.subr.bf16.mxu0 0
        %1475 = vmatpush1.bf16.msra.mxu0 %v1413
        %1476 = vmatprep.subr.bf16.mxu0 0
        %1477 = vmatpush1.bf16.msra.mxu0 0
        %1478 = vmatprep.subr.bf16.mxu0 0
        %1479 = vmatpush1.bf16.msra.mxu0 0
        %1480 = vmatprep.subr.bf16.mxu0 0
        %1481 = vmatpush1.bf16.msra.mxu0 0
        %1482 = vmatprep.subr.bf16.mxu0 0
        %1483 = vmatpush1.bf16.msra.mxu0 0
        %1484 = vmatprep.subr.bf16.mxu0 0
        %1485 = vmatpush1.bf16.msra.mxu0 0
        %1486 = vmatprep.subr.bf16.mxu0 0
        %1487 = vmatpush1.bf16.msra.mxu0 0
        %1488 = vmatprep.subr.bf16.mxu0 0
        %1489 = vmatpush1.bf16.msra.mxu0 0
        %1490 = vmatprep.subr.bf16.mxu0 0
        %1491 = vmatpush1.bf16.msra.mxu0 0
        %1492 = vmatprep.subr.bf16.mxu0 0
        %1493 = vmatpush1.bf16.msra.mxu0 0
        %1494 = vmatprep.subr.bf16.mxu0 0
        %1495 = vmatpush1.bf16.msra.mxu0 0
        %1496 = vmatprep.subr.bf16.mxu0 0
        %1497 = vmatpush1.bf16.msra.mxu0 0
        %1498 = vmatprep.subr.bf16.mxu0 0
        %1499 = vmatpush1.bf16.msra.mxu0 0
        %1500 = vmatprep.mubr.bf16.mxu0 0
        %1501 = vmatmul.mubr.bf16.gmra.mrb[0].mxu0 %v1466
        %v1502 = vpop.f32.mrb[0].mxu0
        %v1503 = vadd.f32 0.0, %v1502
        %v1504 = vpop.f32.mrb[0].mxu0
        %v1505 = vpop.f32.mrb[0].mxu0
        %v1506 = vadd.f32 0.0, %v1505
        %v1507 = vpop.f32.mrb[0].mxu0
        %1508 = vdwg.mxu0
        %v1509 = vmul.f32 %v972, %v1223
        %v1510 = vmul.f32 %v975, %v1226
        %v1511 = vpack.c.bf16 %v1510, %v1509
        %v1513 = vsel %vm933, %v1511, 0
        %1515 = vmatprep.subr.bf16.mxu0 0
        %1516 = vmatpush1.bf16.msra.mxu0 %v1410
        %1517 = vmatprep.subr.bf16.mxu0 0
        %1518 = vmatpush1.bf16.msra.mxu0 %v1411
        %1519 = vmatprep.subr.bf16.mxu0 0
        %1520 = vmatpush1.bf16.msra.mxu0 %v1412
        %1521 = vmatprep.subr.bf16.mxu0 0
        %1522 = vmatpush1.bf16.msra.mxu0 %v1413
        %1523 = vmatprep.subr.bf16.mxu0 0
        %1524 = vmatpush1.bf16.msra.mxu0 0
        %1525 = vmatprep.subr.bf16.mxu0 0
        %1526 = vmatpush1.bf16.msra.mxu0 0
        %1527 = vmatprep.subr.bf16.mxu0 0
        %1528 = vmatpush1.bf16.msra.mxu0 0
        %1529 = vmatprep.subr.bf16.mxu0 0
        %1530 = vmatpush1.bf16.msra.mxu0 0
        %1531 = vmatprep.subr.bf16.mxu0 0
        %1532 = vmatpush1.bf16.msra.mxu0 0
        %1533 = vmatprep.subr.bf16.mxu0 0
        %1534 = vmatpush1.bf16.msra.mxu0 0
        %1535 = vmatprep.subr.bf16.mxu0 0
        %1536 = vmatpush1.bf16.msra.mxu0 0
        %1537 = vmatprep.subr.bf16.mxu0 0
        %1538 = vmatpush1.bf16.msra.mxu0 0
        %1539 = vmatprep.subr.bf16.mxu0 0
        %1540 = vmatpush1.bf16.msra.mxu0 0
        %1541 = vmatprep.subr.bf16.mxu0 0
        %1542 = vmatpush1.bf16.msra.mxu0 0
        %1543 = vmatprep.subr.bf16.mxu0 0
        %1544 = vmatpush1.bf16.msra.mxu0 0
        %1545 = vmatprep.subr.bf16.mxu0 0
        %1546 = vmatpush1.bf16.msra.mxu0 0
        %1547 = vmatprep.mubr.bf16.mxu0 0
        %1548 = vmatmul.mubr.bf16.gmra.mrb[0].mxu0 %v1513
        %v1549 = vpop.f32.mrb[0].mxu0
        %v1550 = vadd.f32 0.0, %v1549
        %v1551 = vpop.f32.mrb[0].mxu0
        %v1552 = vpop.f32.mrb[0].mxu0
        %v1553 = vadd.f32 0.0, %v1552
        %v1554 = vpop.f32.mrb[0].mxu0
        %1555 = vdwg.mxu0
        %v1556 = vmul.f32 %v1021, %v1141
        %v1557 = vmul.f32 %v1024, %v1144
        %v1558 = vpack.c.bf16 %v1557, %v1556
        %v1560 = vsel %vm933, %v1558, 0
        %1562 = vmatprep.subr.bf16.mxu0 0
        %1563 = vmatpush1.bf16.msra.mxu0 %v1410
        %1564 = vmatprep.subr.bf16.mxu0 0
        %1565 = vmatpush1.bf16.msra.mxu0 %v1411
        %1566 = vmatprep.subr.bf16.mxu0 0
        %1567 = vmatpush1.bf16.msra.mxu0 %v1412
        %1568 = vmatprep.subr.bf16.mxu0 0
        %1569 = vmatpush1.bf16.msra.mxu0 %v1413
        %1570 = vmatprep.subr.bf16.mxu0 0
        %1571 = vmatpush1.bf16.msra.mxu0 0
        %1572 = vmatprep.subr.bf16.mxu0 0
        %1573 = vmatpush1.bf16.msra.mxu0 0
        %1574 = vmatprep.subr.bf16.mxu0 0
        %1575 = vmatpush1.bf16.msra.mxu0 0
        %1576 = vmatprep.subr.bf16.mxu0 0
        %1577 = vmatpush1.bf16.msra.mxu0 0
        %1578 = vmatprep.subr.bf16.mxu0 0
        %1579 = vmatpush1.bf16.msra.mxu0 0
        %1580 = vmatprep.subr.bf16.mxu0 0
        %1581 = vmatpush1.bf16.msra.mxu0 0
        %1582 = vmatprep.subr.bf16.mxu0 0
        %1583 = vmatpush1.bf16.msra.mxu0 0
        %1584 = vmatprep.subr.bf16.mxu0 0
        %1585 = vmatpush1.bf16.msra.mxu0 0
        %1586 = vmatprep.subr.bf16.mxu0 0
        %1587 = vmatpush1.bf16.msra.mxu0 0
        %1588 = vmatprep.subr.bf16.mxu0 0
        %1589 = vmatpush1.bf16.msra.mxu0 0
        %1590 = vmatprep.subr.bf16.mxu0 0
        %1591 = vmatpush1.bf16.msra.mxu0 0
        %1592 = vmatprep.subr.bf16.mxu0 0
        %1593 = vmatpush1.bf16.msra.mxu0 0
        %1594 = vmatprep.mubr.bf16.mxu0 0
        %1595 = vmatmul.mubr.bf16.gmra.mrb[0].mxu0 %v1560
        %v1596 = vpop.f32.mrb[0].mxu0
        %v1597 = vadd.f32 0.0, %v1596
        %v1598 = vpop.f32.mrb[0].mxu0
        %v1599 = vpop.f32.mrb[0].mxu0
        %v1600 = vadd.f32 0.0, %v1599
        %v1601 = vpop.f32.mrb[0].mxu0
        %1602 = vdwg.mxu0
        %v1603 = vmul.f32 %v1021, %v1182
        %v1604 = vmul.f32 %v1024, %v1185
        %v1605 = vpack.c.bf16 %v1604, %v1603
        %v1607 = vsel %vm933, %v1605, 0
        %1609 = vmatprep.subr.bf16.mxu0 0
        %1610 = vmatpush1.bf16.msra.mxu0 %v1410
        %1611 = vmatprep.subr.bf16.mxu0 0
        %1612 = vmatpush1.bf16.msra.mxu0 %v1411
        %1613 = vmatprep.subr.bf16.mxu0 0
        %1614 = vmatpush1.bf16.msra.mxu0 %v1412
        %1615 = vmatprep.subr.bf16.mxu0 0
        %1616 = vmatpush1.bf16.msra.mxu0 %v1413
        %1617 = vmatprep.subr.bf16.mxu0 0
        %1618 = vmatpush1.bf16.msra.mxu0 0
        %1619 = vmatprep.subr.bf16.mxu0 0
        %1620 = vmatpush1.bf16.msra.mxu0 0
        %1621 = vmatprep.subr.bf16.mxu0 0
        %1622 = vmatpush1.bf16.msra.mxu0 0
        %1623 = vmatprep.subr.bf16.mxu0 0
        %1624 = vmatpush1.bf16.msra.mxu0 0
        %1625 = vmatprep.subr.bf16.mxu0 0
        %1626 = vmatpush1.bf16.msra.mxu0 0
        %1627 = vmatprep.subr.bf16.mxu0 0
        %1628 = vmatpush1.bf16.msra.mxu0 0
        %1629 = vmatprep.subr.bf16.mxu0 0
        %1630 = vmatpush1.bf16.msra.mxu0 0
        %1631 = vmatprep.subr.bf16.mxu0 0
        %1632 = vmatpush1.bf16.msra.mxu0 0
        %1633 = vmatprep.subr.bf16.mxu0 0
        %1634 = vmatpush1.bf16.msra.mxu0 0
        %1635 = vmatprep.subr.bf16.mxu0 0
        %1636 = vmatpush1.bf16.msra.mxu0 0
        %1637 = vmatprep.subr.bf16.mxu0 0
        %1638 = vmatpush1.bf16.msra.mxu0 0
        %1639 = vmatprep.subr.bf16.mxu0 0
        %1640 = vmatpush1.bf16.msra.mxu0 0
        %1641 = vmatprep.mubr.bf16.mxu0 0
        %1642 = vmatmul.mubr.bf16.gmra.mrb[0].mxu0 %v1607
        %v1643 = vpop.f32.mrb[0].mxu0
        %v1644 = vadd.f32 0.0, %v1643
        %v1645 = vpop.f32.mrb[0].mxu0
        %v1646 = vpop.f32.mrb[0].mxu0
        %v1647 = vadd.f32 0.0, %v1646
        %v1648 = vpop.f32.mrb[0].mxu0
        %1649 = vdwg.mxu0
        %v1650 = vmul.f32 %v1021, %v1223
        %v1651 = vmul.f32 %v1024, %v1226
        %v1652 = vpack.c.bf16 %v1651, %v1650
        %v1654 = vsel %vm933, %v1652, 0
        %1656 = vmatprep.subr.bf16.mxu0 0
        %1657 = vmatpush1.bf16.msra.mxu0 %v1410
        %1658 = vmatprep.subr.bf16.mxu0 0
        %1659 = vmatpush1.bf16.msra.mxu0 %v1411
        %1660 = vmatprep.subr.bf16.mxu0 0
        %1661 = vmatpush1.bf16.msra.mxu0 %v1412
        %1662 = vmatprep.subr.bf16.mxu0 0
        %1663 = vmatpush1.bf16.msra.mxu0 %v1413
        %1664 = vmatprep.subr.bf16.mxu0 0
        %1665 = vmatpush1.bf16.msra.mxu0 0
        %1666 = vmatprep.subr.bf16.mxu0 0
        %1667 = vmatpush1.bf16.msra.mxu0 0
        %1668 = vmatprep.subr.bf16.mxu0 0
        %1669 = vmatpush1.bf16.msra.mxu0 0
        %1670 = vmatprep.subr.bf16.mxu0 0
        %1671 = vmatpush1.bf16.msra.mxu0 0
        %1672 = vmatprep.subr.bf16.mxu0 0
        %1673 = vmatpush1.bf16.msra.mxu0 0
        %1674 = vmatprep.subr.bf16.mxu0 0
        %1675 = vmatpush1.bf16.msra.mxu0 0
        %1676 = vmatprep.subr.bf16.mxu0 0
        %1677 = vmatpush1.bf16.msra.mxu0 0
        %1678 = vmatprep.subr.bf16.mxu0 0
        %1679 = vmatpush1.bf16.msra.mxu0 0
        %1680 = vmatprep.subr.bf16.mxu0 0
        %1681 = vmatpush1.bf16.msra.mxu0 0
        %1682 = vmatprep.subr.bf16.mxu0 0
        %1683 = vmatpush1.bf16.msra.mxu0 0
        %1684 = vmatprep.subr.bf16.mxu0 0
        %1685 = vmatpush1.bf16.msra.mxu0 0
        %1686 = vmatprep.subr.bf16.mxu0 0
        %1687 = vmatpush1.bf16.msra.mxu0 0
        %1688 = vmatprep.mubr.bf16.mxu0 0
        %1689 = vmatmul.mubr.bf16.gmra.mrb[0].mxu0 %v1654
        %v1690 = vpop.f32.mrb[0].mxu0
        %v1691 = vadd.f32 0.0, %v1690
        %v1692 = vpop.f32.mrb[0].mxu0
        %v1693 = vpop.f32.mrb[0].mxu0
        %v1694 = vadd.f32 0.0, %v1693
        %v1695 = vpop.f32.mrb[0].mxu0
        %1696 = vdwg.mxu0
        %v1697 = vmul.f32 %v1070, %v1141
        %v1698 = vmul.f32 %v1073, %v1144
        %v1699 = vpack.c.bf16 %v1698, %v1697
        %v1701 = vsel %vm933, %v1699, 0
        %1703 = vmatprep.subr.bf16.mxu0 0
        %1704 = vmatpush1.bf16.msra.mxu0 %v1410
        %1705 = vmatprep.subr.bf16.mxu0 0
        %1706 = vmatpush1.bf16.msra.mxu0 %v1411
        %1707 = vmatprep.subr.bf16.mxu0 0
        %1708 = vmatpush1.bf16.msra.mxu0 %v1412
        %1709 = vmatprep.subr.bf16.mxu0 0
        %1710 = vmatpush1.bf16.msra.mxu0 %v1413
        %1711 = vmatprep.subr.bf16.mxu0 0
        %1712 = vmatpush1.bf16.msra.mxu0 0
        %1713 = vmatprep.subr.bf16.mxu0 0
        %1714 = vmatpush1.bf16.msra.mxu0 0
        %1715 = vmatprep.subr.bf16.mxu0 0
        %1716 = vmatpush1.bf16.msra.mxu0 0
        %1717 = vmatprep.subr.bf16.mxu0 0
        %1718 = vmatpush1.bf16.msra.mxu0 0
        %1719 = vmatprep.subr.bf16.mxu0 0
        %1720 = vmatpush1.bf16.msra.mxu0 0
        %1721 = vmatprep.subr.bf16.mxu0 0
        %1722 = vmatpush1.bf16.msra.mxu0 0
        %1723 = vmatprep.subr.bf16.mxu0 0
        %1724 = vmatpush1.bf16.msra.mxu0 0
        %1725 = vmatprep.subr.bf16.mxu0 0
        %1726 = vmatpush1.bf16.msra.mxu0 0
        %1727 = vmatprep.subr.bf16.mxu0 0
        %1728 = vmatpush1.bf16.msra.mxu0 0
        %1729 = vmatprep.subr.bf16.mxu0 0
        %1730 = vmatpush1.bf16.msra.mxu0 0
        %1731 = vmatprep.subr.bf16.mxu0 0
        %1732 = vmatpush1.bf16.msra.mxu0 0
        %1733 = vmatprep.subr.bf16.mxu0 0
        %1734 = vmatpush1.bf16.msra.mxu0 0
        %1735 = vmatprep.mubr.bf16.mxu0 0
        %1736 = vmatmul.mubr.bf16.gmra.mrb[0].mxu0 %v1701
        %v1737 = vpop.f32.mrb[0].mxu0
        %v1738 = vadd.f32 0.0, %v1737
        %v1739 = vpop.f32.mrb[0].mxu0
        %v1740 = vpop.f32.mrb[0].mxu0
        %v1741 = vadd.f32 0.0, %v1740
        %v1742 = vpop.f32.mrb[0].mxu0
        %1743 = vdwg.mxu0
        %v1744 = vmul.f32 %v1070, %v1182
        %v1745 = vmul.f32 %v1073, %v1185
        %v1746 = vpack.c.bf16 %v1745, %v1744
        %v1748 = vsel %vm933, %v1746, 0
        %1750 = vmatprep.subr.bf16.mxu0 0
        %1751 = vmatpush1.bf16.msra.mxu0 %v1410
        %1752 = vmatprep.subr.bf16.mxu0 0
        %1753 = vmatpush1.bf16.msra.mxu0 %v1411
        %1754 = vmatprep.subr.bf16.mxu0 0
        %1755 = vmatpush1.bf16.msra.mxu0 %v1412
        %1756 = vmatprep.subr.bf16.mxu0 0
        %1757 = vmatpush1.bf16.msra.mxu0 %v1413
        %1758 = vmatprep.subr.bf16.mxu0 0
        %1759 = vmatpush1.bf16.msra.mxu0 0
        %1760 = vmatprep.subr.bf16.mxu0 0
        %1761 = vmatpush1.bf16.msra.mxu0 0
        %1762 = vmatprep.subr.bf16.mxu0 0
        %1763 = vmatpush1.bf16.msra.mxu0 0
        %1764 = vmatprep.subr.bf16.mxu0 0
        %1765 = vmatpush1.bf16.msra.mxu0 0
        %1766 = vmatprep.subr.bf16.mxu0 0
        %1767 = vmatpush1.bf16.msra.mxu0 0
        %1768 = vmatprep.subr.bf16.mxu0 0
        %1769 = vmatpush1.bf16.msra.mxu0 0
        %1770 = vmatprep.subr.bf16.mxu0 0
        %1771 = vmatpush1.bf16.msra.mxu0 0
        %1772 = vmatprep.subr.bf16.mxu0 0
        %1773 = vmatpush1.bf16.msra.mxu0 0
        %1774 = vmatprep.subr.bf16.mxu0 0
        %1775 = vmatpush1.bf16.msra.mxu0 0
        %1776 = vmatprep.subr.bf16.mxu0 0
        %1777 = vmatpush1.bf16.msra.mxu0 0
        %1778 = vmatprep.subr.bf16.mxu0 0
        %1779 = vmatpush1.bf16.msra.mxu0 0
        %1780 = vmatprep.subr.bf16.mxu0 0
        %1781 = vmatpush1.bf16.msra.mxu0 0
        %1782 = vmatprep.mubr.bf16.mxu0 0
        %1783 = vmatmul.mubr.bf16.gmra.mrb[0].mxu0 %v1748
        %v1784 = vpop.f32.mrb[0].mxu0
        %v1785 = vadd.f32 0.0, %v1784
        %v1786 = vpop.f32.mrb[0].mxu0
        %v1787 = vpop.f32.mrb[0].mxu0
        %v1788 = vadd.f32 0.0, %v1787
        %v1789 = vpop.f32.mrb[0].mxu0
        %1790 = vdwg.mxu0
        %v1791 = vmul.f32 %v1070, %v1223
        %v1792 = vmul.f32 %v1073, %v1226
        %v1793 = vpack.c.bf16 %v1792, %v1791
        %v1795 = vsel %vm933, %v1793, 0
        %1797 = vmatprep.subr.bf16.mxu0 0
        %1798 = vmatpush1.bf16.msra.mxu0 %v1410
        %1799 = vmatprep.subr.bf16.mxu0 0
        %1800 = vmatpush1.bf16.msra.mxu0 %v1411
        %1801 = vmatprep.subr.bf16.mxu0 0
        %1802 = vmatpush1.bf16.msra.mxu0 %v1412
        %1803 = vmatprep.subr.bf16.mxu0 0
        %1804 = vmatpush1.bf16.msra.mxu0 %v1413
        %1805 = vmatprep.subr.bf16.mxu0 0
        %1806 = vmatpush1.bf16.msra.mxu0 0
        %1807 = vmatprep.subr.bf16.mxu0 0
        %1808 = vmatpush1.bf16.msra.mxu0 0
        %1809 = vmatprep.subr.bf16.mxu0 0
        %1810 = vmatpush1.bf16.msra.mxu0 0
        %1811 = vmatprep.subr.bf16.mxu0 0
        %1812 = vmatpush1.bf16.msra.mxu0 0
        %1813 = vmatprep.subr.bf16.mxu0 0
        %1814 = vmatpush1.bf16.msra.mxu0 0
        %1815 = vmatprep.subr.bf16.mxu0 0
        %1816 = vmatpush1.bf16.msra.mxu0 0
        %1817 = vmatprep.subr.bf16.mxu0 0
        %1818 = vmatpush1.bf16.msra.mxu0 0
        %1819 = vmatprep.subr.bf16.mxu0 0
        %1820 = vmatpush1.bf16.msra.mxu0 0
        %1821 = vmatprep.subr.bf16.mxu0 0
        %1822 = vmatpush1.bf16.msra.mxu0 0
        %1823 = vmatprep.subr.bf16.mxu0 0
        %1824 = vmatpush1.bf16.msra.mxu0 0
        %1825 = vmatprep.subr.bf16.mxu0 0
        %1826 = vmatpush1.bf16.msra.mxu0 0
        %1827 = vmatprep.subr.bf16.mxu0 0
        %1828 = vmatpush1.bf16.msra.mxu0 0
        %1829 = vmatprep.mubr.bf16.mxu0 0
        %1830 = vmatmul.mubr.bf16.gmra.mrb[0].mxu0 %v1795
        %v1831 = vpop.f32.mrb[0].mxu0
        %v1832 = vadd.f32 0.0, %v1831
        %v1833 = vpop.f32.mrb[0].mxu0
        %v1834 = vpop.f32.mrb[0].mxu0
        %v1835 = vadd.f32 0.0, %v1834
        %v1836 = vpop.f32.mrb[0].mxu0
        %1837 = vdwg.mxu0
        %v1838 = vmax.f32 %v1456, %v1503
        %v1839 = vmax.f32 %v1459, %v1506
        %v1840 = vmax.f32 %v1838, %v1550
        %v1841 = vmax.f32 %v1839, %v1553
        %v1842 = vsub.f32 %v1456, %v1840
        %v1843 = vsub.f32 %v1459, %v1841
        %v1844 = vmul.f32 %v1842, 1.442695
        %v1845 = vpow.pop %v1844
        %v1846 = vmul.f32 %v1843, 1.442695
        %v1847 = vpow.pop %v1846
        %v1848 = vsub.f32 %v1503, %v1840
        %v1849 = vsub.f32 %v1506, %v1841
        %v1850 = vmul.f32 %v1848, 1.442695
        %v1851 = vpow.pop %v1850
        %v1852 = vmul.f32 %v1849, 1.442695
        %v1853 = vpow.pop %v1852
        %v1854 = vsub.f32 %v1550, %v1840
        %v1855 = vsub.f32 %v1553, %v1841
        %v1856 = vmul.f32 %v1854, 1.442695
        %v1857 = vpow.pop %v1856
        %v1858 = vmul.f32 %v1855, 1.442695
        %v1859 = vpow.pop %v1858
        %v1860 = vadd.f32 %v1845, %v1851
        %v1861 = vadd.f32 %v1847, %v1853
        %v1862 = vadd.f32 %v1860, %v1857
        %v1863 = vadd.f32 %v1861, %v1859
        %v1864 = vrcp.pop %v1862
        %v1865 = vrcp.pop %v1863
        %v1866 = vmul.f32 %v1845, %v1864
        %v1867 = vmul.f32 %v1847, %v1865
        %v1868 = vmul.f32 %v1851, %v1864
        %v1869 = vmul.f32 %v1853, %v1865
        %v1870 = vmul.f32 %v1857, %v1864
        %v1871 = vmul.f32 %v1859, %v1865
        %v1872 = vpack.c.bf16 %v1867, %v1866
        %vm1873 = vcmask 64512
        %v1875 = vsel %vm1873, %v1872, 0
        %vm1877 = vcmask 1043456
        %v1879 = vsel %vm1877, %v1390, 0
        %1881 = vmatprep.subr.bf16.mxu0 0
        %1882 = vmatpush1.bf16.msra.mxu0 %v1879
        %1883 = vmatprep.subr.bf16.mxu0 0
        %1884 = vmatpush1.bf16.msra.mxu0 0
        %1885 = vmatprep.subr.bf16.mxu0 0
        %1886 = vmatpush1.bf16.msra.mxu0 0
        %1887 = vmatprep.subr.bf16.mxu0 0
        %1888 = vmatpush1.bf16.msra.mxu0 0
        %1889 = vmatprep.subr.bf16.mxu0 0
        %1890 = vmatpush1.bf16.msra.mxu0 0
        %1891 = vmatprep.subr.bf16.mxu0 0
        %1892 = vmatpush1.bf16.msra.mxu0 0
        %1893 = vmatprep.subr.bf16.mxu0 0
        %1894 = vmatpush1.bf16.msra.mxu0 0
        %1895 = vmatprep.subr.bf16.mxu0 0
        %1896 = vmatpush1.bf16.msra.mxu0 0
        %1897 = vmatprep.subr.bf16.mxu0 0
        %1898 = vmatpush1.bf16.msra.mxu0 0
        %1899 = vmatprep.subr.bf16.mxu0 0
        %1900 = vmatpush1.bf16.msra.mxu0 0
        %1901 = vmatprep.subr.bf16.mxu0 0
        %1902 = vmatpush1.bf16.msra.mxu0 0
        %1903 = vmatprep.subr.bf16.mxu0 0
        %1904 = vmatpush1.bf16.msra.mxu0 0
        %1905 = vmatprep.subr.bf16.mxu0 0
        %1906 = vmatpush1.bf16.msra.mxu0 0
        %1907 = vmatprep.subr.bf16.mxu0 0
        %1908 = vmatpush1.bf16.msra.mxu0 0
        %1909 = vmatprep.subr.bf16.mxu0 0
        %1910 = vmatpush1.bf16.msra.mxu0 0
        %1911 = vmatprep.subr.bf16.mxu0 0
        %1912 = vmatpush1.bf16.msra.mxu0 0
        %1913 = vmatprep.mubr.bf16.mxu0 0
        %1914 = vmatmul.mubr.bf16.gmra.mrb[0].mxu0 %v1875
        %v1915 = vpop.f32.mrb[0].mxu0
        %v1916 = vadd.f32 0.0, %v1915
        %v1917 = vpop.f32.mrb[0].mxu0
        %v1918 = vpop.f32.mrb[0].mxu0
        %v1919 = vadd.f32 0.0, %v1918
        %v1920 = vpop.f32.mrb[0].mxu0
        %1921 = vdwg.mxu0
        %v1922 = vmul.f32 %v1916, %v1294
        %v1923 = vmul.f32 %v1919, %v1297
        %v1924 = vpack.c.bf16 %v1869, %v1868
        %v1926 = vsel %vm1873, %v1924, 0
        %1928 = vmatprep.subr.bf16.mxu0 0
        %1929 = vmatpush1.bf16.msra.mxu0 %v1879
        %1930 = vmatprep.subr.bf16.mxu0 0
        %1931 = vmatpush1.bf16.msra.mxu0 0
        %1932 = vmatprep.subr.bf16.mxu0 0
        %1933 = vmatpush1.bf16.msra.mxu0 0
        %1934 = vmatprep.subr.bf16.mxu0 0
        %1935 = vmatpush1.bf16.msra.mxu0 0
        %1936 = vmatprep.subr.bf16.mxu0 0
        %1937 = vmatpush1.bf16.msra.mxu0 0
        %1938 = vmatprep.subr.bf16.mxu0 0
        %1939 = vmatpush1.bf16.msra.mxu0 0
        %1940 = vmatprep.subr.bf16.mxu0 0
        %1941 = vmatpush1.bf16.msra.mxu0 0
        %1942 = vmatprep.subr.bf16.mxu0 0
        %1943 = vmatpush1.bf16.msra.mxu0 0
        %1944 = vmatprep.subr.bf16.mxu0 0
        %1945 = vmatpush1.bf16.msra.mxu0 0
        %1946 = vmatprep.subr.bf16.mxu0 0
        %1947 = vmatpush1.bf16.msra.mxu0 0
        %1948 = vmatprep.subr.bf16.mxu0 0
        %1949 = vmatpush1.bf16.msra.mxu0 0
        %1950 = vmatprep.subr.bf16.mxu0 0
        %1951 = vmatpush1.bf16.msra.mxu0 0
        %1952 = vmatprep.subr.bf16.mxu0 0
        %1953 = vmatpush1.bf16.msra.mxu0 0
        %1954 = vmatprep.subr.bf16.mxu0 0
        %1955 = vmatpush1.bf16.msra.mxu0 0
        %1956 = vmatprep.subr.bf16.mxu0 0
        %1957 = vmatpush1.bf16.msra.mxu0 0
        %1958 = vmatprep.subr.bf16.mxu0 0
        %1959 = vmatpush1.bf16.msra.mxu0 0
        %1960 = vmatprep.mubr.bf16.mxu0 0
        %1961 = vmatmul.mubr.bf16.gmra.mrb[0].mxu0 %v1926
        %v1962 = vpop.f32.mrb[0].mxu0
        %v1963 = vadd.f32 0.0, %v1962
        %v1964 = vpop.f32.mrb[0].mxu0
        %v1965 = vpop.f32.mrb[0].mxu0
        %v1966 = vadd.f32 0.0, %v1965
        %v1967 = vpop.f32.mrb[0].mxu0
        %1968 = vdwg.mxu0
        %v1969 = vmul.f32 %v1963, %v1335
        %v1970 = vmul.f32 %v1966, %v1338
        %v1971 = vadd.f32 %v1922, %v1969
        %v1972 = vadd.f32 %v1923, %v1970
        %v1973 = vpack.c.bf16 %v1871, %v1870
        %v1975 = vsel %vm1873, %v1973, 0
        %1977 = vmatprep.subr.bf16.mxu0 0
        %1978 = vmatpush1.bf16.msra.mxu0 %v1879
        %1979 = vmatprep.subr.bf16.mxu0 0
        %1980 = vmatpush1.bf16.msra.mxu0 0
        %1981 = vmatprep.subr.bf16.mxu0 0
        %1982 = vmatpush1.bf16.msra.mxu0 0
        %1983 = vmatprep.subr.bf16.mxu0 0
        %1984 = vmatpush1.bf16.msra.mxu0 0
        %1985 = vmatprep.subr.bf16.mxu0 0
        %1986 = vmatpush1.bf16.msra.mxu0 0
        %1987 = vmatprep.subr.bf16.mxu0 0
        %1988 = vmatpush1.bf16.msra.mxu0 0
        %1989 = vmatprep.subr.bf16.mxu0 0
        %1990 = vmatpush1.bf16.msra.mxu0 0
        %1991 = vmatprep.subr.bf16.mxu0 0
        %1992 = vmatpush1.bf16.msra.mxu0 0
        %1993 = vmatprep.subr.bf16.mxu0 0
        %1994 = vmatpush1.bf16.msra.mxu0 0
        %1995 = vmatprep.subr.bf16.mxu0 0
        %1996 = vmatpush1.bf16.msra.mxu0 0
        %1997 = vmatprep.subr.bf16.mxu0 0
        %1998 = vmatpush1.bf16.msra.mxu0 0
        %1999 = vmatprep.subr.bf16.mxu0 0
        %2000 = vmatpush1.bf16.msra.mxu0 0
        %2001 = vmatprep.subr.bf16.mxu0 0
        %2002 = vmatpush1.bf16.msra.mxu0 0
        %2003 = vmatprep.subr.bf16.mxu0 0
        %2004 = vmatpush1.bf16.msra.mxu0 0
        %2005 = vmatprep.subr.bf16.mxu0 0
        %2006 = vmatpush1.bf16.msra.mxu0 0
        %2007 = vmatprep.subr.bf16.mxu0 0
        %2008 = vmatpush1.bf16.msra.mxu0 0
        %2009 = vmatprep.mubr.bf16.mxu0 0
        %2010 = vmatmul.mubr.bf16.gmra.mrb[0].mxu0 %v1975
        %v2011 = vpop.f32.mrb[0].mxu0
        %v2012 = vadd.f32 0.0, %v2011
        %v2013 = vpop.f32.mrb[0].mxu0
        %v2014 = vpop.f32.mrb[0].mxu0
        %v2015 = vadd.f32 0.0, %v2014
        %v2016 = vpop.f32.mrb[0].mxu0
        %2017 = vdwg.mxu0
        %v2018 = vmul.f32 %v2012, %v1376
        %v2019 = vmul.f32 %v2015, %v1379
        %v2020 = vadd.f32 %v1971, %v2018
        %v2021 = vadd.f32 %v1972, %v2019
        %v2022 = vmax.f32 %v1597, %v1644
        %v2023 = vmax.f32 %v1600, %v1647
        %v2024 = vmax.f32 %v2022, %v1691
        %v2025 = vmax.f32 %v2023, %v1694
        %v2026 = vsub.f32 %v1597, %v2024
        %v2027 = vsub.f32 %v1600, %v2025
        %v2028 = vmul.f32 %v2026, 1.442695
        %v2029 = vpow.pop %v2028
        %v2030 = vmul.f32 %v2027, 1.442695
        %v2031 = vpow.pop %v2030
        %v2032 = vsub.f32 %v1644, %v2024
        %v2033 = vsub.f32 %v1647, %v2025
        %v2034 = vmul.f32 %v2032, 1.442695
        %v2035 = vpow.pop %v2034
        %v2036 = vmul.f32 %v2033, 1.442695
        %v2037 = vpow.pop %v2036
        %v2038 = vsub.f32 %v1691, %v2024
        %v2039 = vsub.f32 %v1694, %v2025
        %v2040 = vmul.f32 %v2038, 1.442695
        %v2041 = vpow.pop %v2040
        %v2042 = vmul.f32 %v2039, 1.442695
        %v2043 = vpow.pop %v2042
        %v2044 = vadd.f32 %v2029, %v2035
        %v2045 = vadd.f32 %v2031, %v2037
        %v2046 = vadd.f32 %v2044, %v2041
        %v2047 = vadd.f32 %v2045, %v2043
        %v2048 = vrcp.pop %v2046
        %v2049 = vrcp.pop %v2047
        %v2050 = vmul.f32 %v2029, %v2048
        %v2051 = vmul.f32 %v2031, %v2049
        %v2052 = vmul.f32 %v2035, %v2048
        %v2053 = vmul.f32 %v2037, %v2049
        %v2054 = vmul.f32 %v2041, %v2048
        %v2055 = vmul.f32 %v2043, %v2049
        %v2056 = vpack.c.bf16 %v2051, %v2050
        %v2058 = vsel %vm1873, %v2056, 0
        %2060 = vmatprep.subr.bf16.mxu0 0
        %2061 = vmatpush1.bf16.msra.mxu0 %v1879
        %2062 = vmatprep.subr.bf16.mxu0 0
        %2063 = vmatpush1.bf16.msra.mxu0 0
        %2064 = vmatprep.subr.bf16.mxu0 0
        %2065 = vmatpush1.bf16.msra.mxu0 0
        %2066 = vmatprep.subr.bf16.mxu0 0
        %2067 = vmatpush1.bf16.msra.mxu0 0
        %2068 = vmatprep.subr.bf16.mxu0 0
        %2069 = vmatpush1.bf16.msra.mxu0 0
        %2070 = vmatprep.subr.bf16.mxu0 0
        %2071 = vmatpush1.bf16.msra.mxu0 0
        %2072 = vmatprep.subr.bf16.mxu0 0
        %2073 = vmatpush1.bf16.msra.mxu0 0
        %2074 = vmatprep.subr.bf16.mxu0 0
        %2075 = vmatpush1.bf16.msra.mxu0 0
        %2076 = vmatprep.subr.bf16.mxu0 0
        %2077 = vmatpush1.bf16.msra.mxu0 0
        %2078 = vmatprep.subr.bf16.mxu0 0
        %2079 = vmatpush1.bf16.msra.mxu0 0
        %2080 = vmatprep.subr.bf16.mxu0 0
        %2081 = vmatpush1.bf16.msra.mxu0 0
        %2082 = vmatprep.subr.bf16.mxu0 0
        %2083 = vmatpush1.bf16.msra.mxu0 0
        %2084 = vmatprep.subr.bf16.mxu0 0
        %2085 = vmatpush1.bf16.msra.mxu0 0
        %2086 = vmatprep.subr.bf16.mxu0 0
        %2087 = vmatpush1.bf16.msra.mxu0 0
        %2088 = vmatprep.subr.bf16.mxu0 0
        %2089 = vmatpush1.bf16.msra.mxu0 0
        %2090 = vmatprep.subr.bf16.mxu0 0
        %2091 = vmatpush1.bf16.msra.mxu0 0
        %2092 = vmatprep.mubr.bf16.mxu0 0
        %2093 = vmatmul.mubr.bf16.gmra.mrb[0].mxu0 %v2058
        %v2094 = vpop.f32.mrb[0].mxu0
        %v2095 = vadd.f32 0.0, %v2094
        %v2096 = vpop.f32.mrb[0].mxu0
        %v2097 = vpop.f32.mrb[0].mxu0
        %v2098 = vadd.f32 0.0, %v2097
        %v2099 = vpop.f32.mrb[0].mxu0
        %2100 = vdwg.mxu0
        %v2101 = vmul.f32 %v2095, %v1294
        %v2102 = vmul.f32 %v2098, %v1297
        %v2103 = vpack.c.bf16 %v2053, %v2052
        %v2105 = vsel %vm1873, %v2103, 0
        %2107 = vmatprep.subr.bf16.mxu0 0
        %2108 = vmatpush1.bf16.msra.mxu0 %v1879
        %2109 = vmatprep.subr.bf16.mxu0 0
        %2110 = vmatpush1.bf16.msra.mxu0 0
        %2111 = vmatprep.subr.bf16.mxu0 0
        %2112 = vmatpush1.bf16.msra.mxu0 0
        %2113 = vmatprep.subr.bf16.mxu0 0
        %2114 = vmatpush1.bf16.msra.mxu0 0
        %2115 = vmatprep.subr.bf16.mxu0 0
        %2116 = vmatpush1.bf16.msra.mxu0 0
        %2117 = vmatprep.subr.bf16.mxu0 0
        %2118 = vmatpush1.bf16.msra.mxu0 0
        %2119 = vmatprep.subr.bf16.mxu0 0
        %2120 = vmatpush1.bf16.msra.mxu0 0
        %2121 = vmatprep.subr.bf16.mxu0 0
        %2122 = vmatpush1.bf16.msra.mxu0 0
        %2123 = vmatprep.subr.bf16.mxu0 0
        %2124 = vmatpush1.bf16.msra.mxu0 0
        %2125 = vmatprep.subr.bf16.mxu0 0
        %2126 = vmatpush1.bf16.msra.mxu0 0
        %2127 = vmatprep.subr.bf16.mxu0 0
        %2128 = vmatpush1.bf16.msra.mxu0 0
        %2129 = vmatprep.subr.bf16.mxu0 0
        %2130 = vmatpush1.bf16.msra.mxu0 0
        %2131 = vmatprep.subr.bf16.mxu0 0
        %2132 = vmatpush1.bf16.msra.mxu0 0
        %2133 = vmatprep.subr.bf16.mxu0 0
        %2134 = vmatpush1.bf16.msra.mxu0 0
        %2135 = vmatprep.subr.bf16.mxu0 0
        %2136 = vmatpush1.bf16.msra.mxu0 0
        %2137 = vmatprep.subr.bf16.mxu0 0
        %2138 = vmatpush1.bf16.msra.mxu0 0
        %2139 = vmatprep.mubr.bf16.mxu0 0
        %2140 = vmatmul.mubr.bf16.gmra.mrb[0].mxu0 %v2105
        %v2141 = vpop.f32.mrb[0].mxu0
        %v2142 = vadd.f32 0.0, %v2141
        %v2143 = vpop.f32.mrb[0].mxu0
        %v2144 = vpop.f32.mrb[0].mxu0
        %v2145 = vadd.f32 0.0, %v2144
        %v2146 = vpop.f32.mrb[0].mxu0
        %2147 = vdwg.mxu0
        %v2148 = vmul.f32 %v2142, %v1335
        %v2149 = vmul.f32 %v2145, %v1338
        %v2150 = vadd.f32 %v2101, %v2148
        %v2151 = vadd.f32 %v2102, %v2149
        %v2152 = vpack.c.bf16 %v2055, %v2054
        %v2154 = vsel %vm1873, %v2152, 0
        %2156 = vmatprep.subr.bf16.mxu0 0
        %2157 = vmatpush1.bf16.msra.mxu0 %v1879
        %2158 = vmatprep.subr.bf16.mxu0 0
        %2159 = vmatpush1.bf16.msra.mxu0 0
        %2160 = vmatprep.subr.bf16.mxu0 0
        %2161 = vmatpush1.bf16.msra.mxu0 0
        %2162 = vmatprep.subr.bf16.mxu0 0
        %2163 = vmatpush1.bf16.msra.mxu0 0
        %2164 = vmatprep.subr.bf16.mxu0 0
        %2165 = vmatpush1.bf16.msra.mxu0 0
        %2166 = vmatprep.subr.bf16.mxu0 0
        %2167 = vmatpush1.bf16.msra.mxu0 0
        %2168 = vmatprep.subr.bf16.mxu0 0
        %2169 = vmatpush1.bf16.msra.mxu0 0
        %2170 = vmatprep.subr.bf16.mxu0 0
        %2171 = vmatpush1.bf16.msra.mxu0 0
        %2172 = vmatprep.subr.bf16.mxu0 0
        %2173 = vmatpush1.bf16.msra.mxu0 0
        %2174 = vmatprep.subr.bf16.mxu0 0
        %2175 = vmatpush1.bf16.msra.mxu0 0
        %2176 = vmatprep.subr.bf16.mxu0 0
        %2177 = vmatpush1.bf16.msra.mxu0 0
        %2178 = vmatprep.subr.bf16.mxu0 0
        %2179 = vmatpush1.bf16.msra.mxu0 0
        %2180 = vmatprep.subr.bf16.mxu0 0
        %2181 = vmatpush1.bf16.msra.mxu0 0
        %2182 = vmatprep.subr.bf16.mxu0 0
        %2183 = vmatpush1.bf16.msra.mxu0 0
        %2184 = vmatprep.subr.bf16.mxu0 0
        %2185 = vmatpush1.bf16.msra.mxu0 0
        %2186 = vmatprep.subr.bf16.mxu0 0
        %2187 = vmatpush1.bf16.msra.mxu0 0
        %2188 = vmatprep.mubr.bf16.mxu0 0
        %2189 = vmatmul.mubr.bf16.gmra.mrb[0].mxu0 %v2154
        %v2190 = vpop.f32.mrb[0].mxu0
        %v2191 = vadd.f32 0.0, %v2190
        %v2192 = vpop.f32.mrb[0].mxu0
        %v2193 = vpop.f32.mrb[0].mxu0
        %v2194 = vadd.f32 0.0, %v2193
        %v2195 = vpop.f32.mrb[0].mxu0
        %2196 = vdwg.mxu0
        %v2197 = vmul.f32 %v2191, %v1376
        %v2198 = vmul.f32 %v2194, %v1379
        %v2199 = vadd.f32 %v2150, %v2197
        %v2200 = vadd.f32 %v2151, %v2198
        %v2201 = vmax.f32 %v1738, %v1785
        %v2202 = vmax.f32 %v1741, %v1788
        %v2203 = vmax.f32 %v2201, %v1832
        %v2204 = vmax.f32 %v2202, %v1835
        %v2205 = vsub.f32 %v1738, %v2203
        %v2206 = vsub.f32 %v1741, %v2204
        %v2207 = vmul.f32 %v2205, 1.442695
        %v2208 = vpow.pop %v2207
        %v2209 = vmul.f32 %v2206, 1.442695
        %v2210 = vpow.pop %v2209
        %v2211 = vsub.f32 %v1785, %v2203
        %v2212 = vsub.f32 %v1788, %v2204
        %v2213 = vmul.f32 %v2211, 1.442695
        %v2214 = vpow.pop %v2213
        %v2215 = vmul.f32 %v2212, 1.442695
        %v2216 = vpow.pop %v2215
        %v2217 = vsub.f32 %v1832, %v2203
        %v2218 = vsub.f32 %v1835, %v2204
        %v2219 = vmul.f32 %v2217, 1.442695
        %v2220 = vpow.pop %v2219
        %v2221 = vmul.f32 %v2218, 1.442695
        %v2222 = vpow.pop %v2221
        %v2223 = vadd.f32 %v2208, %v2214
        %v2224 = vadd.f32 %v2210, %v2216
        %v2225 = vadd.f32 %v2223, %v2220
        %v2226 = vadd.f32 %v2224, %v2222
        %v2227 = vrcp.pop %v2225
        %v2228 = vrcp.pop %v2226
        %v2229 = vmul.f32 %v2208, %v2227
        %v2230 = vmul.f32 %v2210, %v2228
        %v2231 = vmul.f32 %v2214, %v2227
        %v2232 = vmul.f32 %v2216, %v2228
        %v2233 = vmul.f32 %v2220, %v2227
        %v2234 = vmul.f32 %v2222, %v2228
        %v2235 = vpack.c.bf16 %v2230, %v2229
        %v2237 = vsel %vm1873, %v2235, 0
        %2239 = vmatprep.subr.bf16.mxu0 0
        %2240 = vmatpush1.bf16.msra.mxu0 %v1879
        %2241 = vmatprep.subr.bf16.mxu0 0
        %2242 = vmatpush1.bf16.msra.mxu0 0
        %2243 = vmatprep.subr.bf16.mxu0 0
        %2244 = vmatpush1.bf16.msra.mxu0 0
        %2245 = vmatprep.subr.bf16.mxu0 0
        %2246 = vmatpush1.bf16.msra.mxu0 0
        %2247 = vmatprep.subr.bf16.mxu0 0
        %2248 = vmatpush1.bf16.msra.mxu0 0
        %2249 = vmatprep.subr.bf16.mxu0 0
        %2250 = vmatpush1.bf16.msra.mxu0 0
        %2251 = vmatprep.subr.bf16.mxu0 0
        %2252 = vmatpush1.bf16.msra.mxu0 0
        %2253 = vmatprep.subr.bf16.mxu0 0
        %2254 = vmatpush1.bf16.msra.mxu0 0
        %2255 = vmatprep.subr.bf16.mxu0 0
        %2256 = vmatpush1.bf16.msra.mxu0 0
        %2257 = vmatprep.subr.bf16.mxu0 0
        %2258 = vmatpush1.bf16.msra.mxu0 0
        %2259 = vmatprep.subr.bf16.mxu0 0
        %2260 = vmatpush1.bf16.msra.mxu0 0
        %2261 = vmatprep.subr.bf16.mxu0 0
        %2262 = vmatpush1.bf16.msra.mxu0 0
        %2263 = vmatprep.subr.bf16.mxu0 0
        %2264 = vmatpush1.bf16.msra.mxu0 0
        %2265 = vmatprep.subr.bf16.mxu0 0
        %2266 = vmatpush1.bf16.msra.mxu0 0
        %2267 = vmatprep.subr.bf16.mxu0 0
        %2268 = vmatpush1.bf16.msra.mxu0 0
        %2269 = vmatprep.subr.bf16.mxu0 0
        %2270 = vmatpush1.bf16.msra.mxu0 0
        %2271 = vmatprep.mubr.bf16.mxu0 0
        %2272 = vmatmul.mubr.bf16.gmra.mrb[0].mxu0 %v2237
        %v2273 = vpop.f32.mrb[0].mxu0
        %v2274 = vadd.f32 0.0, %v2273
        %v2275 = vpop.f32.mrb[0].mxu0
        %v2276 = vpop.f32.mrb[0].mxu0
        %v2277 = vadd.f32 0.0, %v2276
        %v2278 = vpop.f32.mrb[0].mxu0
        %2279 = vdwg.mxu0
        %v2280 = vmul.f32 %v2274, %v1294
        %v2281 = vmul.f32 %v2277, %v1297
        %v2282 = vpack.c.bf16 %v2232, %v2231
        %v2284 = vsel %vm1873, %v2282, 0
        %2286 = vmatprep.subr.bf16.mxu0 0
        %2287 = vmatpush1.bf16.msra.mxu0 %v1879
        %2288 = vmatprep.subr.bf16.mxu0 0
        %2289 = vmatpush1.bf16.msra.mxu0 0
        %2290 = vmatprep.subr.bf16.mxu0 0
        %2291 = vmatpush1.bf16.msra.mxu0 0
        %2292 = vmatprep.subr.bf16.mxu0 0
        %2293 = vmatpush1.bf16.msra.mxu0 0
        %2294 = vmatprep.subr.bf16.mxu0 0
        %2295 = vmatpush1.bf16.msra.mxu0 0
        %2296 = vmatprep.subr.bf16.mxu0 0
        %2297 = vmatpush1.bf16.msra.mxu0 0
        %2298 = vmatprep.subr.bf16.mxu0 0
        %2299 = vmatpush1.bf16.msra.mxu0 0
        %2300 = vmatprep.subr.bf16.mxu0 0
        %2301 = vmatpush1.bf16.msra.mxu0 0
        %2302 = vmatprep.subr.bf16.mxu0 0
        %2303 = vmatpush1.bf16.msra.mxu0 0
        %2304 = vmatprep.subr.bf16.mxu0 0
        %2305 = vmatpush1.bf16.msra.mxu0 0
        %2306 = vmatprep.subr.bf16.mxu0 0
        %2307 = vmatpush1.bf16.msra.mxu0 0
        %2308 = vmatprep.subr.bf16.mxu0 0
        %2309 = vmatpush1.bf16.msra.mxu0 0
        %2310 = vmatprep.subr.bf16.mxu0 0
        %2311 = vmatpush1.bf16.msra.mxu0 0
        %2312 = vmatprep.subr.bf16.mxu0 0
        %2313 = vmatpush1.bf16.msra.mxu0 0
        %2314 = vmatprep.subr.bf16.mxu0 0
        %2315 = vmatpush1.bf16.msra.mxu0 0
        %2316 = vmatprep.subr.bf16.mxu0 0
        %2317 = vmatpush1.bf16.msra.mxu0 0
        %2318 = vmatprep.mubr.bf16.mxu0 0
        %2319 = vmatmul.mubr.bf16.gmra.mrb[0].mxu0 %v2284
        %v2320 = vpop.f32.mrb[0].mxu0
        %v2321 = vadd.f32 0.0, %v2320
        %v2322 = vpop.f32.mrb[0].mxu0
        %v2323 = vpop.f32.mrb[0].mxu0
        %v2324 = vadd.f32 0.0, %v2323
        %v2325 = vpop.f32.mrb[0].mxu0
        %2326 = vdwg.mxu0
        %v2327 = vmul.f32 %v2321, %v1335
        %v2328 = vmul.f32 %v2324, %v1338
        %v2329 = vadd.f32 %v2280, %v2327
        %v2330 = vadd.f32 %v2281, %v2328
        %v2331 = vpack.c.bf16 %v2234, %v2233
        %v2333 = vsel %vm1873, %v2331, 0
        %2335 = vmatprep.subr.bf16.mxu0 0
        %2336 = vmatpush1.bf16.msra.mxu0 %v1879
        %2337 = vmatprep.subr.bf16.mxu0 0
        %2338 = vmatpush1.bf16.msra.mxu0 0
        %2339 = vmatprep.subr.bf16.mxu0 0
        %2340 = vmatpush1.bf16.msra.mxu0 0
        %2341 = vmatprep.subr.bf16.mxu0 0
        %2342 = vmatpush1.bf16.msra.mxu0 0
        %2343 = vmatprep.subr.bf16.mxu0 0
        %2344 = vmatpush1.bf16.msra.mxu0 0
        %2345 = vmatprep.subr.bf16.mxu0 0
        %2346 = vmatpush1.bf16.msra.mxu0 0
        %2347 = vmatprep.subr.bf16.mxu0 0
        %2348 = vmatpush1.bf16.msra.mxu0 0
        %2349 = vmatprep.subr.bf16.mxu0 0
        %2350 = vmatpush1.bf16.msra.mxu0 0
        %2351 = vmatprep.subr.bf16.mxu0 0
        %2352 = vmatpush1.bf16.msra.mxu0 0
        %2353 = vmatprep.subr.bf16.mxu0 0
        %2354 = vmatpush1.bf16.msra.mxu0 0
        %2355 = vmatprep.subr.bf16.mxu0 0
        %2356 = vmatpush1.bf16.msra.mxu0 0
        %2357 = vmatprep.subr.bf16.mxu0 0
        %2358 = vmatpush1.bf16.msra.mxu0 0
        %2359 = vmatprep.subr.bf16.mxu0 0
        %2360 = vmatpush1.bf16.msra.mxu0 0
        %2361 = vmatprep.subr.bf16.mxu0 0
        %2362 = vmatpush1.bf16.msra.mxu0 0
        %2363 = vmatprep.subr.bf16.mxu0 0
        %2364 = vmatpush1.bf16.msra.mxu0 0
        %2365 = vmatprep.subr.bf16.mxu0 0
        %2366 = vmatpush1.bf16.msra.mxu0 0
        %2367 = vmatprep.mubr.bf16.mxu0 0
        %2368 = vmatmul.mubr.bf16.gmra.mrb[0].mxu0 %v2333
        %v2369 = vpop.f32.mrb[0].mxu0
        %v2370 = vadd.f32 0.0, %v2369
        %v2371 = vpop.f32.mrb[0].mxu0
        %v2372 = vpop.f32.mrb[0].mxu0
        %v2373 = vadd.f32 0.0, %v2372
        %v2374 = vpop.f32.mrb[0].mxu0
        %2375 = vdwg.mxu0
        %v2376 = vmul.f32 %v2370, %v1376
        %v2377 = vmul.f32 %v2373, %v1379
        %v2378 = vadd.f32 %v2329, %v2376
        %v2379 = vadd.f32 %v2330, %v2377
        %2382 = vrot.lane.b32.xlu0 %v1868, 8
        %v2383 = vpop.permute.xlu0 %2382
        %2384 = vrot.lane.b32.xlu0 %v1869, 8
        %v2385 = vpop.permute.xlu0 %2384
        %2390 = vrot.lane.b32.xlu0 %v1870, 16
        %v2391 = vpop.permute.xlu0 %2390
        %2392 = vrot.lane.b32.xlu0 %v1871, 16
        %v2393 = vpop.permute.xlu0 %2392
        %2398 = vrot.lane.b32.xlu0 %v2050, 24
        %v2399 = vpop.permute.xlu0 %2398
        %2400 = vrot.lane.b32.xlu0 %v2051, 24
        %v2401 = vpop.permute.xlu0 %2400
        %2406 = vrot.lane.b32.xlu0 %v2052, 32
        %v2407 = vpop.permute.xlu0 %2406
        %2408 = vrot.lane.b32.xlu0 %v2053, 32
        %v2409 = vpop.permute.xlu0 %2408
        %2414 = vrot.lane.b32.xlu0 %v2054, 40
        %v2415 = vpop.permute.xlu0 %2414
        %2416 = vrot.lane.b32.xlu0 %v2055, 40
        %v2417 = vpop.permute.xlu0 %2416
        %2422 = vrot.lane.b32.xlu0 %v2229, 48
        %v2423 = vpop.permute.xlu0 %2422
        %2424 = vrot.lane.b32.xlu0 %v2230, 48
        %v2425 = vpop.permute.xlu0 %2424
        %2430 = vrot.lane.b32.xlu0 %v2231, 56
        %v2431 = vpop.permute.xlu0 %2430
        %2432 = vrot.lane.b32.xlu0 %v2232, 56
        %v2433 = vpop.permute.xlu0 %2432
        %2438 = vrot.lane.b32.xlu0 %v2233, 64
        %v2439 = vpop.permute.xlu0 %2438
        %2440 = vrot.lane.b32.xlu0 %v2234, 64
        %v2441 = vpop.permute.xlu0 %2440
        %v2444 = vsel %vm1873, %v1866, %v2383
        %v2445 = vsel %vm1873, %v1867, %v2385
        %vm2446 = vcmask 130048
        %v2447 = vsel %vm2446, %v2444, %v2391
        %v2448 = vsel %vm2446, %v2445, %v2393
        %vm2449 = vcmask 195584
        %v2450 = vsel %vm2449, %v2447, %v2399
        %v2451 = vsel %vm2449, %v2448, %v2401
        %vm2452 = vcmask 261120
        %v2453 = vsel %vm2452, %v2450, %v2407
        %v2454 = vsel %vm2452, %v2451, %v2409
        %vm2455 = vcmask 326656
        %v2456 = vsel %vm2455, %v2453, %v2415
        %v2457 = vsel %vm2455, %v2454, %v2417
        %vm2458 = vcmask 392192
        %v2459 = vsel %vm2458, %v2456, %v2423
        %v2460 = vsel %vm2458, %v2457, %v2425
        %vm2461 = vcmask 457728
        %v2462 = vsel %vm2461, %v2459, %v2431
        %v2463 = vsel %vm2461, %v2460, %v2433
        %v2464 = vsel %vm933, %v2462, %v2439
        %v2465 = vsel %vm933, %v2463, %v2441
        %v2466 = vpack.c.bf16 %v2465, %v2464
        %v2467 = vld [vmem:[%s11] sm:$0xf]
        %v2468 = vld [vmem:[%s11 + $0x4] sm:$0xf]
        %v2469 = vld [vmem:[%s11 + $0x8] sm:$0xf]
        %v2470 = vld [vmem:[%s11 + $0xc] sm:$0xf]
        %v2471 = vld [vmem:[%s11 + $0x10] sm:$0xf]
        %v2472 = vld [vmem:[%s11 + $0x14] sm:$0xf]
        %v2473 = vld [vmem:[%s11 + $0x18] sm:$0xf]
        %v2474 = vld [vmem:[%s11 + $0x1c] sm:$0xf]
        %v2475 = vld [vmem:[%s11 + $0x20] sm:$0xf]
        %v2485 = vunpack.c.l.b16 %v2467
        %v2486 = vunpack.c.l.b16 %v2468
        %v2487 = vunpack.c.l.b16 %v2469
        %v2488 = vunpack.c.l.b16 %v2470
        %v2489 = vunpack.c.l.b16 %v2471
        %v2490 = vunpack.c.l.b16 %v2472
        %v2491 = vunpack.c.l.b16 %v2473
        %v2492 = vunpack.c.l.b16 %v2474
        %v2493 = vunpack.c.l.b16 %v2475
        %v2494 = vpack.c.b16 %v2486, %v2485
        %v2495 = vpack.c.b16 %v2488, %v2487
        %v2496 = vpack.c.b16 %v2490, %v2489
        %v2497 = vpack.c.b16 %v2492, %v2491
        %v2498 = vpack.c.b16 %v2493, %v2493
        %vm2503 = vcmask 588800
        %v2505 = vsel %vm2503, %v2466, 0
        %v2508 = vsel %vm1877, %v2498, 0
        %2510 = vmatprep.subr.bf16.mxu0 0
        %2511 = vmatpush1.bf16.msra.mxu0 %v2494
        %2512 = vmatprep.subr.bf16.mxu0 0
        %2513 = vmatpush1.bf16.msra.mxu0 %v2495
        %2514 = vmatprep.subr.bf16.mxu0 0
        %2515 = vmatpush1.bf16.msra.mxu0 %v2496
        %2516 = vmatprep.subr.bf16.mxu0 0
        %2517 = vmatpush1.bf16.msra.mxu0 %v2497
        %2518 = vmatprep.subr.bf16.mxu0 0
        %2519 = vmatpush1.bf16.msra.mxu0 %v2508
        %2520 = vmatprep.subr.bf16.mxu0 0
        %2521 = vmatpush1.bf16.msra.mxu0 0
        %2522 = vmatprep.subr.bf16.mxu0 0
        %2523 = vmatpush1.bf16.msra.mxu0 0
        %2524 = vmatprep.subr.bf16.mxu0 0
        %2525 = vmatpush1.bf16.msra.mxu0 0
        %2526 = vmatprep.subr.bf16.mxu0 0
        %2527 = vmatpush1.bf16.msra.mxu0 0
        %2528 = vmatprep.subr.bf16.mxu0 0
        %2529 = vmatpush1.bf16.msra.mxu0 0
        %2530 = vmatprep.subr.bf16.mxu0 0
        %2531 = vmatpush1.bf16.msra.mxu0 0
        %2532 = vmatprep.subr.bf16.mxu0 0
        %2533 = vmatpush1.bf16.msra.mxu0 0
        %2534 = vmatprep.subr.bf16.mxu0 0
        %2535 = vmatpush1.bf16.msra.mxu0 0
        %2536 = vmatprep.subr.bf16.mxu0 0
        %2537 = vmatpush1.bf16.msra.mxu0 0
        %2538 = vmatprep.subr.bf16.mxu0 0
        %2539 = vmatpush1.bf16.msra.mxu0 0
        %2540 = vmatprep.subr.bf16.mxu0 0
        %2541 = vmatpush1.bf16.msra.mxu0 0
        %2542 = vmatprep.mubr.bf16.mxu0 0
        %2543 = vmatmul.mubr.bf16.gmra.mrb[0].mxu0 %v2505
        %v2544 = vpop.f32.mrb[0].mxu0
        %v2545 = vadd.f32 0.0, %v2544
        %v2546 = vpop.f32.mrb[0].mxu0
        %v2547 = vpop.f32.mrb[0].mxu0
        %v2548 = vadd.f32 0.0, %v2547
        %v2549 = vpop.f32.mrb[0].mxu0
        %2550 = vdwg.mxu0
        %2551 = vst [vmem:[%s862] sm:$0xff] %v2545
        %2552 = vst [vmem:[%s862 + $0x8] sm:$0xff] %v2548
        %v2553 = vld [vmem:[%s15] sm:$0x1]
        %v2554 = vpack.c.bf16 %v2021, %v2020
        %v2555 = vld [vmem:[%s12] sm:$0xf]
        %v2556 = vld [vmem:[%s12 + $0x4] sm:$0xf]
        %v2557 = vld [vmem:[%s12 + $0x8] sm:$0xf]
        %v2558 = vld [vmem:[%s12 + $0xc] sm:$0xf]
        %v2559 = vld [vmem:[%s12 + $0x10] sm:$0xf]
        %v2560 = vld [vmem:[%s12 + $0x14] sm:$0xf]
        %v2561 = vld [vmem:[%s12 + $0x18] sm:$0xf]
        %v2562 = vld [vmem:[%s12 + $0x1c] sm:$0xf]
        %v2571 = vunpack.c.l.b16 %v2555
        %v2572 = vunpack.c.l.b16 %v2556
        %v2573 = vunpack.c.l.b16 %v2557
        %v2574 = vunpack.c.l.b16 %v2558
        %v2575 = vunpack.c.l.b16 %v2559
        %v2576 = vunpack.c.l.b16 %v2560
        %v2577 = vunpack.c.l.b16 %v2561
        %v2578 = vunpack.c.l.b16 %v2562
        %v2579 = vpack.c.b16 %v2572, %v2571
        %v2580 = vpack.c.b16 %v2574, %v2573
        %v2581 = vpack.c.b16 %v2576, %v2575
        %v2582 = vpack.c.b16 %v2578, %v2577
        %v2588 = vsel %vm933, %v2554, 0
        %2590 = vmatprep.subr.bf16.mxu0 0
        %2591 = vmatpush1.bf16.msra.mxu0 %v2579
        %2592 = vmatprep.subr.bf16.mxu0 0
        %2593 = vmatpush1.bf16.msra.mxu0 %v2580
        %2594 = vmatprep.subr.bf16.mxu0 0
        %2595 = vmatpush1.bf16.msra.mxu0 %v2581
        %2596 = vmatprep.subr.bf16.mxu0 0
        %2597 = vmatpush1.bf16.msra.mxu0 %v2582
        %2598 = vmatprep.subr.bf16.mxu0 0
        %2599 = vmatpush1.bf16.msra.mxu0 0
        %2600 = vmatprep.subr.bf16.mxu0 0
        %2601 = vmatpush1.bf16.msra.mxu0 0
        %2602 = vmatprep.subr.bf16.mxu0 0
        %2603 = vmatpush1.bf16.msra.mxu0 0
        %2604 = vmatprep.subr.bf16.mxu0 0
        %2605 = vmatpush1.bf16.msra.mxu0 0
        %2606 = vmatprep.subr.bf16.mxu0 0
        %2607 = vmatpush1.bf16.msra.mxu0 0
        %2608 = vmatprep.subr.bf16.mxu0 0
        %2609 = vmatpush1.bf16.msra.mxu0 0
        %2610 = vmatprep.subr.bf16.mxu0 0
        %2611 = vmatpush1.bf16.msra.mxu0 0
        %2612 = vmatprep.subr.bf16.mxu0 0
        %2613 = vmatpush1.bf16.msra.mxu0 0
        %2614 = vmatprep.subr.bf16.mxu0 0
        %2615 = vmatpush1.bf16.msra.mxu0 0
        %2616 = vmatprep.subr.bf16.mxu0 0
        %2617 = vmatpush1.bf16.msra.mxu0 0
        %2618 = vmatprep.subr.bf16.mxu0 0
        %2619 = vmatpush1.bf16.msra.mxu0 0
        %2620 = vmatprep.subr.bf16.mxu0 0
        %2621 = vmatpush1.bf16.msra.mxu0 0
        %2622 = vmatprep.mubr.bf16.mxu0 0
        %2623 = vmatmul.mubr.bf16.gmra.mrb[0].mxu0 %v2588
        %v2624 = vpop.f32.mrb[0].mxu0
        %v2625 = vadd.f32 0.0, %v2624
        %v2626 = vpop.f32.mrb[0].mxu0
        %v2627 = vpop.f32.mrb[0].mxu0
        %v2628 = vadd.f32 0.0, %v2627
        %v2629 = vpop.f32.mrb[0].mxu0
        %2630 = vdwg.mxu0
        %v2632 = vlaneseq
        %v2633 = vshrl.u32 %v2632, 7
        %v2634 = vsub.s32 0, %v2633
        %v2635 = vrot.slane %v2553, %v2634
        %v2637 = vadd.f32 %v2635, %v2625
        %v2638 = vadd.f32 %v2635, %v2628
        %v2639 = vpack.c.bf16 %v2200, %v2199
        %v2640 = vld [vmem:[%s13] sm:$0xf]
        %v2641 = vld [vmem:[%s13 + $0x4] sm:$0xf]
        %v2642 = vld [vmem:[%s13 + $0x8] sm:$0xf]
        %v2643 = vld [vmem:[%s13 + $0xc] sm:$0xf]
        %v2644 = vld [vmem:[%s13 + $0x10] sm:$0xf]
        %v2645 = vld [vmem:[%s13 + $0x14] sm:$0xf]
        %v2646 = vld [vmem:[%s13 + $0x18] sm:$0xf]
        %v2647 = vld [vmem:[%s13 + $0x1c] sm:$0xf]
        %v2656 = vunpack.c.l.b16 %v2640
        %v2657 = vunpack.c.l.b16 %v2641
        %v2658 = vunpack.c.l.b16 %v2642
        %v2659 = vunpack.c.l.b16 %v2643
        %v2660 = vunpack.c.l.b16 %v2644
        %v2661 = vunpack.c.l.b16 %v2645
        %v2662 = vunpack.c.l.b16 %v2646
        %v2663 = vunpack.c.l.b16 %v2647
        %v2664 = vpack.c.b16 %v2657, %v2656
        %v2665 = vpack.c.b16 %v2659, %v2658
        %v2666 = vpack.c.b16 %v2661, %v2660
        %v2667 = vpack.c.b16 %v2663, %v2662
        %v2673 = vsel %vm933, %v2639, 0
        %2675 = vmatprep.subr.bf16.mxu0 0
        %2676 = vmatpush1.bf16.msra.mxu0 %v2664
        %2677 = vmatprep.subr.bf16.mxu0 0
        %2678 = vmatpush1.bf16.msra.mxu0 %v2665
        %2679 = vmatprep.subr.bf16.mxu0 0
        %2680 = vmatpush1.bf16.msra.mxu0 %v2666
        %2681 = vmatprep.subr.bf16.mxu0 0
        %2682 = vmatpush1.bf16.msra.mxu0 %v2667
        %2683 = vmatprep.subr.bf16.mxu0 0
        %2684 = vmatpush1.bf16.msra.mxu0 0
        %2685 = vmatprep.subr.bf16.mxu0 0
        %2686 = vmatpush1.bf16.msra.mxu0 0
        %2687 = vmatprep.subr.bf16.mxu0 0
        %2688 = vmatpush1.bf16.msra.mxu0 0
        %2689 = vmatprep.subr.bf16.mxu0 0
        %2690 = vmatpush1.bf16.msra.mxu0 0
        %2691 = vmatprep.subr.bf16.mxu0 0
        %2692 = vmatpush1.bf16.msra.mxu0 0
        %2693 = vmatprep.subr.bf16.mxu0 0
        %2694 = vmatpush1.bf16.msra.mxu0 0
        %2695 = vmatprep.subr.bf16.mxu0 0
        %2696 = vmatpush1.bf16.msra.mxu0 0
        %2697 = vmatprep.subr.bf16.mxu0 0
        %2698 = vmatpush1.bf16.msra.mxu0 0
        %2699 = vmatprep.subr.bf16.mxu0 0
        %2700 = vmatpush1.bf16.msra.mxu0 0
        %2701 = vmatprep.subr.bf16.mxu0 0
        %2702 = vmatpush1.bf16.msra.mxu0 0
        %2703 = vmatprep.subr.bf16.mxu0 0
        %2704 = vmatpush1.bf16.msra.mxu0 0
        %2705 = vmatprep.subr.bf16.mxu0 0
        %2706 = vmatpush1.bf16.msra.mxu0 0
        %2707 = vmatprep.mubr.bf16.mxu0 0
        %2708 = vmatmul.mubr.bf16.gmra.mrb[0].mxu0 %v2673
        %v2709 = vpop.f32.mrb[0].mxu0
        %v2710 = vadd.f32 0.0, %v2709
        %v2711 = vpop.f32.mrb[0].mxu0
        %v2712 = vpop.f32.mrb[0].mxu0
        %v2713 = vadd.f32 0.0, %v2712
        %v2714 = vpop.f32.mrb[0].mxu0
        %2715 = vdwg.mxu0
        %v2716 = vadd.f32 %v2637, %v2710
        %v2717 = vadd.f32 %v2638, %v2713
        %v2718 = vpack.c.bf16 %v2379, %v2378
        %v2719 = vld [vmem:[%s14] sm:$0xf]
        %v2720 = vld [vmem:[%s14 + $0x4] sm:$0xf]
        %v2721 = vld [vmem:[%s14 + $0x8] sm:$0xf]
        %v2722 = vld [vmem:[%s14 + $0xc] sm:$0xf]
        %v2723 = vld [vmem:[%s14 + $0x10] sm:$0xf]
        %v2724 = vld [vmem:[%s14 + $0x14] sm:$0xf]
        %v2725 = vld [vmem:[%s14 + $0x18] sm:$0xf]
        %v2726 = vld [vmem:[%s14 + $0x1c] sm:$0xf]
        %v2735 = vunpack.c.l.b16 %v2719
        %v2736 = vunpack.c.l.b16 %v2720
        %v2737 = vunpack.c.l.b16 %v2721
        %v2738 = vunpack.c.l.b16 %v2722
        %v2739 = vunpack.c.l.b16 %v2723
        %v2740 = vunpack.c.l.b16 %v2724
        %v2741 = vunpack.c.l.b16 %v2725
        %v2742 = vunpack.c.l.b16 %v2726
        %v2743 = vpack.c.b16 %v2736, %v2735
        %v2744 = vpack.c.b16 %v2738, %v2737
        %v2745 = vpack.c.b16 %v2740, %v2739
        %v2746 = vpack.c.b16 %v2742, %v2741
        %v2752 = vsel %vm933, %v2718, 0
        %2754 = vmatprep.subr.bf16.mxu0 0
        %2755 = vmatpush1.bf16.msra.mxu0 %v2743
        %2756 = vmatprep.subr.bf16.mxu0 0
        %2757 = vmatpush1.bf16.msra.mxu0 %v2744
        %2758 = vmatprep.subr.bf16.mxu0 0
        %2759 = vmatpush1.bf16.msra.mxu0 %v2745
        %2760 = vmatprep.subr.bf16.mxu0 0
        %2761 = vmatpush1.bf16.msra.mxu0 %v2746
        %2762 = vmatprep.subr.bf16.mxu0 0
        %2763 = vmatpush1.bf16.msra.mxu0 0
        %2764 = vmatprep.subr.bf16.mxu0 0
        %2765 = vmatpush1.bf16.msra.mxu0 0
        %2766 = vmatprep.subr.bf16.mxu0 0
        %2767 = vmatpush1.bf16.msra.mxu0 0
        %2768 = vmatprep.subr.bf16.mxu0 0
        %2769 = vmatpush1.bf16.msra.mxu0 0
        %2770 = vmatprep.subr.bf16.mxu0 0
        %2771 = vmatpush1.bf16.msra.mxu0 0
        %2772 = vmatprep.subr.bf16.mxu0 0
        %2773 = vmatpush1.bf16.msra.mxu0 0
        %2774 = vmatprep.subr.bf16.mxu0 0
        %2775 = vmatpush1.bf16.msra.mxu0 0
        %2776 = vmatprep.subr.bf16.mxu0 0
        %2777 = vmatpush1.bf16.msra.mxu0 0
        %2778 = vmatprep.subr.bf16.mxu0 0
        %2779 = vmatpush1.bf16.msra.mxu0 0
        %2780 = vmatprep.subr.bf16.mxu0 0
        %2781 = vmatpush1.bf16.msra.mxu0 0
        %2782 = vmatprep.subr.bf16.mxu0 0
        %2783 = vmatpush1.bf16.msra.mxu0 0
        %2784 = vmatprep.subr.bf16.mxu0 0
        %2785 = vmatpush1.bf16.msra.mxu0 0
        %2786 = vmatprep.mubr.bf16.mxu0 0
        %2787 = vmatmul.mubr.bf16.gmra.mrb[0].mxu0 %v2752
        %v2788 = vpop.f32.mrb[0].mxu0
        %v2789 = vadd.f32 0.0, %v2788
        %v2790 = vpop.f32.mrb[0].mxu0
        %v2791 = vpop.f32.mrb[0].mxu0
        %v2792 = vadd.f32 0.0, %v2791
        %v2793 = vpop.f32.mrb[0].mxu0
        %2794 = vdwg.mxu0
        %v2795 = vadd.f32 %v2716, %v2789
        %v2796 = vadd.f32 %v2717, %v2792
        %2797 = vadd.xlane.f32.xlu0 %v2795
        %v2798 = vpop.xlane.xlu0 %2797
        %2799 = vadd.xlane.f32.xlu0 %v2796
        %v2800 = vpop.xlane.xlu0 %2799
        %v2801 = vrcp.pop 128.0
        %v2802 = vmul.f32 %v2798, %v2801
        %v2803 = vmul.f32 %v2800, %v2801
        %v2804 = vsub.f32 %v2795, %v2802
        %v2805 = vsub.f32 %v2796, %v2803
        %v2806 = vmul.f32 %v2804, %v2804
        %v2807 = vmul.f32 %v2805, %v2805
        %2808 = vadd.xlane.f32.xlu0 %v2806
        %v2809 = vpop.xlane.xlu0 %2808
        %2810 = vadd.xlane.f32.xlu0 %v2807
        %v2811 = vpop.xlane.xlu0 %2810
        %v2812 = vmul.f32 %v2809, %v2801
        %v2813 = vmul.f32 %v2811, %v2801
        %v2814 = vadd.f32 %v2812, 1e-05
        %v2815 = vadd.f32 %v2813, 1e-05
        %v2816 = vrsqrt.pop %v2814
        %v2817 = vrsqrt.pop %v2815
        %v2818 = vmul.f32 %v2804, %v2816
        %v2819 = vmul.f32 %v2805, %v2817
        %v2820 = vld [vmem:[%s16] sm:$0x1]
        %v2822 = vlaneseq
        %v2823 = vshrl.u32 %v2822, 7
        %v2824 = vsub.s32 0, %v2823
        %v2825 = vrot.slane %v2820, %v2824
        %v2827 = vmul.f32 %v2818, %v2825
        %v2828 = vmul.f32 %v2819, %v2825
        %v2829 = vld [vmem:[%s17] sm:$0x1]
        %v2831 = vlaneseq
        %v2832 = vshrl.u32 %v2831, 7
        %v2833 = vsub.s32 0, %v2832
        %v2834 = vrot.slane %v2829, %v2833
        %v2836 = vadd.f32 %v2827, %v2834
        %v2837 = vadd.f32 %v2828, %v2834
        %v2838 = vmax.f32 %v2836, 0.0
        %v2839 = vmax.f32 %v2837, 0.0
        %v2840 = vpack.c.bf16 %v2839, %v2838
        %v2841 = vld [vmem:[%s18] sm:$0xf]
        %v2842 = vld [vmem:[%s18 + $0x4] sm:$0xf]
        %v2843 = vld [vmem:[%s18 + $0x8] sm:$0xf]
        %v2844 = vld [vmem:[%s18 + $0xc] sm:$0xf]
        %v2845 = vld [vmem:[%s18 + $0x10] sm:$0xf]
        %v2846 = vld [vmem:[%s18 + $0x14] sm:$0xf]
        %v2847 = vld [vmem:[%s18 + $0x18] sm:$0xf]
        %v2848 = vld [vmem:[%s18 + $0x1c] sm:$0xf]
        %v2849 = vld [vmem:[%s18 + $0x20] sm:$0xf]
        %v2850 = vld [vmem:[%s18 + $0x24] sm:$0xf]
        %v2851 = vld [vmem:[%s18 + $0x28] sm:$0xf]
        %v2852 = vld [vmem:[%s18 + $0x2c] sm:$0xf]
        %v2853 = vld [vmem:[%s18 + $0x30] sm:$0xf]
        %v2854 = vld [vmem:[%s18 + $0x34] sm:$0xf]
        %v2855 = vld [vmem:[%s18 + $0x38] sm:$0xf]
        %v2856 = vld [vmem:[%s18 + $0x3c] sm:$0xf]
        %v2857 = vld [vmem:[%s19] sm:$0x1]
        %v2859 = vlaneseq
        %v2860 = vshrl.u32 %v2859, 7
        %v2861 = vsub.s32 0, %v2860
        %v2862 = vrot.slane %v2857, %v2861
        %v2880 = vunpack.c.l.b16 %v2841
        %v2881 = vunpack.c.l.b16 %v2842
        %v2882 = vunpack.c.l.b16 %v2843
        %v2883 = vunpack.c.l.b16 %v2844
        %v2884 = vunpack.c.l.b16 %v2845
        %v2885 = vunpack.c.l.b16 %v2846
        %v2886 = vunpack.c.l.b16 %v2847
        %v2887 = vunpack.c.l.b16 %v2848
        %v2888 = vunpack.c.l.b16 %v2849
        %v2889 = vunpack.c.l.b16 %v2850
        %v2890 = vunpack.c.l.b16 %v2851
        %v2891 = vunpack.c.l.b16 %v2852
        %v2892 = vunpack.c.l.b16 %v2853
        %v2893 = vunpack.c.l.b16 %v2854
        %v2894 = vunpack.c.l.b16 %v2855
        %v2895 = vunpack.c.l.b16 %v2856
        %v2896 = vpack.c.b16 %v2881, %v2880
        %v2897 = vpack.c.b16 %v2883, %v2882
        %v2898 = vpack.c.b16 %v2885, %v2884
        %v2899 = vpack.c.b16 %v2887, %v2886
        %v2900 = vpack.c.b16 %v2889, %v2888
        %v2901 = vpack.c.b16 %v2891, %v2890
        %v2902 = vpack.c.b16 %v2893, %v2892
        %v2903 = vpack.c.b16 %v2895, %v2894
        %2912 = vmatprep.subr.bf16.mxu0 0
        %2913 = vmatpush1.bf16.msra.mxu0 %v2896
        %2914 = vmatprep.subr.bf16.mxu0 0
        %2915 = vmatpush1.bf16.msra.mxu0 %v2897
        %2916 = vmatprep.subr.bf16.mxu0 0
        %2917 = vmatpush1.bf16.msra.mxu0 %v2898
        %2918 = vmatprep.subr.bf16.mxu0 0
        %2919 = vmatpush1.bf16.msra.mxu0 %v2899
        %2920 = vmatprep.subr.bf16.mxu0 0
        %2921 = vmatpush1.bf16.msra.mxu0 %v2900
        %2922 = vmatprep.subr.bf16.mxu0 0
        %2923 = vmatpush1.bf16.msra.mxu0 %v2901
        %2924 = vmatprep.subr.bf16.mxu0 0
        %2925 = vmatpush1.bf16.msra.mxu0 %v2902
        %2926 = vmatprep.subr.bf16.mxu0 0
        %2927 = vmatpush1.bf16.msra.mxu0 %v2903
        %2928 = vmatprep.subr.bf16.mxu0 0
        %2929 = vmatpush1.bf16.msra.mxu0 0
        %2930 = vmatprep.subr.bf16.mxu0 0
        %2931 = vmatpush1.bf16.msra.mxu0 0
        %2932 = vmatprep.subr.bf16.mxu0 0
        %2933 = vmatpush1.bf16.msra.mxu0 0
        %2934 = vmatprep.subr.bf16.mxu0 0
        %2935 = vmatpush1.bf16.msra.mxu0 0
        %2936 = vmatprep.subr.bf16.mxu0 0
        %2937 = vmatpush1.bf16.msra.mxu0 0
        %2938 = vmatprep.subr.bf16.mxu0 0
        %2939 = vmatpush1.bf16.msra.mxu0 0
        %2940 = vmatprep.subr.bf16.mxu0 0
        %2941 = vmatpush1.bf16.msra.mxu0 0
        %2942 = vmatprep.subr.bf16.mxu0 0
        %2943 = vmatpush1.bf16.msra.mxu0 0
        %2944 = vmatprep.mubr.bf16.mxu0 0
        %2945 = vmatmul.mubr.bf16.gmra.mrb[0].mxu0 %v2840
        %v2946 = vpop.f32.mrb[0].mxu0
        %v2947 = vadd.f32 %v2862, %v2946
        %v2948 = vpop.f32.mrb[0].mxu0
        %v2949 = vpop.f32.mrb[0].mxu0
        %v2950 = vadd.f32 %v2862, %v2949
        %v2951 = vpop.f32.mrb[0].mxu0
        %2952 = vdwg.mxu0
        %v2953 = vsel %vm933, %v2947, 0.0
        %2954 = vadd.xlane.f32.xlu0 %v2953
        %v2955 = vpop.xlane.xlu0 %2954
        %v2956 = vsel %vm933, %v2950, 0.0
        %2957 = vadd.xlane.f32.xlu0 %v2956
        %v2958 = vpop.xlane.xlu0 %2957
        %v2959 = vrcp.pop 64.0
        %v2960 = vmul.f32 %v2955, %v2959
        %v2961 = vmul.f32 %v2958, %v2959
        %v2962 = vsub.f32 %v2947, %v2960
        %v2963 = vsub.f32 %v2950, %v2961
        %v2964 = vmul.f32 %v2962, %v2962
        %v2965 = vmul.f32 %v2963, %v2963
        %v2966 = vsel %vm933, %v2964, 0.0
        %2967 = vadd.xlane.f32.xlu0 %v2966
        %v2968 = vpop.xlane.xlu0 %2967
        %v2969 = vsel %vm933, %v2965, 0.0
        %2970 = vadd.xlane.f32.xlu0 %v2969
        %v2971 = vpop.xlane.xlu0 %2970
        %v2972 = vmul.f32 %v2968, %v2959
        %v2973 = vmul.f32 %v2971, %v2959
        %v2974 = vadd.f32 %v2972, 1e-05
        %v2975 = vadd.f32 %v2973, 1e-05
        %v2976 = vrsqrt.pop %v2974
        %v2977 = vrsqrt.pop %v2975
        %v2978 = vmul.f32 %v2962, %v2976
        %v2979 = vmul.f32 %v2963, %v2977
        %v2980 = vld [vmem:[%s20] sm:$0x1]
        %v2982 = vlaneseq
        %v2983 = vshrl.u32 %v2982, 7
        %v2984 = vsub.s32 0, %v2983
        %v2985 = vrot.slane %v2980, %v2984
        %v2987 = vmul.f32 %v2978, %v2985
        %v2988 = vmul.f32 %v2979, %v2985
        %v2989 = vld [vmem:[#allocation2] sm:$0x1]
        %v2991 = vlaneseq
        %v2992 = vshrl.u32 %v2991, 7
        %v2993 = vsub.s32 0, %v2992
        %v2994 = vrot.slane %v2989, %v2993
        %v2996 = vadd.f32 %v2987, %v2994
        %v2997 = vadd.f32 %v2988, %v2994
        %v2998 = vmax.f32 %v2996, 0.0
        %v2999 = vmax.f32 %v2997, 0.0
        %v3000 = vpack.c.bf16 %v2999, %v2998
        %v3001 = vld [vmem:[#allocation5] sm:$0xf]
        %v3002 = vld [vmem:[#allocation5 + $0x4] sm:$0xf]
        %v3003 = vld [vmem:[#allocation5 + $0x8] sm:$0xf]
        %v3004 = vld [vmem:[#allocation5 + $0xc] sm:$0xf]
        %v3005 = vld [vmem:[#allocation5 + $0x10] sm:$0xf]
        %v3006 = vld [vmem:[#allocation5 + $0x14] sm:$0xf]
        %v3007 = vld [vmem:[#allocation5 + $0x18] sm:$0xf]
        %v3008 = vld [vmem:[#allocation5 + $0x1c] sm:$0xf]
        %v3009 = vld [vmem:[#allocation7] sm:$0x1]
        %v3011 = vlaneseq
        %v3012 = vshrl.u32 %v3011, 7
        %v3013 = vsub.s32 0, %v3012
        %v3014 = vrot.slane %v3009, %v3013
        %v3024 = vunpack.c.l.b16 %v3001
        %v3025 = vunpack.c.l.b16 %v3002
        %v3026 = vunpack.c.l.b16 %v3003
        %v3027 = vunpack.c.l.b16 %v3004
        %v3028 = vunpack.c.l.b16 %v3005
        %v3029 = vunpack.c.l.b16 %v3006
        %v3030 = vunpack.c.l.b16 %v3007
        %v3031 = vunpack.c.l.b16 %v3008
        %v3032 = vpack.c.b16 %v3025, %v3024
        %v3033 = vpack.c.b16 %v3027, %v3026
        %v3034 = vpack.c.b16 %v3029, %v3028
        %v3035 = vpack.c.b16 %v3031, %v3030
        %v3041 = vsel %vm933, %v3000, 0
        %3043 = vmatprep.subr.bf16.mxu0 0
        %3044 = vmatpush1.bf16.msra.mxu0 %v3032
        %3045 = vmatprep.subr.bf16.mxu0 0
        %3046 = vmatpush1.bf16.msra.mxu0 %v3033
        %3047 = vmatprep.subr.bf16.mxu0 0
        %3048 = vmatpush1.bf16.msra.mxu0 %v3034
        %3049 = vmatprep.subr.bf16.mxu0 0
        %3050 = vmatpush1.bf16.msra.mxu0 %v3035
        %3051 = vmatprep.subr.bf16.mxu0 0
        %3052 = vmatpush1.bf16.msra.mxu0 0
        %3053 = vmatprep.subr.bf16.mxu0 0
        %3054 = vmatpush1.bf16.msra.mxu0 0
        %3055 = vmatprep.subr.bf16.mxu0 0
        %3056 = vmatpush1.bf16.msra.mxu0 0
        %3057 = vmatprep.subr.bf16.mxu0 0
        %3058 = vmatpush1.bf16.msra.mxu0 0
        %3059 = vmatprep.subr.bf16.mxu0 0
        %3060 = vmatpush1.bf16.msra.mxu0 0
        %3061 = vmatprep.subr.bf16.mxu0 0
        %3062 = vmatpush1.bf16.msra.mxu0 0
        %3063 = vmatprep.subr.bf16.mxu0 0
        %3064 = vmatpush1.bf16.msra.mxu0 0
        %3065 = vmatprep.subr.bf16.mxu0 0
        %3066 = vmatpush1.bf16.msra.mxu0 0
        %3067 = vmatprep.subr.bf16.mxu0 0
        %3068 = vmatpush1.bf16.msra.mxu0 0
        %3069 = vmatprep.subr.bf16.mxu0 0
        %3070 = vmatpush1.bf16.msra.mxu0 0
        %3071 = vmatprep.subr.bf16.mxu0 0
        %3072 = vmatpush1.bf16.msra.mxu0 0
        %3073 = vmatprep.subr.bf16.mxu0 0
        %3074 = vmatpush1.bf16.msra.mxu0 0
        %3075 = vmatprep.mubr.bf16.mxu0 0
        %3076 = vmatmul.mubr.bf16.gmra.mrb[0].mxu0 %v3041
        %v3077 = vpop.f32.mrb[0].mxu0
        %v3078 = vadd.f32 %v3014, %v3077
        %v3079 = vpop.f32.mrb[0].mxu0
        %v3080 = vpop.f32.mrb[0].mxu0
        %v3081 = vadd.f32 %v3014, %v3080
        %v3082 = vpop.f32.mrb[0].mxu0
        %3083 = vdwg.mxu0
        %3084 = vst.msk [vmem:[%s831] sm:$0xff] %vm933, %v3078
        %3085 = vst.msk [vmem:[%s831 + $0x8] sm:$0xff] %vm933, %v3081
        %s3086 = sand.u32 %s569, 1
        %s3087 = scalar_lea.sflag [#allocation4], %s3086
        %s3088 = sand.u32 %s569, 1
        %s3089 = smul.addr %s3088, 16
        %s3090 = scalar_lea.vmem [#allocation8], %s3089
        %s3091 = smul.u32 2, %s42
        %p3092 = scmp.lt.s32.totalorder %s3091, 3
        %s3093 = scalar_select %p3092, %s3091, 3
        %s3094 = smul.addr %s3093, 8
        %s3095 = scalar_lea.vmem %s25, %s3094
        // Predicated region
        $region129: #{improved_cross_modal_attention.1} parent=115 // pred_check
          %p3096 = pneg %p579
        $region130: #{improved_cross_modal_attention.1} parent=115 // pred_check_branch
          %3098 = sbr.rel (%p3096) target = $region132
        $region131: #{improved_cross_modal_attention.1} parent=115 // pred_region
          %s3099 = smul.u32 2, %s42
          %s3101 = ssub.s32 256, 256
          %3102 = vsyncadd %s3087, %s3101
          %s3103 = smul.addr %s3099, 128
          %s3104 = scalar_lea.hbm %s24, %s3103
          %s3105 = sshll.u32 %s3090, 4
          %s3106 = int_to_ptr.vmem [resolvable:$true] %s3105
          %3111 = dma.vmem_to_hbm [thread:$0]  %s3106, 256, %s3104, %s3087, 128, 128, 8
        $region132: #{improved_cross_modal_attention.1} parent=115 // pred_fallthru
          _
        // Predicated region
        $region133: #{improved_cross_modal_attention.1} parent=115 // pred_check
          %p3112 = pneg %p605
        $region134: #{improved_cross_modal_attention.1} parent=115 // pred_check_branch
          %3114 = sbr.rel (%p3112) target = $region136
        $region135: #{improved_cross_modal_attention.1} parent=115 // pred_region
          %s3115 = smul.u32 2, %s42
        $region136: #{improved_cross_modal_attention.1} parent=115 // pred_fallthru
          _
      $region116: #{improved_cross_modal_attention.1} parent=5 // pred_fallthru
        _
      %p3116 = scmp.le.s32.totalorder 2, %s37
      // Predicated region
      $region137: #{improved_cross_modal_attention.1} parent=5 // pred_check
        %p3117 = pneg %p3116
      $region138: #{improved_cross_modal_attention.1} parent=5 // pred_check_branch
        %3119 = sbr.rel (%p3117) target = $region140
      $region139: #{improved_cross_modal_attention.1} parent=5 // pred_region
        %s3120 = ssub.s32 %s37, 2
        // Predicated region
        $region141: #{improved_cross_modal_attention.1} parent=139 // pred_check
          %p3121 = pneg %p585
        $region142: #{improved_cross_modal_attention.1} parent=139 // pred_check_branch
          %3123 = sbr.rel (%p3121) target = $region144
        $region143: #{improved_cross_modal_attention.1} parent=139 // pred_region
          %s3124 = sand.u32 %s570, 1
          %s3125 = scalar_lea.sflag [#allocation4], %s3124
          %s3126 = sand.u32 %s570, 1
          %s3127 = smul.addr %s3126, 16
          %s3128 = scalar_lea.vmem [#allocation8], %s3127
          %3129 = dma.done %s3125, 256
        $region144: #{improved_cross_modal_attention.1} parent=139 // pred_fallthru
          _
        // Predicated region
        $region145: #{improved_cross_modal_attention.1} parent=139 // pred_check
          %p3130 = pneg %p611
        $region146: #{improved_cross_modal_attention.1} parent=139 // pred_check_branch
          %3132 = sbr.rel (%p3130) target = $region148
        $region147: #{improved_cross_modal_attention.1} parent=139 // pred_region
          %s3133 = smul.u32 2, %s43
          %p3134 = scmp.lt.s32.totalorder %s3133, 3
          %s3135 = scalar_select %p3134, %s3133, 3
          %s3136 = smul.addr %s3135, 8
          %s3137 = scalar_lea.vmem %s25, %s3136
        $region148: #{improved_cross_modal_attention.1} parent=139 // pred_fallthru
          _
      $region140: #{improved_cross_modal_attention.1} parent=5 // pred_fallthru
        _
    $region6: #{improved_cross_modal_attention.1} parent=1 // loop_footer
      %s41 = sadd.s32 1, %s37
    $region7: #{improved_cross_modal_attention.1} parent=1 // loop_footer_branch
      %36 = sbr.rel target = $region3
    $region8: #{improved_cross_modal_attention.1} parent=1 // loop_exit
      _
    %3138 = vsyncpa [#allocation3], 1
    %s3139 = scalar_lea.sflag [#allocation3], 1
    %3140 = vsyncpa %s3139, 1
    %3141 = vsyncpa [#allocation6], 1
    %3142 = vsyncpa [#allocation4], 1
    %s3143 = scalar_lea.sflag [#allocation4], 1
    %3144 = vsyncpa %s3143, 1

</llo_original>
